<compile_context>
chip_gen: v6e
topology: v6e:2x2x1
jax: 0.10.0
libtpu: 0.0.40
codegen_flags: <defaults>
</compile_context>

<pallas_src>
import functools

import jax
import jax.numpy as jnp
from jax.experimental import pallas as pl
from jax.experimental.pallas import tpu as pltpu

_FC = 128  # filter tile width = lane width of the output blocks


def _lc1d_kernel(x_ref, w_ref, b_ref, o_ref, *, fk_valid, ragged):
    # x_ref: (tb, Fc*K)    lane-dense slab of X.reshape(B, F*K)
    # w_ref: (1, Fc*K, Fc) block-diagonal weight slab for this filter tile
    # b_ref: (1, Fc)       bias chunk for this filter tile
    # o_ref: (tb, Fc)      lane-dense output slab
    x = x_ref[...]
    if ragged:
        # Lanes past the logical F*K extent hold stale VMEM after the partial
        # DMA; zero them so they cannot reach the MXU (NaN-safe).
        j = pl.program_id(0)
        col = jax.lax.broadcasted_iota(jnp.int32, x.shape, 1)
        x = jnp.where(col + j * x.shape[1] < fk_valid, x, 0)
    acc = jnp.dot(
        x,
        w_ref[0],
        preferred_element_type=jnp.float32,
        precision=jax.lax.Precision.HIGHEST,
    )
    acc = acc + b_ref[...].astype(jnp.float32)
    o_ref[...] = acc.astype(o_ref.dtype)


def _sublane_multiple(dtype):
    # f32 -> 8, bf16 -> 16, int8/fp8 -> 32 (packed sublane rule).
    return {4: 8, 2: 16, 1: 32}.get(jnp.dtype(dtype).itemsize, 8)


def _vmem_budgets():
    """(tile budget, vmem_limit_bytes), generation-aware."""
    cap = 64 * 1024 * 1024
    try:
        cap = int(getattr(pltpu.get_tpu_info(), "vmem_capacity_bytes", cap))
    except Exception:
        pass
    if cap <= 64 * 1024 * 1024:           # v7x-class: 64 MiB per TensorCore
        return 20 * 1024 * 1024, 48 * 1024 * 1024
    return 44 * 1024 * 1024, 96 * 1024 * 1024   # v5e / v6e: 128 MiB physical


def _pick_batch_tile(B, bytes_per_row, budget_bytes, sublane,
                     max_tb=2048, min_tb=256, target_steps=8):
    """Largest VMEM-friendly batch tile that still yields >= 2 (target ~8)
    balanced grid steps, rounded to the dtype sublane multiple."""
    tb_vmem = max(sublane, budget_bytes // max(bytes_per_row, 1))
    tb = min(max_tb, tb_vmem)
    # Prefer ~target_steps batch tiles, but keep tiles big enough for
    # efficient DMAs (per-step overhead ~0.35us).
    tb = min(tb, max(min_tb, -(-B // target_steps)))
    tb = max(sublane, (tb // sublane) * sublane)
    # Guarantee at least 2 batch tiles whenever B can actually be split
    # (v7x megacore sharding + double-buffer overlap).
    if -(-B // tb) < 2 and B > sublane:
        half = -(-B // 2)
        tb = max(sublane, ((half + sublane - 1) // sublane) * sublane)
    return int(tb)


def _lc1d_pallas(x, weight, bias):
    B, F, K = x.shape
    dtype = x.dtype
    isz = jnp.dtype(dtype).itemsize
    Fc = _FC
    NF = -(-F // Fc)
    F_pad = NF * Fc
    ragged = (F % Fc) != 0

    tile_budget, vmem_limit = _vmem_budgets()

    # Free, contiguous reshape -- no HBM transpose of X.
    x2d = x.reshape(B, F * K)

    # Small block-diagonal weight slabs (weight-sized, built once per call):
    #   w_blk[j, f*K + k, g] = W[j*Fc + f, k] if g == f else 0
    w_pad = jnp.zeros((F_pad, K), dtype).at[:F, :].set(weight.astype(dtype))
    w_blk = jnp.einsum(
        "jfk,fg->jfkg",
        w_pad.reshape(NF, Fc, K),
        jnp.eye(Fc, dtype=dtype),
    ).reshape(NF, Fc * K, Fc)

    b_pad = jnp.zeros((1, F_pad), dtype)
    if bias is not None:
        b_pad = b_pad.at[0, :F].set(bias.astype(dtype))

    sub = _sublane_multiple(dtype)
    fixed = 2 * (Fc * K * Fc + Fc) * isz            # resident W + bias buffers
    per_row = 2 * Fc * K * isz + 2 * Fc * isz       # double-buffered X in + out
    tb = _pick_batch_tile(B, per_row, max(tile_budget - fixed, per_row * sub), sub)
    NB = -(-B // tb)

    kernel = functools.partial(_lc1d_kernel, fk_valid=F * K, ragged=ragged)

    # TODO(synk): optional pl.Buffered(3) on the X spec for v5e/v6e (extra VMEM
    # headroom there); left at default depth 2 to keep v7x tile budget intact.
    out = pl.pallas_call(
        kernel,
        out_shape=jax.ShapeDtypeStruct((B, F), dtype),
        grid=(NF, NB),                                   # filter tiles outer, batch inner
        in_specs=[
            pl.BlockSpec((tb, Fc * K), lambda j, i: (i, j)),        # X slab (streamed)
            pl.BlockSpec((1, Fc * K, Fc), lambda j, i: (j, 0, 0)),  # W slab (per filter tile)
            pl.BlockSpec((1, Fc), lambda j, i: (0, j)),             # bias chunk
        ],
        out_specs=pl.BlockSpec((tb, Fc), lambda j, i: (i, j)),      # lane-dense output
        compiler_params=pltpu.CompilerParams(
            dimension_semantics=("parallel", "parallel"),
            vmem_limit_bytes=vmem_limit,
        ),
    )(x2d, w_blk, b_pad)

    return out[:, :, None]


def locally_connected_1d(x, weight, bias=None, *, force_pallas=False):
    """x: (B, F, K); weight: (F, K); bias: (F,) or None -> (B, F, 1)."""
    assert x.ndim == 3, x.shape
    B, F, K = x.shape
    assert weight.shape == (F, K), (weight.shape, (F, K))
    isz = jnp.dtype(x.dtype).itemsize

    tile_budget, _ = _vmem_budgets()
    w_slab_bytes = 2 * _FC * K * _FC * isz

    # Pure-jnp fast path for tiny problems / tiny filter counts, where kernel
    # launch + tiling overhead (and lane padding for F << 128) dominates.
    small = (x.nbytes < (1 << 20)) or (F < _FC) or (B < 16)
    if (small and not force_pallas) or (w_slab_bytes > tile_budget // 2):
        # TODO(synk): very large kernel_size K would need a K-blocked
        # accumulating grid axis; deeppink uses tiny K so a fused XLA
        # multiply+reduce is the right tool here.
        out = jnp.sum(x * weight[None, :, :].astype(x.dtype), axis=2)
        if bias is not None:
            out = out + bias[None, :].astype(x.dtype)
        return out[:, :, None]

    return _lc1d_pallas(x, weight, bias)


if __name__ == "__main__":
    key = jax.random.PRNGKey(0)
    k0, k1, k2, k3, k4, k5 = jax.random.split(key, 6)

    # 1) Module-faithful tiny demo (init: weight=0.1, bias=0) -> jnp fast path.
    batch, n_filters, kernel_size = 2, 4, 16
    weight = jnp.full((n_filters, kernel_size), 0.1, dtype=jnp.float32)
    bias = jnp.zeros((n_filters,), dtype=jnp.float32)
    x = jax.random.normal(k0, (batch, n_filters, kernel_size), dtype=jnp.float32)
    out = jax.block_until_ready(locally_connected_1d(x, weight, bias))
    ref = (jnp.sum(x * weight[None], axis=2) + bias[None, :])[:, :, None]
    assert out.shape == (batch, n_filters, 1), out.shape
    assert jnp.allclose(out, ref, atol=1e-5, rtol=1e-5)

    # 2) Pallas path, lane-aligned filters: B=192, F=384, K=8 -> grid (3, 2).
    B, F, K = 192, 384, 8
    xb = jax.random.normal(k1, (B, F, K), dtype=jnp.float32)
    wb = jax.random.normal(k2, (F, K), dtype=jnp.float32) * 0.1
    bb = jax.random.normal(k3, (F,), dtype=jnp.float32) * 0.1
    outb = jax.block_until_ready(locally_connected_1d(xb, wb, bb, force_pallas=True))
    refb = (jnp.sum(xb * wb[None], axis=2) + bb[None, :])[:, :, None]
    assert outb.shape == (B, F, 1), outb.shape
    err_b = float(jnp.max(jnp.abs(outb - refb)))
    assert jnp.allclose(outb, refb, atol=1e-4, rtol=1e-4), err_b

    # 3) Pallas path, ragged filter tile, no bias, deeppink-like K=2.
    B2, F2, K2 = 64, 100, 2
    xc = jax.random.normal(k4, (B2, F2, K2), dtype=jnp.float32)
    wc = jax.random.normal(k5, (F2, K2), dtype=jnp.float32) * 0.1
    outc = jax.block_until_ready(locally_connected_1d(xc, wc, None, force_pallas=True))
    refc = jnp.sum(xc * wc[None], axis=2)[:, :, None]
    assert outc.shape == (B2, F2, 1), outc.shape
    err_c = float(jnp.max(jnp.abs(outc - refc)))
    assert jnp.allclose(outc, refc, atol=1e-4, rtol=1e-4), err_c

    print("KERNEL_OK")
</pallas_src>

<mosaic_0001>
module attributes {stable_mosaic.version = 11 : i64} {
  func.func @_lc1d_kernel(%arg0: i32, %arg1: i32, %arg2: memref<96x1024xf32, #tpu.memory_space<vmem>>, %arg3: memref<1x1024x128xf32, #tpu.memory_space<vmem>>, %arg4: memref<1x128xf32, #tpu.memory_space<vmem>>, %arg5: memref<96x128xf32, #tpu.memory_space<vmem>>) attributes {dimension_semantics = [#tpu.dimension_semantics<parallel>, #tpu.dimension_semantics<parallel>], iteration_bounds = array<i64: 3, 2>, scalar_prefetch = 0 : i64, scratch_operands = 0 : i64, tpu.core_type = #tpu.core_type<tc>, window_params = [{transform_indices = @transform_0, window_bounds = array<i64: 96, 1024>}, {transform_indices = @transform_1, window_bounds = array<i64: 1, 1024, 128>}, {transform_indices = @transform_2, window_bounds = array<i64: 1, 128>}, {transform_indices = @transform_3, window_bounds = array<i64: 96, 128>}]} {
    %c0 = arith.constant 0 : index
    %c0_0 = arith.constant 0 : index
    %0 = vector.load %arg2[%c0, %c0_0] : memref<96x1024xf32, #tpu.memory_space<vmem>>, vector<96x1024xf32>
    %c0_1 = arith.constant 0 : index
    %c0_2 = arith.constant 0 : index
    %c0_3 = arith.constant 0 : index
    %1 = vector.load %arg3[%c0_1, %c0_2, %c0_3] : memref<1x1024x128xf32, #tpu.memory_space<vmem>>, vector<1x1024x128xf32>
    %2 = vector.shape_cast %1 : vector<1x1024x128xf32> to vector<1024x128xf32>
    %cst = arith.constant dense<0.000000e+00> : vector<96x128xf32>
    %3 = tpu.matmul %0, %2, %cst {dimension_numbers = #tpu.dot_dimension_numbers<[1], [0], [0], [1], [0, 0, 1, 1], [], []>, precision = #tpu.contract_precision<fp32>} : vector<96x1024xf32>, vector<1024x128xf32>, vector<96x128xf32> -> vector<96x128xf32>
    %c0_4 = arith.constant 0 : index
    %c0_5 = arith.constant 0 : index
    %4 = vector.load %arg4[%c0_4, %c0_5] : memref<1x128xf32, #tpu.memory_space<vmem>>, vector<1x128xf32>
    %5 = vector.broadcast %4 : vector<1x128xf32> to vector<96x128xf32>
    %6 = arith.addf %3, %5 : vector<96x128xf32>
    %c0_6 = arith.constant 0 : index
    %c0_7 = arith.constant 0 : index
    %7 = vector.load %arg5[%c0_6, %c0_7] : memref<96x128xf32, #tpu.memory_space<vmem>>, vector<96x128xf32>
    tpu.vector_store %arg5[%c0_6, %c0_7], %6 {strides = array<i32>} : memref<96x128xf32, #tpu.memory_space<vmem>>, vector<96x128xf32>,
    return
  }
  func.func @transform_0(%arg0: i32, %arg1: i32) -> (i32, i32) {
    %c0_i32 = arith.constant 0 : i32
    return %arg1, %arg0 : i32, i32
  }
  func.func @transform_1(%arg0: i32, %arg1: i32) -> (i32, i32, i32) {
    %c0_i32 = arith.constant 0 : i32
    %c0_i32_0 = arith.constant 0 : i32
    %c0_i32_1 = arith.constant 0 : i32
    return %arg0, %c0_i32, %c0_i32_0 : i32, i32, i32
  }
  func.func @transform_2(%arg0: i32, %arg1: i32) -> (i32, i32) {
    %c0_i32 = arith.constant 0 : i32
    %c0_i32_0 = arith.constant 0 : i32
    return %c0_i32, %arg0 : i32, i32
  }
  func.func @transform_3(%arg0: i32, %arg1: i32) -> (i32, i32) {
    %c0_i32 = arith.constant 0 : i32
    return %arg1, %arg0 : i32, i32
  }
}

</mosaic_0001>

<llo_original>
// kernel: tpu_custom_call.1
$region0: #{tpu_custom_call.1}
  #allocation0 [shape = 'u32[]', space=smem, size = 0x4, offset = 0x4, fixed_abs, tag = 'smem constant byte address 0x4 - core index']
  #allocation1 [shape = 'u32[144,128]{1,0:T(1,128)}', space=vmem, size = 0x12000, scoped, tag = 'internal scratch']
  %s0 = inlined_call_operand.hbm [shape: f32[192,3072], index: 0, kind: input, shape index: {}]
  %s1 = inlined_call_operand.hbm [shape: f32[3,1024,128], index: 1, kind: input, shape index: {}]
  %s2 = inlined_call_operand.hbm [shape: f32[1,384], index: 2, kind: input, shape index: {}]
  %s3 = inlined_call_operand.hbm [shape: f32[192,384], index: 3, kind: output, shape index: {}]
  %s4 = sld [smem:[#allocation0]]
  $region57: #{tpu_custom_call.1} parent=0
    _
  %s6 = ssub.s32 1, %s4
  %s7 = scalar_select 0, %s6, %s4
  $region1: #{tpu_custom_call.1} parent=0
    #allocation2 [shape = 'u8[786432]{0}', space=vmem, size = 0xc0000, scoped, tag = 'input window, operand 0']
    #allocation3 [shape = 's32[2]{0}', space=sflag, size = 0x8, scoped, tag = 'scoped memory for tpu_custom_call.1']
    #allocation4 [shape = 's32[2]{0}', space=sflag, size = 0x8, scoped, tag = 'scoped memory for tpu_custom_call.1']
    #allocation5 [shape = 'u8[1048576]{0}', space=vmem, size = 0x100000, scoped, tag = 'input window, operand 1']
    #allocation6 [shape = 's32[2]{0}', space=sflag, size = 0x8, scoped, tag = 'scoped memory for tpu_custom_call.1']
    #allocation7 [shape = 'u8[1024]{0}', space=vmem, size = 0x400, scoped, tag = 'input window, operand 2']
    #allocation8 [shape = 'u8[98304]{0}', space=vmem, size = 0x18000, scoped, tag = 'output window, operand 0']
    %8 = vsyncpa [#allocation3], 0
    %s9 = scalar_lea.sflag [#allocation3], 1
    %10 = vsyncpa %s9, 0
    %11 = vsyncpa [#allocation6], 0
    %s12 = scalar_lea.sflag [#allocation6], 1
    %13 = vsyncpa %s12, 0
    %14 = vsyncpa [#allocation4], 0
    %s15 = scalar_lea.sflag [#allocation4], 1
    %16 = vsyncpa %s15, 0
    loop: start=0, step=1, limit=8
    $region2: #{tpu_custom_call.1} parent=1 // loop_pre_header
      _
    $region3: #{tpu_custom_call.1} parent=1 // loop_header
      %s18 = sphi 0, %s22
      %p19 = scmp.ge.s32.totalorder %s18, 8
      %s25 = sphi 0, %s37
      %s26 = sphi 0, %s33
      %s27 = sphi 0, %s25
      %s28 = sphi 0, %s26
      %s29 = sphi 0, %s27
      %s30 = sphi 0, %s28
      %s42 = sphi 0, %s44
      %s45 = sphi 0, %s42
      %s46 = sphi 0, %s45
      %s62 = sphi 0, %s46
      %s68 = sphi 0, %s70
      %s71 = sphi 0, %s68
      %s72 = sphi 0, %s71
      %s88 = sphi 0, %s72
      %s94 = sphi 0, %s96
      %s97 = sphi 0, %s94
      %s98 = sphi 0, %s97
      %s114 = sphi 0, %s98
      %s122 = sphi 0, %s124
      %s125 = sphi 0, %s122
      %s126 = sphi 0, %s125
      %s142 = sphi 0, %s126
    $region4: #{tpu_custom_call.1} parent=1 // loop_header_branch
      %21 = sbr.rel (%p19) target = $region8
    $region5: #{tpu_custom_call.1} parent=1 // loop_body
      %s23 = ssub.s32 %s18, 1
      %s24 = ssub.s32 %s18, 2
      %s31 = sadd.s32 1, %s26
      %p32 = scmp.ge.s32.totalorder %s31, 2
      %s33 = scalar_select %p32, 0, %s31
      %s34 = sadd.s32 1, %s25
      %s35 = scalar_select %p32, %s34, %s25
      %p36 = scmp.ge.s32.totalorder %s35, 3
      %s37 = scalar_select %p36, 0, %s35
      %s38 = ssub.s32 %s26, %s33
      %s39 = ssub.s32 %s25, %s37
      %s40 = sor.u32 %s38, %s39
      %p41 = scmp.eq.s32.totalorder %s40, 0
      %s43 = sadd.s32 %s42, 1
      %s44 = scalar_select %p41, %s42, %s43
      %p47 = pneg %p41
      %p48 = scmp.eq.s32.totalorder %s18, 5
      %p49 = por %p47, %p48
      %p50 = scmp.ne.s32.totalorder %s42, %s45
      %p51 = scmp.eq.s32.totalorder %s18, 0
      %p52 = por %p50, %p51
      %p53 = scmp.ne.s32.totalorder %s42, %s45
      %p54 = scmp.eq.s32.totalorder %s23, 5
      %p55 = por %p53, %p54
      %p56 = scmp.ne.s32.totalorder %s45, %s46
      %p57 = scmp.eq.s32.totalorder %s23, 0
      %p58 = por %p56, %p57
      %p59 = scmp.ne.s32.totalorder %s45, %s46
      %p60 = scmp.eq.s32.totalorder %s24, 5
      %p61 = por %p59, %p60
      %p63 = scmp.ne.s32.totalorder %s46, %s62
      %p64 = scmp.eq.s32.totalorder %s24, 0
      %p65 = por %p63, %p64
      %s66 = ssub.s32 %s25, %s37
      %p67 = scmp.eq.s32.totalorder %s66, 0
      %s69 = sadd.s32 %s68, 1
      %s70 = scalar_select %p67, %s68, %s69
      %p73 = pneg %p67
      %p74 = scmp.eq.s32.totalorder %s18, 5
      %p75 = por %p73, %p74
      %p76 = scmp.ne.s32.totalorder %s68, %s71
      %p77 = scmp.eq.s32.totalorder %s18, 0
      %p78 = por %p76, %p77
      %p79 = scmp.ne.s32.totalorder %s68, %s71
      %p80 = scmp.eq.s32.totalorder %s23, 5
      %p81 = por %p79, %p80
      %p82 = scmp.ne.s32.totalorder %s71, %s72
      %p83 = scmp.eq.s32.totalorder %s23, 0
      %p84 = por %p82, %p83
      %p85 = scmp.ne.s32.totalorder %s71, %s72
      %p86 = scmp.eq.s32.totalorder %s24, 5
      %p87 = por %p85, %p86
      %p89 = scmp.ne.s32.totalorder %s72, %s88
      %p90 = scmp.eq.s32.totalorder %s24, 0
      %p91 = por %p89, %p90
      %s92 = ssub.s32 %s25, %s37
      %p93 = scmp.eq.s32.totalorder %s92, 0
      %s95 = sadd.s32 %s94, 1
      %s96 = scalar_select %p93, %s94, %s95
      %p99 = pneg %p93
      %p100 = scmp.eq.s32.totalorder %s18, 5
      %p101 = por %p99, %p100
      %p102 = scmp.ne.s32.totalorder %s94, %s97
      %p103 = scmp.eq.s32.totalorder %s18, 0
      %p104 = por %p102, %p103
      %p105 = scmp.ne.s32.totalorder %s94, %s97
      %p106 = scmp.eq.s32.totalorder %s23, 5
      %p107 = por %p105, %p106
      %p108 = scmp.ne.s32.totalorder %s97, %s98
      %p109 = scmp.eq.s32.totalorder %s23, 0
      %p110 = por %p108, %p109
      %p111 = scmp.ne.s32.totalorder %s97, %s98
      %p112 = scmp.eq.s32.totalorder %s24, 5
      %p113 = por %p111, %p112
      %p115 = scmp.ne.s32.totalorder %s98, %s114
      %p116 = scmp.eq.s32.totalorder %s24, 0
      %p117 = por %p115, %p116
      %s118 = ssub.s32 %s26, %s33
      %s119 = ssub.s32 %s25, %s37
      %s120 = sor.u32 %s118, %s119
      %p121 = scmp.eq.s32.totalorder %s120, 0
      %s123 = sadd.s32 %s122, 1
      %s124 = scalar_select %p121, %s122, %s123
      %p127 = pneg %p121
      %p128 = scmp.eq.s32.totalorder %s18, 5
      %p129 = por %p127, %p128
      %p130 = scmp.ne.s32.totalorder %s122, %s125
      %p131 = scmp.eq.s32.totalorder %s18, 0
      %p132 = por %p130, %p131
      %p133 = scmp.ne.s32.totalorder %s122, %s125
      %p134 = scmp.eq.s32.totalorder %s23, 5
      %p135 = por %p133, %p134
      %p136 = scmp.ne.s32.totalorder %s125, %s126
      %p137 = scmp.eq.s32.totalorder %s23, 0
      %p138 = por %p136, %p137
      %p139 = scmp.ne.s32.totalorder %s125, %s126
      %p140 = scmp.eq.s32.totalorder %s24, 5
      %p141 = por %p139, %p140
      %p143 = scmp.ne.s32.totalorder %s126, %s142
      %p144 = scmp.eq.s32.totalorder %s24, 0
      %p145 = por %p143, %p144
      %p146 = scmp.le.s32.totalorder 1, %s18
      %p147 = scmp.lt.s32.totalorder %s18, 7
      %p148 = pnand %p146, %p147
      %p149 = pneg %p148
      // Predicated region
      $region9: #{tpu_custom_call.1} parent=5 // pred_check
        _
      $region10: #{tpu_custom_call.1} parent=5 // pred_check_branch
        %151 = sbr.rel (%p148) target = $region12
      $region11: #{tpu_custom_call.1} parent=5 // pred_region
        %s152 = ssub.s32 %s18, 1
      $region12: #{tpu_custom_call.1} parent=5 // pred_fallthru
        _
      %p153 = scmp.lt.s32.totalorder %s18, 6
      // Predicated region
      $region13: #{tpu_custom_call.1} parent=5 // pred_check
        %p154 = pneg %p153
      $region14: #{tpu_custom_call.1} parent=5 // pred_check_branch
        %156 = sbr.rel (%p154) target = $region16
      $region15: #{tpu_custom_call.1} parent=5 // pred_region
        // Predicated region
        $region17: #{tpu_custom_call.1} parent=15 // pred_check
          %p157 = pneg %p52
        $region18: #{tpu_custom_call.1} parent=15 // pred_check_branch
          %159 = sbr.rel (%p157) target = $region20
        $region19: #{tpu_custom_call.1} parent=15 // pred_region
          %s160 = sand.u32 %s42, 1
          %s161 = scalar_lea.sflag [#allocation3], %s160
          %s162 = sand.u32 %s42, 1
          %s163 = smul.addr %s162, 768
          %s164 = scalar_lea.vmem [#allocation2], %s163
          %s165 = smul.u32 12, %s26
          %s166 = smul.u32 8, %s25
          %s168 = ssub.s32 12288, 12288
          %169 = vsyncadd %s161, %s168
          %s170 = smul.addr %s165, 24
          %s171 = sadd.s32 %s166, %s170
          %s172 = smul.addr %s171, 128
          %s173 = scalar_lea.hbm %s0, %s172
          %s174 = sshll.u32 %s164, 4
          %s175 = int_to_ptr.vmem [resolvable:$true] %s174
          %180 = dma.hbm_to_vmem [thread:$0]  %s173, 12288, %s175, %s161, 3072, 1024, 64
        $region20: #{tpu_custom_call.1} parent=15 // pred_fallthru
          _
        // Predicated region
        $region21: #{tpu_custom_call.1} parent=15 // pred_check
          %p181 = pneg %p78
        $region22: #{tpu_custom_call.1} parent=15 // pred_check_branch
          %183 = sbr.rel (%p181) target = $region24
        $region23: #{tpu_custom_call.1} parent=15 // pred_region
          %s184 = sand.u32 %s18, 1
          %s185 = scalar_lea.sflag [#allocation6], %s184
          %s186 = sand.u32 %s68, 1
          %s187 = smul.addr %s186, 1024
          %s188 = scalar_lea.vmem [#allocation5], %s187
          %s190 = ssub.s32 16384, 16384
          %191 = vsyncadd %s185, %s190
          %s192 = smul.addr %s25, 128
          %s193 = smul.addr %s192, 128
          %s194 = scalar_lea.hbm %s1, %s193
          %s195 = sshll.u32 %s188, 4
          %s196 = int_to_ptr.vmem [resolvable:$true] %s195
          %201 = dma.hbm_to_vmem [thread:$0]  %s194, 16384, %s196, %s185, 128, 128, 8
        $region24: #{tpu_custom_call.1} parent=15 // pred_fallthru
          _
        // Predicated region
        $region25: #{tpu_custom_call.1} parent=15 // pred_check
          %p202 = pneg %p104
        $region26: #{tpu_custom_call.1} parent=15 // pred_check_branch
          %204 = sbr.rel (%p202) target = $region28
        $region27: #{tpu_custom_call.1} parent=15 // pred_region
          %s205 = sand.u32 %s18, 1
          %s206 = scalar_lea.sflag [#allocation6], %s205
          %s207 = sand.u32 %s94, 1
          %s208 = scalar_lea.vmem [#allocation7], %s207
          %s210 = ssub.s32 16, 16
          %211 = vsyncadd %s206, %s210
          %s212 = smul.addr %s25, 16
          %s213 = scalar_lea.hbm %s2, %s212
          %s215 = sshll.u32 %s208, 4
          %s216 = int_to_ptr.vmem [resolvable:$true] %s215
          %218 = dma.hbm_to_vmem [thread:$0]  %s213, 16, %s216, %s206
        $region28: #{tpu_custom_call.1} parent=15 // pred_fallthru
          _
      $region16: #{tpu_custom_call.1} parent=5 // pred_fallthru
        _
      %p219 = scmp.le.s32.totalorder 1, %s18
      %p220 = scmp.lt.s32.totalorder %s18, 7
      %p221 = pnand %p219, %p220
      %p222 = pneg %p221
      // Predicated region
      $region29: #{tpu_custom_call.1} parent=5 // pred_check
        _
      $region30: #{tpu_custom_call.1} parent=5 // pred_check_branch
        %224 = sbr.rel (%p221) target = $region32
      $region31: #{tpu_custom_call.1} parent=5 // pred_region
        %s225 = ssub.s32 %s18, 1
        %s226 = sand.u32 %s45, 1
        %s227 = scalar_lea.sflag [#allocation3], %s226
        %s228 = sand.u32 %s45, 1
        %s229 = smul.addr %s228, 768
        %s230 = scalar_lea.vmem [#allocation2], %s229
        // Predicated region
        $region33: #{tpu_custom_call.1} parent=31 // pred_check
          %p231 = pneg %p58
        $region34: #{tpu_custom_call.1} parent=31 // pred_check_branch
          %233 = sbr.rel (%p231) target = $region36
        $region35: #{tpu_custom_call.1} parent=31 // pred_region
          %234 = dma.done %s227, 12288
        $region36: #{tpu_custom_call.1} parent=31 // pred_fallthru
          _
        %s235 = sand.u32 %s23, 1
        %s236 = scalar_lea.sflag [#allocation6], %s235
        %s237 = sand.u32 %s71, 1
        %s238 = smul.addr %s237, 1024
        %s239 = scalar_lea.vmem [#allocation5], %s238
        // Predicated region
        $region37: #{tpu_custom_call.1} parent=31 // pred_check
          %p240 = pneg %p84
        $region38: #{tpu_custom_call.1} parent=31 // pred_check_branch
          %242 = sbr.rel (%p240) target = $region40
        $region39: #{tpu_custom_call.1} parent=31 // pred_region
          %243 = dma.done %s236, 16384
        $region40: #{tpu_custom_call.1} parent=31 // pred_fallthru
          _
        %s244 = sand.u32 %s23, 1
        %s245 = scalar_lea.sflag [#allocation6], %s244
        %s246 = sand.u32 %s97, 1
        %s247 = scalar_lea.vmem [#allocation7], %s246
        // Predicated region
        $region41: #{tpu_custom_call.1} parent=31 // pred_check
          %p248 = pneg %p110
        $region42: #{tpu_custom_call.1} parent=31 // pred_check_branch
          %250 = sbr.rel (%p248) target = $region44
        $region43: #{tpu_custom_call.1} parent=31 // pred_region
          %251 = dma.done %s245, 16
        $region44: #{tpu_custom_call.1} parent=31 // pred_fallthru
          _
        %s252 = sand.u32 %s45, 1
        %s253 = scalar_lea.sflag [#allocation3], %s252
        %s254 = sand.u32 %s45, 1
        %s255 = smul.addr %s254, 768
        %s256 = scalar_lea.vmem [#allocation2], %s255
        %p257 = pneg %p58
        %p258 = pneg %p55
        %s259 = sand.u32 %s23, 1
        %s260 = scalar_lea.sflag [#allocation6], %s259
        %s261 = sand.u32 %s71, 1
        %s262 = smul.addr %s261, 1024
        %s263 = scalar_lea.vmem [#allocation5], %s262
        %p264 = pneg %p84
        %p265 = pneg %p81
        %s266 = sand.u32 %s23, 1
        %s267 = scalar_lea.sflag [#allocation6], %s266
        %s268 = sand.u32 %s97, 1
        %s269 = scalar_lea.vmem [#allocation7], %s268
        %p270 = pneg %p110
        %p271 = pneg %p107
        %p272 = pneg %p138
        %p273 = pneg %p135
        %s274 = sand.u32 %s125, 1
        %s275 = scalar_lea.sflag [#allocation4], %s274
        %s276 = sand.u32 %s125, 1
        %s277 = smul.addr %s276, 96
        %s278 = scalar_lea.vmem [#allocation8], %s277
        %s279 = smul.u32 12, %s28
        %s280 = smul.u32 8, %s27
        %s281 = smul.u32 12, %s28
        %v282 = vld [vmem:[%s230] sm:$0xff]
        %v283 = vld [vmem:[%s230 + $0x8] sm:$0xff]
        %v284 = vld [vmem:[%s230 + $0x10] sm:$0xff]
        %v285 = vld [vmem:[%s230 + $0x18] sm:$0xff]
        %v286 = vld [vmem:[%s230 + $0x20] sm:$0xff]
        %v287 = vld [vmem:[%s230 + $0x28] sm:$0xff]
        %v288 = vld [vmem:[%s230 + $0x30] sm:$0xff]
        %v289 = vld [vmem:[%s230 + $0x38] sm:$0xff]
        %v290 = vld [vmem:[%s230 + $0x40] sm:$0xff]
        %v291 = vld [vmem:[%s230 + $0x48] sm:$0xff]
        %v292 = vld [vmem:[%s230 + $0x50] sm:$0xff]
        %v293 = vld [vmem:[%s230 + $0x58] sm:$0xff]
        %v294 = vld [vmem:[%s230 + $0x60] sm:$0xff]
        %v295 = vld [vmem:[%s230 + $0x68] sm:$0xff]
        %v296 = vld [vmem:[%s230 + $0x70] sm:$0xff]
        %v297 = vld [vmem:[%s230 + $0x78] sm:$0xff]
        %v298 = vld [vmem:[%s230 + $0x80] sm:$0xff]
        %v299 = vld [vmem:[%s230 + $0x88] sm:$0xff]
        %v300 = vld [vmem:[%s230 + $0x90] sm:$0xff]
        %v301 = vld [vmem:[%s230 + $0x98] sm:$0xff]
        %v302 = vld [vmem:[%s230 + $0xa0] sm:$0xff]
        %v303 = vld [vmem:[%s230 + $0xa8] sm:$0xff]
        %v304 = vld [vmem:[%s230 + $0xb0] sm:$0xff]
        %v305 = vld [vmem:[%s230 + $0xb8] sm:$0xff]
        %v306 = vld [vmem:[%s230 + $0xc0] sm:$0xff]
        %v307 = vld [vmem:[%s230 + $0xc8] sm:$0xff]
        %v308 = vld [vmem:[%s230 + $0xd0] sm:$0xff]
        %v309 = vld [vmem:[%s230 + $0xd8] sm:$0xff]
        %v310 = vld [vmem:[%s230 + $0xe0] sm:$0xff]
        %v311 = vld [vmem:[%s230 + $0xe8] sm:$0xff]
        %v312 = vld [vmem:[%s230 + $0xf0] sm:$0xff]
        %v313 = vld [vmem:[%s230 + $0xf8] sm:$0xff]
        %v314 = vld [vmem:[%s230 + $0x100] sm:$0xff]
        %v315 = vld [vmem:[%s230 + $0x108] sm:$0xff]
        %v316 = vld [vmem:[%s230 + $0x110] sm:$0xff]
        %v317 = vld [vmem:[%s230 + $0x118] sm:$0xff]
        %v318 = vld [vmem:[%s230 + $0x120] sm:$0xff]
        %v319 = vld [vmem:[%s230 + $0x128] sm:$0xff]
        %v320 = vld [vmem:[%s230 + $0x130] sm:$0xff]
        %v321 = vld [vmem:[%s230 + $0x138] sm:$0xff]
        %v322 = vld [vmem:[%s230 + $0x140] sm:$0xff]
        %v323 = vld [vmem:[%s230 + $0x148] sm:$0xff]
        %v324 = vld [vmem:[%s230 + $0x150] sm:$0xff]
        %v325 = vld [vmem:[%s230 + $0x158] sm:$0xff]
        %v326 = vld [vmem:[%s230 + $0x160] sm:$0xff]
        %v327 = vld [vmem:[%s230 + $0x168] sm:$0xff]
        %v328 = vld [vmem:[%s230 + $0x170] sm:$0xff]
        %v329 = vld [vmem:[%s230 + $0x178] sm:$0xff]
        %v330 = vld [vmem:[%s230 + $0x180] sm:$0xff]
        %v331 = vld [vmem:[%s230 + $0x188] sm:$0xff]
        %v332 = vld [vmem:[%s230 + $0x190] sm:$0xff]
        %v333 = vld [vmem:[%s230 + $0x198] sm:$0xff]
        %v334 = vld [vmem:[%s230 + $0x1a0] sm:$0xff]
        %v335 = vld [vmem:[%s230 + $0x1a8] sm:$0xff]
        %v336 = vld [vmem:[%s230 + $0x1b0] sm:$0xff]
        %v337 = vld [vmem:[%s230 + $0x1b8] sm:$0xff]
        %v338 = vld [vmem:[%s230 + $0x1c0] sm:$0xff]
        %v339 = vld [vmem:[%s230 + $0x1c8] sm:$0xff]
        %v340 = vld [vmem:[%s230 + $0x1d0] sm:$0xff]
        %v341 = vld [vmem:[%s230 + $0x1d8] sm:$0xff]
        %v342 = vld [vmem:[%s230 + $0x1e0] sm:$0xff]
        %v343 = vld [vmem:[%s230 + $0x1e8] sm:$0xff]
        %v344 = vld [vmem:[%s230 + $0x1f0] sm:$0xff]
        %v345 = vld [vmem:[%s230 + $0x1f8] sm:$0xff]
        %v346 = vld [vmem:[%s230 + $0x200] sm:$0xff]
        %v347 = vld [vmem:[%s230 + $0x208] sm:$0xff]
        %v348 = vld [vmem:[%s230 + $0x210] sm:$0xff]
        %v349 = vld [vmem:[%s230 + $0x218] sm:$0xff]
        %v350 = vld [vmem:[%s230 + $0x220] sm:$0xff]
        %v351 = vld [vmem:[%s230 + $0x228] sm:$0xff]
        %v352 = vld [vmem:[%s230 + $0x230] sm:$0xff]
        %v353 = vld [vmem:[%s230 + $0x238] sm:$0xff]
        %v354 = vld [vmem:[%s230 + $0x240] sm:$0xff]
        %v355 = vld [vmem:[%s230 + $0x248] sm:$0xff]
        %v356 = vld [vmem:[%s230 + $0x250] sm:$0xff]
        %v357 = vld [vmem:[%s230 + $0x258] sm:$0xff]
        %v358 = vld [vmem:[%s230 + $0x260] sm:$0xff]
        %v359 = vld [vmem:[%s230 + $0x268] sm:$0xff]
        %v360 = vld [vmem:[%s230 + $0x270] sm:$0xff]
        %v361 = vld [vmem:[%s230 + $0x278] sm:$0xff]
        %v362 = vld [vmem:[%s230 + $0x280] sm:$0xff]
        %v363 = vld [vmem:[%s230 + $0x288] sm:$0xff]
        %v364 = vld [vmem:[%s230 + $0x290] sm:$0xff]
        %v365 = vld [vmem:[%s230 + $0x298] sm:$0xff]
        %v366 = vld [vmem:[%s230 + $0x2a0] sm:$0xff]
        %v367 = vld [vmem:[%s230 + $0x2a8] sm:$0xff]
        %v368 = vld [vmem:[%s230 + $0x2b0] sm:$0xff]
        %v369 = vld [vmem:[%s230 + $0x2b8] sm:$0xff]
        %v370 = vld [vmem:[%s230 + $0x2c0] sm:$0xff]
        %v371 = vld [vmem:[%s230 + $0x2c8] sm:$0xff]
        %v372 = vld [vmem:[%s230 + $0x2d0] sm:$0xff]
        %v373 = vld [vmem:[%s230 + $0x2d8] sm:$0xff]
        %v374 = vld [vmem:[%s230 + $0x2e0] sm:$0xff]
        %v375 = vld [vmem:[%s230 + $0x2e8] sm:$0xff]
        %v376 = vld [vmem:[%s230 + $0x2f0] sm:$0xff]
        %v377 = vld [vmem:[%s230 + $0x2f8] sm:$0xff]
        %v378 = vld [vmem:[%s239] sm:$0xff]
        %v379 = vld [vmem:[%s239 + $0x8] sm:$0xff]
        %v380 = vld [vmem:[%s239 + $0x10] sm:$0xff]
        %v381 = vld [vmem:[%s239 + $0x18] sm:$0xff]
        %v382 = vld [vmem:[%s239 + $0x20] sm:$0xff]
        %v383 = vld [vmem:[%s239 + $0x28] sm:$0xff]
        %v384 = vld [vmem:[%s239 + $0x30] sm:$0xff]
        %v385 = vld [vmem:[%s239 + $0x38] sm:$0xff]
        %v386 = vld [vmem:[%s239 + $0x40] sm:$0xff]
        %v387 = vld [vmem:[%s239 + $0x48] sm:$0xff]
        %v388 = vld [vmem:[%s239 + $0x50] sm:$0xff]
        %v389 = vld [vmem:[%s239 + $0x58] sm:$0xff]
        %v390 = vld [vmem:[%s239 + $0x60] sm:$0xff]
        %v391 = vld [vmem:[%s239 + $0x68] sm:$0xff]
        %v392 = vld [vmem:[%s239 + $0x70] sm:$0xff]
        %v393 = vld [vmem:[%s239 + $0x78] sm:$0xff]
        %v394 = vld [vmem:[%s239 + $0x80] sm:$0xff]
        %v395 = vld [vmem:[%s239 + $0x88] sm:$0xff]
        %v396 = vld [vmem:[%s239 + $0x90] sm:$0xff]
        %v397 = vld [vmem:[%s239 + $0x98] sm:$0xff]
        %v398 = vld [vmem:[%s239 + $0xa0] sm:$0xff]
        %v399 = vld [vmem:[%s239 + $0xa8] sm:$0xff]
        %v400 = vld [vmem:[%s239 + $0xb0] sm:$0xff]
        %v401 = vld [vmem:[%s239 + $0xb8] sm:$0xff]
        %v402 = vld [vmem:[%s239 + $0xc0] sm:$0xff]
        %v403 = vld [vmem:[%s239 + $0xc8] sm:$0xff]
        %v404 = vld [vmem:[%s239 + $0xd0] sm:$0xff]
        %v405 = vld [vmem:[%s239 + $0xd8] sm:$0xff]
        %v406 = vld [vmem:[%s239 + $0xe0] sm:$0xff]
        %v407 = vld [vmem:[%s239 + $0xe8] sm:$0xff]
        %v408 = vld [vmem:[%s239 + $0xf0] sm:$0xff]
        %v409 = vld [vmem:[%s239 + $0xf8] sm:$0xff]
        %v410 = vld [vmem:[%s239 + $0x100] sm:$0xff]
        %v411 = vld [vmem:[%s239 + $0x108] sm:$0xff]
        %v412 = vld [vmem:[%s239 + $0x110] sm:$0xff]
        %v413 = vld [vmem:[%s239 + $0x118] sm:$0xff]
        %v414 = vld [vmem:[%s239 + $0x120] sm:$0xff]
        %v415 = vld [vmem:[%s239 + $0x128] sm:$0xff]
        %v416 = vld [vmem:[%s239 + $0x130] sm:$0xff]
        %v417 = vld [vmem:[%s239 + $0x138] sm:$0xff]
        %v418 = vld [vmem:[%s239 + $0x140] sm:$0xff]
        %v419 = vld [vmem:[%s239 + $0x148] sm:$0xff]
        %v420 = vld [vmem:[%s239 + $0x150] sm:$0xff]
        %v421 = vld [vmem:[%s239 + $0x158] sm:$0xff]
        %v422 = vld [vmem:[%s239 + $0x160] sm:$0xff]
        %v423 = vld [vmem:[%s239 + $0x168] sm:$0xff]
        %v424 = vld [vmem:[%s239 + $0x170] sm:$0xff]
        %v425 = vld [vmem:[%s239 + $0x178] sm:$0xff]
        %v426 = vld [vmem:[%s239 + $0x180] sm:$0xff]
        %v427 = vld [vmem:[%s239 + $0x188] sm:$0xff]
        %v428 = vld [vmem:[%s239 + $0x190] sm:$0xff]
        %v429 = vld [vmem:[%s239 + $0x198] sm:$0xff]
        %v430 = vld [vmem:[%s239 + $0x1a0] sm:$0xff]
        %v431 = vld [vmem:[%s239 + $0x1a8] sm:$0xff]
        %v432 = vld [vmem:[%s239 + $0x1b0] sm:$0xff]
        %v433 = vld [vmem:[%s239 + $0x1b8] sm:$0xff]
        %v434 = vld [vmem:[%s239 + $0x1c0] sm:$0xff]
        %v435 = vld [vmem:[%s239 + $0x1c8] sm:$0xff]
        %v436 = vld [vmem:[%s239 + $0x1d0] sm:$0xff]
        %v437 = vld [vmem:[%s239 + $0x1d8] sm:$0xff]
        %v438 = vld [vmem:[%s239 + $0x1e0] sm:$0xff]
        %v439 = vld [vmem:[%s239 + $0x1e8] sm:$0xff]
        %v440 = vld [vmem:[%s239 + $0x1f0] sm:$0xff]
        %v441 = vld [vmem:[%s239 + $0x1f8] sm:$0xff]
        %v442 = vld [vmem:[%s239 + $0x200] sm:$0xff]
        %v443 = vld [vmem:[%s239 + $0x208] sm:$0xff]
        %v444 = vld [vmem:[%s239 + $0x210] sm:$0xff]
        %v445 = vld [vmem:[%s239 + $0x218] sm:$0xff]
        %v446 = vld [vmem:[%s239 + $0x220] sm:$0xff]
        %v447 = vld [vmem:[%s239 + $0x228] sm:$0xff]
        %v448 = vld [vmem:[%s239 + $0x230] sm:$0xff]
        %v449 = vld [vmem:[%s239 + $0x238] sm:$0xff]
        %v450 = vld [vmem:[%s239 + $0x240] sm:$0xff]
        %v451 = vld [vmem:[%s239 + $0x248] sm:$0xff]
        %v452 = vld [vmem:[%s239 + $0x250] sm:$0xff]
        %v453 = vld [vmem:[%s239 + $0x258] sm:$0xff]
        %v454 = vld [vmem:[%s239 + $0x260] sm:$0xff]
        %v455 = vld [vmem:[%s239 + $0x268] sm:$0xff]
        %v456 = vld [vmem:[%s239 + $0x270] sm:$0xff]
        %v457 = vld [vmem:[%s239 + $0x278] sm:$0xff]
        %v458 = vld [vmem:[%s239 + $0x280] sm:$0xff]
        %v459 = vld [vmem:[%s239 + $0x288] sm:$0xff]
        %v460 = vld [vmem:[%s239 + $0x290] sm:$0xff]
        %v461 = vld [vmem:[%s239 + $0x298] sm:$0xff]
        %v462 = vld [vmem:[%s239 + $0x2a0] sm:$0xff]
        %v463 = vld [vmem:[%s239 + $0x2a8] sm:$0xff]
        %v464 = vld [vmem:[%s239 + $0x2b0] sm:$0xff]
        %v465 = vld [vmem:[%s239 + $0x2b8] sm:$0xff]
        %v466 = vld [vmem:[%s239 + $0x2c0] sm:$0xff]
        %v467 = vld [vmem:[%s239 + $0x2c8] sm:$0xff]
        %v468 = vld [vmem:[%s239 + $0x2d0] sm:$0xff]
        %v469 = vld [vmem:[%s239 + $0x2d8] sm:$0xff]
        %v470 = vld [vmem:[%s239 + $0x2e0] sm:$0xff]
        %v471 = vld [vmem:[%s239 + $0x2e8] sm:$0xff]
        %v472 = vld [vmem:[%s239 + $0x2f0] sm:$0xff]
        %v473 = vld [vmem:[%s239 + $0x2f8] sm:$0xff]
        %v474 = vld [vmem:[%s239 + $0x300] sm:$0xff]
        %v475 = vld [vmem:[%s239 + $0x308] sm:$0xff]
        %v476 = vld [vmem:[%s239 + $0x310] sm:$0xff]
        %v477 = vld [vmem:[%s239 + $0x318] sm:$0xff]
        %v478 = vld [vmem:[%s239 + $0x320] sm:$0xff]
        %v479 = vld [vmem:[%s239 + $0x328] sm:$0xff]
        %v480 = vld [vmem:[%s239 + $0x330] sm:$0xff]
        %v481 = vld [vmem:[%s239 + $0x338] sm:$0xff]
        %v482 = vld [vmem:[%s239 + $0x340] sm:$0xff]
        %v483 = vld [vmem:[%s239 + $0x348] sm:$0xff]
        %v484 = vld [vmem:[%s239 + $0x350] sm:$0xff]
        %v485 = vld [vmem:[%s239 + $0x358] sm:$0xff]
        %v486 = vld [vmem:[%s239 + $0x360] sm:$0xff]
        %v487 = vld [vmem:[%s239 + $0x368] sm:$0xff]
        %v488 = vld [vmem:[%s239 + $0x370] sm:$0xff]
        %v489 = vld [vmem:[%s239 + $0x378] sm:$0xff]
        %v490 = vld [vmem:[%s239 + $0x380] sm:$0xff]
        %v491 = vld [vmem:[%s239 + $0x388] sm:$0xff]
        %v492 = vld [vmem:[%s239 + $0x390] sm:$0xff]
        %v493 = vld [vmem:[%s239 + $0x398] sm:$0xff]
        %v494 = vld [vmem:[%s239 + $0x3a0] sm:$0xff]
        %v495 = vld [vmem:[%s239 + $0x3a8] sm:$0xff]
        %v496 = vld [vmem:[%s239 + $0x3b0] sm:$0xff]
        %v497 = vld [vmem:[%s239 + $0x3b8] sm:$0xff]
        %v498 = vld [vmem:[%s239 + $0x3c0] sm:$0xff]
        %v499 = vld [vmem:[%s239 + $0x3c8] sm:$0xff]
        %v500 = vld [vmem:[%s239 + $0x3d0] sm:$0xff]
        %v501 = vld [vmem:[%s239 + $0x3d8] sm:$0xff]
        %v502 = vld [vmem:[%s239 + $0x3e0] sm:$0xff]
        %v503 = vld [vmem:[%s239 + $0x3e8] sm:$0xff]
        %v504 = vld [vmem:[%s239 + $0x3f0] sm:$0xff]
        %v505 = vld [vmem:[%s239 + $0x3f8] sm:$0xff]
        %v506 = vld [vmem:[%s247] sm:$0x1]
        %v508 = vlaneseq
        %v509 = vshrl.u32 %v508, 7
        %v510 = vsub.s32 0, %v509
        %v511 = vrot.slane %v506, %v510
        %513 = vmatprep.subr.mxu0 0.0
        %v514 = vand.u32 %v393, 4294901760
        %515 = vmatpush1.msra.mxu0 %v514
        %516 = vmatprep.subr.mxu0 0.0
        %v517 = vand.u32 %v392, 4294901760
        %518 = vmatpush1.msra.mxu0 %v517
        %519 = vmatprep.subr.mxu0 0.0
        %v520 = vand.u32 %v391, 4294901760
        %521 = vmatpush1.msra.mxu0 %v520
        %522 = vmatprep.subr.mxu0 0.0
        %v523 = vand.u32 %v390, 4294901760
        %524 = vmatpush1.msra.mxu0 %v523
        %525 = vmatprep.subr.mxu0 0.0
        %v526 = vand.u32 %v389, 4294901760
        %527 = vmatpush1.msra.mxu0 %v526
        %528 = vmatprep.subr.mxu0 0.0
        %v529 = vand.u32 %v388, 4294901760
        %530 = vmatpush1.msra.mxu0 %v529
        %531 = vmatprep.subr.mxu0 0.0
        %v532 = vand.u32 %v387, 4294901760
        %533 = vmatpush1.msra.mxu0 %v532
        %534 = vmatprep.subr.mxu0 0.0
        %v535 = vand.u32 %v386, 4294901760
        %536 = vmatpush1.msra.mxu0 %v535
        %537 = vmatprep.subr.mxu0 0.0
        %v538 = vand.u32 %v385, 4294901760
        %539 = vmatpush1.msra.mxu0 %v538
        %540 = vmatprep.subr.mxu0 0.0
        %v541 = vand.u32 %v384, 4294901760
        %542 = vmatpush1.msra.mxu0 %v541
        %543 = vmatprep.subr.mxu0 0.0
        %v544 = vand.u32 %v383, 4294901760
        %545 = vmatpush1.msra.mxu0 %v544
        %546 = vmatprep.subr.mxu0 0.0
        %v547 = vand.u32 %v382, 4294901760
        %548 = vmatpush1.msra.mxu0 %v547
        %549 = vmatprep.subr.mxu0 0.0
        %v550 = vand.u32 %v381, 4294901760
        %551 = vmatpush1.msra.mxu0 %v550
        %552 = vmatprep.subr.mxu0 0.0
        %v553 = vand.u32 %v380, 4294901760
        %554 = vmatpush1.msra.mxu0 %v553
        %555 = vmatprep.subr.mxu0 0.0
        %v556 = vand.u32 %v379, 4294901760
        %557 = vmatpush1.msra.mxu0 %v556
        %558 = vmatprep.subr.mxu0 0.0
        %v559 = vand.u32 %v378, 4294901760
        %560 = vmatpush1.msra.mxu0 %v559
        %561 = vmatprep.subr.mxu0 0.0
        %v562 = vand.u32 %v409, 4294901760
        %563 = vmatpush2.msra.mxu0 %v562
        %564 = vmatprep.subr.mxu0 0.0
        %v565 = vand.u32 %v408, 4294901760
        %566 = vmatpush2.msra.mxu0 %v565
        %567 = vmatprep.subr.mxu0 0.0
        %v568 = vand.u32 %v407, 4294901760
        %569 = vmatpush2.msra.mxu0 %v568
        %570 = vmatprep.subr.mxu0 0.0
        %v571 = vand.u32 %v406, 4294901760
        %572 = vmatpush2.msra.mxu0 %v571
        %573 = vmatprep.subr.mxu0 0.0
        %v574 = vand.u32 %v405, 4294901760
        %575 = vmatpush2.msra.mxu0 %v574
        %576 = vmatprep.subr.mxu0 0.0
        %v577 = vand.u32 %v404, 4294901760
        %578 = vmatpush2.msra.mxu0 %v577
        %579 = vmatprep.subr.mxu0 0.0
        %v580 = vand.u32 %v403, 4294901760
        %581 = vmatpush2.msra.mxu0 %v580
        %582 = vmatprep.subr.mxu0 0.0
        %v583 = vand.u32 %v402, 4294901760
        %584 = vmatpush2.msra.mxu0 %v583
        %585 = vmatprep.subr.mxu0 0.0
        %v586 = vand.u32 %v401, 4294901760
        %587 = vmatpush2.msra.mxu0 %v586
        %588 = vmatprep.subr.mxu0 0.0
        %v589 = vand.u32 %v400, 4294901760
        %590 = vmatpush2.msra.mxu0 %v589
        %591 = vmatprep.subr.mxu0 0.0
        %v592 = vand.u32 %v399, 4294901760
        %593 = vmatpush2.msra.mxu0 %v592
        %594 = vmatprep.subr.mxu0 0.0
        %v595 = vand.u32 %v398, 4294901760
        %596 = vmatpush2.msra.mxu0 %v595
        %597 = vmatprep.subr.mxu0 0.0
        %v598 = vand.u32 %v397, 4294901760
        %599 = vmatpush2.msra.mxu0 %v598
        %600 = vmatprep.subr.mxu0 0.0
        %v601 = vand.u32 %v396, 4294901760
        %602 = vmatpush2.msra.mxu0 %v601
        %603 = vmatprep.subr.mxu0 0.0
        %v604 = vand.u32 %v395, 4294901760
        %605 = vmatpush2.msra.mxu0 %v604
        %606 = vmatprep.subr.mxu0 0.0
        %v607 = vand.u32 %v394, 4294901760
        %608 = vmatpush2.msra.mxu0 %v607
        %v609 = vand.u32 %v283, 4294901760
        %v610 = vsub.f32 %v283, %v609
        %v611 = vand.u32 %v610, 4294901760
        %v612 = vsub.f32 %v610, %v611
        %v613 = vand.u32 %v612, 4294901760
        %614 = vmatprep.mubr.f32.mxu0 %v613
        %v615 = vand.u32 %v282, 4294901760
        %v616 = vsub.f32 %v282, %v615
        %v617 = vand.u32 %v616, 4294901760
        %v618 = vsub.f32 %v616, %v617
        %v619 = vand.u32 %v618, 4294901760
        %620 = vmatmul.mubr.f32.gmra.mxu0 %v619
        %v621 = vpop.f32.mrf.mxu0
        %v622 = vadd.f32 %v511, %v621
        %v623 = vpop.f32.mrf.mxu0
        %v624 = vand.u32 %v291, 4294901760
        %v625 = vsub.f32 %v291, %v624
        %v626 = vand.u32 %v625, 4294901760
        %v627 = vsub.f32 %v625, %v626
        %v628 = vand.u32 %v627, 4294901760
        %629 = vmatprep.mubr.f32.mxu0 %v628
        %v630 = vand.u32 %v290, 4294901760
        %v631 = vsub.f32 %v290, %v630
        %v632 = vand.u32 %v631, 4294901760
        %v633 = vsub.f32 %v631, %v632
        %v634 = vand.u32 %v633, 4294901760
        %635 = vmatmul.mubr.f32.gmra.mxu0 %v634
        %v636 = vpop.f32.mrf.mxu0
        %v637 = vadd.f32 %v511, %v636
        %v638 = vpop.f32.mrf.mxu0
        %v639 = vand.u32 %v299, 4294901760
        %v640 = vsub.f32 %v299, %v639
        %v641 = vand.u32 %v640, 4294901760
        %v642 = vsub.f32 %v640, %v641
        %v643 = vand.u32 %v642, 4294901760
        %644 = vmatprep.mubr.f32.mxu0 %v643
        %v645 = vand.u32 %v298, 4294901760
        %v646 = vsub.f32 %v298, %v645
        %v647 = vand.u32 %v646, 4294901760
        %v648 = vsub.f32 %v646, %v647
        %v649 = vand.u32 %v648, 4294901760
        %650 = vmatmul.mubr.f32.gmra.mxu0 %v649
        %v651 = vpop.f32.mrf.mxu0
        %v652 = vadd.f32 %v511, %v651
        %v653 = vpop.f32.mrf.mxu0
        %v654 = vand.u32 %v307, 4294901760
        %v655 = vsub.f32 %v307, %v654
        %v656 = vand.u32 %v655, 4294901760
        %v657 = vsub.f32 %v655, %v656
        %v658 = vand.u32 %v657, 4294901760
        %659 = vmatprep.mubr.f32.mxu0 %v658
        %v660 = vand.u32 %v306, 4294901760
        %v661 = vsub.f32 %v306, %v660
        %v662 = vand.u32 %v661, 4294901760
        %v663 = vsub.f32 %v661, %v662
        %v664 = vand.u32 %v663, 4294901760
        %665 = vmatmul.mubr.f32.gmra.mxu0 %v664
        %v666 = vpop.f32.mrf.mxu0
        %v667 = vadd.f32 %v511, %v666
        %v668 = vpop.f32.mrf.mxu0
        %v669 = vand.u32 %v315, 4294901760
        %v670 = vsub.f32 %v315, %v669
        %v671 = vand.u32 %v670, 4294901760
        %v672 = vsub.f32 %v670, %v671
        %v673 = vand.u32 %v672, 4294901760
        %674 = vmatprep.mubr.f32.mxu0 %v673
        %v675 = vand.u32 %v314, 4294901760
        %v676 = vsub.f32 %v314, %v675
        %v677 = vand.u32 %v676, 4294901760
        %v678 = vsub.f32 %v676, %v677
        %v679 = vand.u32 %v678, 4294901760
        %680 = vmatmul.mubr.f32.gmra.mxu0 %v679
        %v681 = vpop.f32.mrf.mxu0
        %v682 = vadd.f32 %v511, %v681
        %v683 = vpop.f32.mrf.mxu0
        %v684 = vand.u32 %v323, 4294901760
        %v685 = vsub.f32 %v323, %v684
        %v686 = vand.u32 %v685, 4294901760
        %v687 = vsub.f32 %v685, %v686
        %v688 = vand.u32 %v687, 4294901760
        %689 = vmatprep.mubr.f32.mxu0 %v688
        %v690 = vand.u32 %v322, 4294901760
        %v691 = vsub.f32 %v322, %v690
        %v692 = vand.u32 %v691, 4294901760
        %v693 = vsub.f32 %v691, %v692
        %v694 = vand.u32 %v693, 4294901760
        %695 = vmatmul.mubr.f32.gmra.mxu0 %v694
        %v696 = vpop.f32.mrf.mxu0
        %v697 = vadd.f32 %v511, %v696
        %v698 = vpop.f32.mrf.mxu0
        %v699 = vand.u32 %v331, 4294901760
        %v700 = vsub.f32 %v331, %v699
        %v701 = vand.u32 %v700, 4294901760
        %v702 = vsub.f32 %v700, %v701
        %v703 = vand.u32 %v702, 4294901760
        %704 = vmatprep.mubr.f32.mxu0 %v703
        %v705 = vand.u32 %v330, 4294901760
        %v706 = vsub.f32 %v330, %v705
        %v707 = vand.u32 %v706, 4294901760
        %v708 = vsub.f32 %v706, %v707
        %v709 = vand.u32 %v708, 4294901760
        %710 = vmatmul.mubr.f32.gmra.mxu0 %v709
        %v711 = vpop.f32.mrf.mxu0
        %v712 = vadd.f32 %v511, %v711
        %v713 = vpop.f32.mrf.mxu0
        %v714 = vand.u32 %v339, 4294901760
        %v715 = vsub.f32 %v339, %v714
        %v716 = vand.u32 %v715, 4294901760
        %v717 = vsub.f32 %v715, %v716
        %v718 = vand.u32 %v717, 4294901760
        %719 = vmatprep.mubr.f32.mxu0 %v718
        %v720 = vand.u32 %v338, 4294901760
        %v721 = vsub.f32 %v338, %v720
        %v722 = vand.u32 %v721, 4294901760
        %v723 = vsub.f32 %v721, %v722
        %v724 = vand.u32 %v723, 4294901760
        %725 = vmatmul.mubr.f32.gmra.mxu0 %v724
        %v726 = vpop.f32.mrf.mxu0
        %v727 = vadd.f32 %v511, %v726
        %v728 = vpop.f32.mrf.mxu0
        %v729 = vand.u32 %v347, 4294901760
        %v730 = vsub.f32 %v347, %v729
        %v731 = vand.u32 %v730, 4294901760
        %v732 = vsub.f32 %v730, %v731
        %v733 = vand.u32 %v732, 4294901760
        %734 = vmatprep.mubr.f32.mxu0 %v733
        %v735 = vand.u32 %v346, 4294901760
        %v736 = vsub.f32 %v346, %v735
        %v737 = vand.u32 %v736, 4294901760
        %v738 = vsub.f32 %v736, %v737
        %v739 = vand.u32 %v738, 4294901760
        %740 = vmatmul.mubr.f32.gmra.mxu0 %v739
        %v741 = vpop.f32.mrf.mxu0
        %v742 = vadd.f32 %v511, %v741
        %v743 = vpop.f32.mrf.mxu0
        %v744 = vand.u32 %v355, 4294901760
        %v745 = vsub.f32 %v355, %v744
        %v746 = vand.u32 %v745, 4294901760
        %v747 = vsub.f32 %v745, %v746
        %v748 = vand.u32 %v747, 4294901760
        %749 = vmatprep.mubr.f32.mxu0 %v748
        %v750 = vand.u32 %v354, 4294901760
        %v751 = vsub.f32 %v354, %v750
        %v752 = vand.u32 %v751, 4294901760
        %v753 = vsub.f32 %v751, %v752
        %v754 = vand.u32 %v753, 4294901760
        %755 = vmatmul.mubr.f32.gmra.mxu0 %v754
        %v756 = vpop.f32.mrf.mxu0
        %v757 = vadd.f32 %v511, %v756
        %v758 = vpop.f32.mrf.mxu0
        %v759 = vand.u32 %v363, 4294901760
        %v760 = vsub.f32 %v363, %v759
        %v761 = vand.u32 %v760, 4294901760
        %v762 = vsub.f32 %v760, %v761
        %v763 = vand.u32 %v762, 4294901760
        %764 = vmatprep.mubr.f32.mxu0 %v763
        %v765 = vand.u32 %v362, 4294901760
        %v766 = vsub.f32 %v362, %v765
        %v767 = vand.u32 %v766, 4294901760
        %v768 = vsub.f32 %v766, %v767
        %v769 = vand.u32 %v768, 4294901760
        %770 = vmatmul.mubr.f32.gmra.mxu0 %v769
        %v771 = vpop.f32.mrf.mxu0
        %v772 = vadd.f32 %v511, %v771
        %v773 = vpop.f32.mrf.mxu0
        %v774 = vand.u32 %v371, 4294901760
        %v775 = vsub.f32 %v371, %v774
        %v776 = vand.u32 %v775, 4294901760
        %v777 = vsub.f32 %v775, %v776
        %v778 = vand.u32 %v777, 4294901760
        %779 = vmatprep.mubr.f32.mxu0 %v778
        %v780 = vand.u32 %v370, 4294901760
        %v781 = vsub.f32 %v370, %v780
        %v782 = vand.u32 %v781, 4294901760
        %v783 = vsub.f32 %v781, %v782
        %v784 = vand.u32 %v783, 4294901760
        %785 = vmatmul.mubr.f32.gmra.mxu0 %v784
        %v786 = vpop.f32.mrf.mxu0
        %v787 = vadd.f32 %v511, %v786
        %v788 = vpop.f32.mrf.mxu0
        %789 = vdwg.mxu0
        %790 = vmatprep.subr.mxu0 0.0
        %v791 = vand.u32 %v393, 4294901760
        %v792 = vsub.f32 %v393, %v791
        %v793 = vand.u32 %v792, 4294901760
        %v794 = vsub.f32 %v792, %v793
        %v795 = vand.u32 %v794, 4294901760
        %796 = vmatpush1.msra.mxu0 %v795
        %797 = vmatprep.subr.mxu0 0.0
        %v798 = vand.u32 %v392, 4294901760
        %v799 = vsub.f32 %v392, %v798
        %v800 = vand.u32 %v799, 4294901760
        %v801 = vsub.f32 %v799, %v800
        %v802 = vand.u32 %v801, 4294901760
        %803 = vmatpush1.msra.mxu0 %v802
        %804 = vmatprep.subr.mxu0 0.0
        %v805 = vand.u32 %v391, 4294901760
        %v806 = vsub.f32 %v391, %v805
        %v807 = vand.u32 %v806, 4294901760
        %v808 = vsub.f32 %v806, %v807
        %v809 = vand.u32 %v808, 4294901760
        %810 = vmatpush1.msra.mxu0 %v809
        %811 = vmatprep.subr.mxu0 0.0
        %v812 = vand.u32 %v390, 4294901760
        %v813 = vsub.f32 %v390, %v812
        %v814 = vand.u32 %v813, 4294901760
        %v815 = vsub.f32 %v813, %v814
        %v816 = vand.u32 %v815, 4294901760
        %817 = vmatpush1.msra.mxu0 %v816
        %818 = vmatprep.subr.mxu0 0.0
        %v819 = vand.u32 %v389, 4294901760
        %v820 = vsub.f32 %v389, %v819
        %v821 = vand.u32 %v820, 4294901760
        %v822 = vsub.f32 %v820, %v821
        %v823 = vand.u32 %v822, 4294901760
        %824 = vmatpush1.msra.mxu0 %v823
        %825 = vmatprep.subr.mxu0 0.0
        %v826 = vand.u32 %v388, 4294901760
        %v827 = vsub.f32 %v388, %v826
        %v828 = vand.u32 %v827, 4294901760
        %v829 = vsub.f32 %v827, %v828
        %v830 = vand.u32 %v829, 4294901760
        %831 = vmatpush1.msra.mxu0 %v830
        %832 = vmatprep.subr.mxu0 0.0
        %v833 = vand.u32 %v387, 4294901760
        %v834 = vsub.f32 %v387, %v833
        %v835 = vand.u32 %v834, 4294901760
        %v836 = vsub.f32 %v834, %v835
        %v837 = vand.u32 %v836, 4294901760
        %838 = vmatpush1.msra.mxu0 %v837
        %839 = vmatprep.subr.mxu0 0.0
        %v840 = vand.u32 %v386, 4294901760
        %v841 = vsub.f32 %v386, %v840
        %v842 = vand.u32 %v841, 4294901760
        %v843 = vsub.f32 %v841, %v842
        %v844 = vand.u32 %v843, 4294901760
        %845 = vmatpush1.msra.mxu0 %v844
        %846 = vmatprep.subr.mxu0 0.0
        %v847 = vand.u32 %v385, 4294901760
        %v848 = vsub.f32 %v385, %v847
        %v849 = vand.u32 %v848, 4294901760
        %v850 = vsub.f32 %v848, %v849
        %v851 = vand.u32 %v850, 4294901760
        %852 = vmatpush1.msra.mxu0 %v851
        %853 = vmatprep.subr.mxu0 0.0
        %v854 = vand.u32 %v384, 4294901760
        %v855 = vsub.f32 %v384, %v854
        %v856 = vand.u32 %v855, 4294901760
        %v857 = vsub.f32 %v855, %v856
        %v858 = vand.u32 %v857, 4294901760
        %859 = vmatpush1.msra.mxu0 %v858
        %860 = vmatprep.subr.mxu0 0.0
        %v861 = vand.u32 %v383, 4294901760
        %v862 = vsub.f32 %v383, %v861
        %v863 = vand.u32 %v862, 4294901760
        %v864 = vsub.f32 %v862, %v863
        %v865 = vand.u32 %v864, 4294901760
        %866 = vmatpush1.msra.mxu0 %v865
        %867 = vmatprep.subr.mxu0 0.0
        %v868 = vand.u32 %v382, 4294901760
        %v869 = vsub.f32 %v382, %v868
        %v870 = vand.u32 %v869, 4294901760
        %v871 = vsub.f32 %v869, %v870
        %v872 = vand.u32 %v871, 4294901760
        %873 = vmatpush1.msra.mxu0 %v872
        %874 = vmatprep.subr.mxu0 0.0
        %v875 = vand.u32 %v381, 4294901760
        %v876 = vsub.f32 %v381, %v875
        %v877 = vand.u32 %v876, 4294901760
        %v878 = vsub.f32 %v876, %v877
        %v879 = vand.u32 %v878, 4294901760
        %880 = vmatpush1.msra.mxu0 %v879
        %881 = vmatprep.subr.mxu0 0.0
        %v882 = vand.u32 %v380, 4294901760
        %v883 = vsub.f32 %v380, %v882
        %v884 = vand.u32 %v883, 4294901760
        %v885 = vsub.f32 %v883, %v884
        %v886 = vand.u32 %v885, 4294901760
        %887 = vmatpush1.msra.mxu0 %v886
        %888 = vmatprep.subr.mxu0 0.0
        %v889 = vand.u32 %v379, 4294901760
        %v890 = vsub.f32 %v379, %v889
        %v891 = vand.u32 %v890, 4294901760
        %v892 = vsub.f32 %v890, %v891
        %v893 = vand.u32 %v892, 4294901760
        %894 = vmatpush1.msra.mxu0 %v893
        %895 = vmatprep.subr.mxu0 0.0
        %v896 = vand.u32 %v378, 4294901760
        %v897 = vsub.f32 %v378, %v896
        %v898 = vand.u32 %v897, 4294901760
        %v899 = vsub.f32 %v897, %v898
        %v900 = vand.u32 %v899, 4294901760
        %901 = vmatpush1.msra.mxu0 %v900
        %902 = vmatprep.subr.mxu0 0.0
        %v903 = vand.u32 %v409, 4294901760
        %v904 = vsub.f32 %v409, %v903
        %v905 = vand.u32 %v904, 4294901760
        %v906 = vsub.f32 %v904, %v905
        %v907 = vand.u32 %v906, 4294901760
        %908 = vmatpush2.msra.mxu0 %v907
        %909 = vmatprep.subr.mxu0 0.0
        %v910 = vand.u32 %v408, 4294901760
        %v911 = vsub.f32 %v408, %v910
        %v912 = vand.u32 %v911, 4294901760
        %v913 = vsub.f32 %v911, %v912
        %v914 = vand.u32 %v913, 4294901760
        %915 = vmatpush2.msra.mxu0 %v914
        %916 = vmatprep.subr.mxu0 0.0
        %v917 = vand.u32 %v407, 4294901760
        %v918 = vsub.f32 %v407, %v917
        %v919 = vand.u32 %v918, 4294901760
        %v920 = vsub.f32 %v918, %v919
        %v921 = vand.u32 %v920, 4294901760
        %922 = vmatpush2.msra.mxu0 %v921
        %923 = vmatprep.subr.mxu0 0.0
        %v924 = vand.u32 %v406, 4294901760
        %v925 = vsub.f32 %v406, %v924
        %v926 = vand.u32 %v925, 4294901760
        %v927 = vsub.f32 %v925, %v926
        %v928 = vand.u32 %v927, 4294901760
        %929 = vmatpush2.msra.mxu0 %v928
        %930 = vmatprep.subr.mxu0 0.0
        %v931 = vand.u32 %v405, 4294901760
        %v932 = vsub.f32 %v405, %v931
        %v933 = vand.u32 %v932, 4294901760
        %v934 = vsub.f32 %v932, %v933
        %v935 = vand.u32 %v934, 4294901760
        %936 = vmatpush2.msra.mxu0 %v935
        %937 = vmatprep.subr.mxu0 0.0
        %v938 = vand.u32 %v404, 4294901760
        %v939 = vsub.f32 %v404, %v938
        %v940 = vand.u32 %v939, 4294901760
        %v941 = vsub.f32 %v939, %v940
        %v942 = vand.u32 %v941, 4294901760
        %943 = vmatpush2.msra.mxu0 %v942
        %944 = vmatprep.subr.mxu0 0.0
        %v945 = vand.u32 %v403, 4294901760
        %v946 = vsub.f32 %v403, %v945
        %v947 = vand.u32 %v946, 4294901760
        %v948 = vsub.f32 %v946, %v947
        %v949 = vand.u32 %v948, 4294901760
        %950 = vmatpush2.msra.mxu0 %v949
        %951 = vmatprep.subr.mxu0 0.0
        %v952 = vand.u32 %v402, 4294901760
        %v953 = vsub.f32 %v402, %v952
        %v954 = vand.u32 %v953, 4294901760
        %v955 = vsub.f32 %v953, %v954
        %v956 = vand.u32 %v955, 4294901760
        %957 = vmatpush2.msra.mxu0 %v956
        %958 = vmatprep.subr.mxu0 0.0
        %v959 = vand.u32 %v401, 4294901760
        %v960 = vsub.f32 %v401, %v959
        %v961 = vand.u32 %v960, 4294901760
        %v962 = vsub.f32 %v960, %v961
        %v963 = vand.u32 %v962, 4294901760
        %964 = vmatpush2.msra.mxu0 %v963
        %965 = vmatprep.subr.mxu0 0.0
        %v966 = vand.u32 %v400, 4294901760
        %v967 = vsub.f32 %v400, %v966
        %v968 = vand.u32 %v967, 4294901760
        %v969 = vsub.f32 %v967, %v968
        %v970 = vand.u32 %v969, 4294901760
        %971 = vmatpush2.msra.mxu0 %v970
        %972 = vmatprep.subr.mxu0 0.0
        %v973 = vand.u32 %v399, 4294901760
        %v974 = vsub.f32 %v399, %v973
        %v975 = vand.u32 %v974, 4294901760
        %v976 = vsub.f32 %v974, %v975
        %v977 = vand.u32 %v976, 4294901760
        %978 = vmatpush2.msra.mxu0 %v977
        %979 = vmatprep.subr.mxu0 0.0
        %v980 = vand.u32 %v398, 4294901760
        %v981 = vsub.f32 %v398, %v980
        %v982 = vand.u32 %v981, 4294901760
        %v983 = vsub.f32 %v981, %v982
        %v984 = vand.u32 %v983, 4294901760
        %985 = vmatpush2.msra.mxu0 %v984
        %986 = vmatprep.subr.mxu0 0.0
        %v987 = vand.u32 %v397, 4294901760
        %v988 = vsub.f32 %v397, %v987
        %v989 = vand.u32 %v988, 4294901760
        %v990 = vsub.f32 %v988, %v989
        %v991 = vand.u32 %v990, 4294901760
        %992 = vmatpush2.msra.mxu0 %v991
        %993 = vmatprep.subr.mxu0 0.0
        %v994 = vand.u32 %v396, 4294901760
        %v995 = vsub.f32 %v396, %v994
        %v996 = vand.u32 %v995, 4294901760
        %v997 = vsub.f32 %v995, %v996
        %v998 = vand.u32 %v997, 4294901760
        %999 = vmatpush2.msra.mxu0 %v998
        %1000 = vmatprep.subr.mxu0 0.0
        %v1001 = vand.u32 %v395, 4294901760
        %v1002 = vsub.f32 %v395, %v1001
        %v1003 = vand.u32 %v1002, 4294901760
        %v1004 = vsub.f32 %v1002, %v1003
        %v1005 = vand.u32 %v1004, 4294901760
        %1006 = vmatpush2.msra.mxu0 %v1005
        %1007 = vmatprep.subr.mxu0 0.0
        %v1008 = vand.u32 %v394, 4294901760
        %v1009 = vsub.f32 %v394, %v1008
        %v1010 = vand.u32 %v1009, 4294901760
        %v1011 = vsub.f32 %v1009, %v1010
        %v1012 = vand.u32 %v1011, 4294901760
        %1013 = vmatpush2.msra.mxu0 %v1012
        %v1014 = vand.u32 %v283, 4294901760
        %1015 = vmatprep.mubr.f32.mxu0 %v1014
        %v1016 = vand.u32 %v282, 4294901760
        %1017 = vmatmul.mubr.f32.gmra.mxu0 %v1016
        %v1018 = vpop.f32.mrf.mxu0
        %v1019 = vadd.f32 %v622, %v1018
        %v1020 = vpop.f32.mrf.mxu0
        %v1021 = vand.u32 %v291, 4294901760
        %1022 = vmatprep.mubr.f32.mxu0 %v1021
        %v1023 = vand.u32 %v290, 4294901760
        %1024 = vmatmul.mubr.f32.gmra.mxu0 %v1023
        %v1025 = vpop.f32.mrf.mxu0
        %v1026 = vadd.f32 %v637, %v1025
        %v1027 = vpop.f32.mrf.mxu0
        %v1028 = vand.u32 %v299, 4294901760
        %1029 = vmatprep.mubr.f32.mxu0 %v1028
        %v1030 = vand.u32 %v298, 4294901760
        %1031 = vmatmul.mubr.f32.gmra.mxu0 %v1030
        %v1032 = vpop.f32.mrf.mxu0
        %v1033 = vadd.f32 %v652, %v1032
        %v1034 = vpop.f32.mrf.mxu0
        %v1035 = vand.u32 %v307, 4294901760
        %1036 = vmatprep.mubr.f32.mxu0 %v1035
        %v1037 = vand.u32 %v306, 4294901760
        %1038 = vmatmul.mubr.f32.gmra.mxu0 %v1037
        %v1039 = vpop.f32.mrf.mxu0
        %v1040 = vadd.f32 %v667, %v1039
        %v1041 = vpop.f32.mrf.mxu0
        %v1042 = vand.u32 %v315, 4294901760
        %1043 = vmatprep.mubr.f32.mxu0 %v1042
        %v1044 = vand.u32 %v314, 4294901760
        %1045 = vmatmul.mubr.f32.gmra.mxu0 %v1044
        %v1046 = vpop.f32.mrf.mxu0
        %v1047 = vadd.f32 %v682, %v1046
        %v1048 = vpop.f32.mrf.mxu0
        %v1049 = vand.u32 %v323, 4294901760
        %1050 = vmatprep.mubr.f32.mxu0 %v1049
        %v1051 = vand.u32 %v322, 4294901760
        %1052 = vmatmul.mubr.f32.gmra.mxu0 %v1051
        %v1053 = vpop.f32.mrf.mxu0
        %v1054 = vadd.f32 %v697, %v1053
        %v1055 = vpop.f32.mrf.mxu0
        %v1056 = vand.u32 %v331, 4294901760
        %1057 = vmatprep.mubr.f32.mxu0 %v1056
        %v1058 = vand.u32 %v330, 4294901760
        %1059 = vmatmul.mubr.f32.gmra.mxu0 %v1058
        %v1060 = vpop.f32.mrf.mxu0
        %v1061 = vadd.f32 %v712, %v1060
        %v1062 = vpop.f32.mrf.mxu0
        %v1063 = vand.u32 %v339, 4294901760
        %1064 = vmatprep.mubr.f32.mxu0 %v1063
        %v1065 = vand.u32 %v338, 4294901760
        %1066 = vmatmul.mubr.f32.gmra.mxu0 %v1065
        %v1067 = vpop.f32.mrf.mxu0
        %v1068 = vadd.f32 %v727, %v1067
        %v1069 = vpop.f32.mrf.mxu0
        %v1070 = vand.u32 %v347, 4294901760
        %1071 = vmatprep.mubr.f32.mxu0 %v1070
        %v1072 = vand.u32 %v346, 4294901760
        %1073 = vmatmul.mubr.f32.gmra.mxu0 %v1072
        %v1074 = vpop.f32.mrf.mxu0
        %v1075 = vadd.f32 %v742, %v1074
        %v1076 = vpop.f32.mrf.mxu0
        %v1077 = vand.u32 %v355, 4294901760
        %1078 = vmatprep.mubr.f32.mxu0 %v1077
        %v1079 = vand.u32 %v354, 4294901760
        %1080 = vmatmul.mubr.f32.gmra.mxu0 %v1079
        %v1081 = vpop.f32.mrf.mxu0
        %v1082 = vadd.f32 %v757, %v1081
        %v1083 = vpop.f32.mrf.mxu0
        %v1084 = vand.u32 %v363, 4294901760
        %1085 = vmatprep.mubr.f32.mxu0 %v1084
        %v1086 = vand.u32 %v362, 4294901760
        %1087 = vmatmul.mubr.f32.gmra.mxu0 %v1086
        %v1088 = vpop.f32.mrf.mxu0
        %v1089 = vadd.f32 %v772, %v1088
        %v1090 = vpop.f32.mrf.mxu0
        %v1091 = vand.u32 %v371, 4294901760
        %1092 = vmatprep.mubr.f32.mxu0 %v1091
        %v1093 = vand.u32 %v370, 4294901760
        %1094 = vmatmul.mubr.f32.gmra.mxu0 %v1093
        %v1095 = vpop.f32.mrf.mxu0
        %v1096 = vadd.f32 %v787, %v1095
        %v1097 = vpop.f32.mrf.mxu0
        %1098 = vdwg.mxu0
        %1099 = vmatprep.subr.mxu0 0.0
        %v1100 = vand.u32 %v393, 4294901760
        %v1101 = vsub.f32 %v393, %v1100
        %1102 = vmatpush1.msra.mxu0 %v1101
        %1103 = vmatprep.subr.mxu0 0.0
        %v1104 = vand.u32 %v392, 4294901760
        %v1105 = vsub.f32 %v392, %v1104
        %1106 = vmatpush1.msra.mxu0 %v1105
        %1107 = vmatprep.subr.mxu0 0.0
        %v1108 = vand.u32 %v391, 4294901760
        %v1109 = vsub.f32 %v391, %v1108
        %1110 = vmatpush1.msra.mxu0 %v1109
        %1111 = vmatprep.subr.mxu0 0.0
        %v1112 = vand.u32 %v390, 4294901760
        %v1113 = vsub.f32 %v390, %v1112
        %1114 = vmatpush1.msra.mxu0 %v1113
        %1115 = vmatprep.subr.mxu0 0.0
        %v1116 = vand.u32 %v389, 4294901760
        %v1117 = vsub.f32 %v389, %v1116
        %1118 = vmatpush1.msra.mxu0 %v1117
        %1119 = vmatprep.subr.mxu0 0.0
        %v1120 = vand.u32 %v388, 4294901760
        %v1121 = vsub.f32 %v388, %v1120
        %1122 = vmatpush1.msra.mxu0 %v1121
        %1123 = vmatprep.subr.mxu0 0.0
        %v1124 = vand.u32 %v387, 4294901760
        %v1125 = vsub.f32 %v387, %v1124
        %1126 = vmatpush1.msra.mxu0 %v1125
        %1127 = vmatprep.subr.mxu0 0.0
        %v1128 = vand.u32 %v386, 4294901760
        %v1129 = vsub.f32 %v386, %v1128
        %1130 = vmatpush1.msra.mxu0 %v1129
        %1131 = vmatprep.subr.mxu0 0.0
        %v1132 = vand.u32 %v385, 4294901760
        %v1133 = vsub.f32 %v385, %v1132
        %1134 = vmatpush1.msra.mxu0 %v1133
        %1135 = vmatprep.subr.mxu0 0.0
        %v1136 = vand.u32 %v384, 4294901760
        %v1137 = vsub.f32 %v384, %v1136
        %1138 = vmatpush1.msra.mxu0 %v1137
        %1139 = vmatprep.subr.mxu0 0.0
        %v1140 = vand.u32 %v383, 4294901760
        %v1141 = vsub.f32 %v383, %v1140
        %1142 = vmatpush1.msra.mxu0 %v1141
        %1143 = vmatprep.subr.mxu0 0.0
        %v1144 = vand.u32 %v382, 4294901760
        %v1145 = vsub.f32 %v382, %v1144
        %1146 = vmatpush1.msra.mxu0 %v1145
        %1147 = vmatprep.subr.mxu0 0.0
        %v1148 = vand.u32 %v381, 4294901760
        %v1149 = vsub.f32 %v381, %v1148
        %1150 = vmatpush1.msra.mxu0 %v1149
        %1151 = vmatprep.subr.mxu0 0.0
        %v1152 = vand.u32 %v380, 4294901760
        %v1153 = vsub.f32 %v380, %v1152
        %1154 = vmatpush1.msra.mxu0 %v1153
        %1155 = vmatprep.subr.mxu0 0.0
        %v1156 = vand.u32 %v379, 4294901760
        %v1157 = vsub.f32 %v379, %v1156
        %1158 = vmatpush1.msra.mxu0 %v1157
        %1159 = vmatprep.subr.mxu0 0.0
        %v1160 = vand.u32 %v378, 4294901760
        %v1161 = vsub.f32 %v378, %v1160
        %1162 = vmatpush1.msra.mxu0 %v1161
        %1163 = vmatprep.subr.mxu0 0.0
        %v1164 = vand.u32 %v409, 4294901760
        %v1165 = vsub.f32 %v409, %v1164
        %1166 = vmatpush2.msra.mxu0 %v1165
        %1167 = vmatprep.subr.mxu0 0.0
        %v1168 = vand.u32 %v408, 4294901760
        %v1169 = vsub.f32 %v408, %v1168
        %1170 = vmatpush2.msra.mxu0 %v1169
        %1171 = vmatprep.subr.mxu0 0.0
        %v1172 = vand.u32 %v407, 4294901760
        %v1173 = vsub.f32 %v407, %v1172
        %1174 = vmatpush2.msra.mxu0 %v1173
        %1175 = vmatprep.subr.mxu0 0.0
        %v1176 = vand.u32 %v406, 4294901760
        %v1177 = vsub.f32 %v406, %v1176
        %1178 = vmatpush2.msra.mxu0 %v1177
        %1179 = vmatprep.subr.mxu0 0.0
        %v1180 = vand.u32 %v405, 4294901760
        %v1181 = vsub.f32 %v405, %v1180
        %1182 = vmatpush2.msra.mxu0 %v1181
        %1183 = vmatprep.subr.mxu0 0.0
        %v1184 = vand.u32 %v404, 4294901760
        %v1185 = vsub.f32 %v404, %v1184
        %1186 = vmatpush2.msra.mxu0 %v1185
        %1187 = vmatprep.subr.mxu0 0.0
        %v1188 = vand.u32 %v403, 4294901760
        %v1189 = vsub.f32 %v403, %v1188
        %1190 = vmatpush2.msra.mxu0 %v1189
        %1191 = vmatprep.subr.mxu0 0.0
        %v1192 = vand.u32 %v402, 4294901760
        %v1193 = vsub.f32 %v402, %v1192
        %1194 = vmatpush2.msra.mxu0 %v1193
        %1195 = vmatprep.subr.mxu0 0.0
        %v1196 = vand.u32 %v401, 4294901760
        %v1197 = vsub.f32 %v401, %v1196
        %1198 = vmatpush2.msra.mxu0 %v1197
        %1199 = vmatprep.subr.mxu0 0.0
        %v1200 = vand.u32 %v400, 4294901760
        %v1201 = vsub.f32 %v400, %v1200
        %1202 = vmatpush2.msra.mxu0 %v1201
        %1203 = vmatprep.subr.mxu0 0.0
        %v1204 = vand.u32 %v399, 4294901760
        %v1205 = vsub.f32 %v399, %v1204
        %1206 = vmatpush2.msra.mxu0 %v1205
        %1207 = vmatprep.subr.mxu0 0.0
        %v1208 = vand.u32 %v398, 4294901760
        %v1209 = vsub.f32 %v398, %v1208
        %1210 = vmatpush2.msra.mxu0 %v1209
        %1211 = vmatprep.subr.mxu0 0.0
        %v1212 = vand.u32 %v397, 4294901760
        %v1213 = vsub.f32 %v397, %v1212
        %1214 = vmatpush2.msra.mxu0 %v1213
        %1215 = vmatprep.subr.mxu0 0.0
        %v1216 = vand.u32 %v396, 4294901760
        %v1217 = vsub.f32 %v396, %v1216
        %1218 = vmatpush2.msra.mxu0 %v1217
        %1219 = vmatprep.subr.mxu0 0.0
        %v1220 = vand.u32 %v395, 4294901760
        %v1221 = vsub.f32 %v395, %v1220
        %1222 = vmatpush2.msra.mxu0 %v1221
        %1223 = vmatprep.subr.mxu0 0.0
        %v1224 = vand.u32 %v394, 4294901760
        %v1225 = vsub.f32 %v394, %v1224
        %1226 = vmatpush2.msra.mxu0 %v1225
        %v1227 = vand.u32 %v283, 4294901760
        %v1228 = vsub.f32 %v283, %v1227
        %1229 = vmatprep.mubr.f32.mxu0 %v1228
        %v1230 = vand.u32 %v282, 4294901760
        %v1231 = vsub.f32 %v282, %v1230
        %1232 = vmatmul.mubr.f32.gmra.mxu0 %v1231
        %v1233 = vpop.f32.mrf.mxu0
        %v1234 = vadd.f32 %v1019, %v1233
        %v1235 = vpop.f32.mrf.mxu0
        %v1236 = vand.u32 %v291, 4294901760
        %v1237 = vsub.f32 %v291, %v1236
        %1238 = vmatprep.mubr.f32.mxu0 %v1237
        %v1239 = vand.u32 %v290, 4294901760
        %v1240 = vsub.f32 %v290, %v1239
        %1241 = vmatmul.mubr.f32.gmra.mxu0 %v1240
        %v1242 = vpop.f32.mrf.mxu0
        %v1243 = vadd.f32 %v1026, %v1242
        %v1244 = vpop.f32.mrf.mxu0
        %v1245 = vand.u32 %v299, 4294901760
        %v1246 = vsub.f32 %v299, %v1245
        %1247 = vmatprep.mubr.f32.mxu0 %v1246
        %v1248 = vand.u32 %v298, 4294901760
        %v1249 = vsub.f32 %v298, %v1248
        %1250 = vmatmul.mubr.f32.gmra.mxu0 %v1249
        %v1251 = vpop.f32.mrf.mxu0
        %v1252 = vadd.f32 %v1033, %v1251
        %v1253 = vpop.f32.mrf.mxu0
        %v1254 = vand.u32 %v307, 4294901760
        %v1255 = vsub.f32 %v307, %v1254
        %1256 = vmatprep.mubr.f32.mxu0 %v1255
        %v1257 = vand.u32 %v306, 4294901760
        %v1258 = vsub.f32 %v306, %v1257
        %1259 = vmatmul.mubr.f32.gmra.mxu0 %v1258
        %v1260 = vpop.f32.mrf.mxu0
        %v1261 = vadd.f32 %v1040, %v1260
        %v1262 = vpop.f32.mrf.mxu0
        %v1263 = vand.u32 %v315, 4294901760
        %v1264 = vsub.f32 %v315, %v1263
        %1265 = vmatprep.mubr.f32.mxu0 %v1264
        %v1266 = vand.u32 %v314, 4294901760
        %v1267 = vsub.f32 %v314, %v1266
        %1268 = vmatmul.mubr.f32.gmra.mxu0 %v1267
        %v1269 = vpop.f32.mrf.mxu0
        %v1270 = vadd.f32 %v1047, %v1269
        %v1271 = vpop.f32.mrf.mxu0
        %v1272 = vand.u32 %v323, 4294901760
        %v1273 = vsub.f32 %v323, %v1272
        %1274 = vmatprep.mubr.f32.mxu0 %v1273
        %v1275 = vand.u32 %v322, 4294901760
        %v1276 = vsub.f32 %v322, %v1275
        %1277 = vmatmul.mubr.f32.gmra.mxu0 %v1276
        %v1278 = vpop.f32.mrf.mxu0
        %v1279 = vadd.f32 %v1054, %v1278
        %v1280 = vpop.f32.mrf.mxu0
        %v1281 = vand.u32 %v331, 4294901760
        %v1282 = vsub.f32 %v331, %v1281
        %1283 = vmatprep.mubr.f32.mxu0 %v1282
        %v1284 = vand.u32 %v330, 4294901760
        %v1285 = vsub.f32 %v330, %v1284
        %1286 = vmatmul.mubr.f32.gmra.mxu0 %v1285
        %v1287 = vpop.f32.mrf.mxu0
        %v1288 = vadd.f32 %v1061, %v1287
        %v1289 = vpop.f32.mrf.mxu0
        %v1290 = vand.u32 %v339, 4294901760
        %v1291 = vsub.f32 %v339, %v1290
        %1292 = vmatprep.mubr.f32.mxu0 %v1291
        %v1293 = vand.u32 %v338, 4294901760
        %v1294 = vsub.f32 %v338, %v1293
        %1295 = vmatmul.mubr.f32.gmra.mxu0 %v1294
        %v1296 = vpop.f32.mrf.mxu0
        %v1297 = vadd.f32 %v1068, %v1296
        %v1298 = vpop.f32.mrf.mxu0
        %v1299 = vand.u32 %v347, 4294901760
        %v1300 = vsub.f32 %v347, %v1299
        %1301 = vmatprep.mubr.f32.mxu0 %v1300
        %v1302 = vand.u32 %v346, 4294901760
        %v1303 = vsub.f32 %v346, %v1302
        %1304 = vmatmul.mubr.f32.gmra.mxu0 %v1303
        %v1305 = vpop.f32.mrf.mxu0
        %v1306 = vadd.f32 %v1075, %v1305
        %v1307 = vpop.f32.mrf.mxu0
        %v1308 = vand.u32 %v355, 4294901760
        %v1309 = vsub.f32 %v355, %v1308
        %1310 = vmatprep.mubr.f32.mxu0 %v1309
        %v1311 = vand.u32 %v354, 4294901760
        %v1312 = vsub.f32 %v354, %v1311
        %1313 = vmatmul.mubr.f32.gmra.mxu0 %v1312
        %v1314 = vpop.f32.mrf.mxu0
        %v1315 = vadd.f32 %v1082, %v1314
        %v1316 = vpop.f32.mrf.mxu0
        %v1317 = vand.u32 %v363, 4294901760
        %v1318 = vsub.f32 %v363, %v1317
        %1319 = vmatprep.mubr.f32.mxu0 %v1318
        %v1320 = vand.u32 %v362, 4294901760
        %v1321 = vsub.f32 %v362, %v1320
        %1322 = vmatmul.mubr.f32.gmra.mxu0 %v1321
        %v1323 = vpop.f32.mrf.mxu0
        %v1324 = vadd.f32 %v1089, %v1323
        %v1325 = vpop.f32.mrf.mxu0
        %v1326 = vand.u32 %v371, 4294901760
        %v1327 = vsub.f32 %v371, %v1326
        %1328 = vmatprep.mubr.f32.mxu0 %v1327
        %v1329 = vand.u32 %v370, 4294901760
        %v1330 = vsub.f32 %v370, %v1329
        %1331 = vmatmul.mubr.f32.gmra.mxu0 %v1330
        %v1332 = vpop.f32.mrf.mxu0
        %v1333 = vadd.f32 %v1096, %v1332
        %v1334 = vpop.f32.mrf.mxu0
        %1335 = vdwg.mxu0
        %1336 = vmatprep.subr.mxu0 0.0
        %v1337 = vand.u32 %v393, 4294901760
        %1338 = vmatpush1.msra.mxu0 %v1337
        %1339 = vmatprep.subr.mxu0 0.0
        %v1340 = vand.u32 %v392, 4294901760
        %1341 = vmatpush1.msra.mxu0 %v1340
        %1342 = vmatprep.subr.mxu0 0.0
        %v1343 = vand.u32 %v391, 4294901760
        %1344 = vmatpush1.msra.mxu0 %v1343
        %1345 = vmatprep.subr.mxu0 0.0
        %v1346 = vand.u32 %v390, 4294901760
        %1347 = vmatpush1.msra.mxu0 %v1346
        %1348 = vmatprep.subr.mxu0 0.0
        %v1349 = vand.u32 %v389, 4294901760
        %1350 = vmatpush1.msra.mxu0 %v1349
        %1351 = vmatprep.subr.mxu0 0.0
        %v1352 = vand.u32 %v388, 4294901760
        %1353 = vmatpush1.msra.mxu0 %v1352
        %1354 = vmatprep.subr.mxu0 0.0
        %v1355 = vand.u32 %v387, 4294901760
        %1356 = vmatpush1.msra.mxu0 %v1355
        %1357 = vmatprep.subr.mxu0 0.0
        %v1358 = vand.u32 %v386, 4294901760
        %1359 = vmatpush1.msra.mxu0 %v1358
        %1360 = vmatprep.subr.mxu0 0.0
        %v1361 = vand.u32 %v385, 4294901760
        %1362 = vmatpush1.msra.mxu0 %v1361
        %1363 = vmatprep.subr.mxu0 0.0
        %v1364 = vand.u32 %v384, 4294901760
        %1365 = vmatpush1.msra.mxu0 %v1364
        %1366 = vmatprep.subr.mxu0 0.0
        %v1367 = vand.u32 %v383, 4294901760
        %1368 = vmatpush1.msra.mxu0 %v1367
        %1369 = vmatprep.subr.mxu0 0.0
        %v1370 = vand.u32 %v382, 4294901760
        %1371 = vmatpush1.msra.mxu0 %v1370
        %1372 = vmatprep.subr.mxu0 0.0
        %v1373 = vand.u32 %v381, 4294901760
        %1374 = vmatpush1.msra.mxu0 %v1373
        %1375 = vmatprep.subr.mxu0 0.0
        %v1376 = vand.u32 %v380, 4294901760
        %1377 = vmatpush1.msra.mxu0 %v1376
        %1378 = vmatprep.subr.mxu0 0.0
        %v1379 = vand.u32 %v379, 4294901760
        %1380 = vmatpush1.msra.mxu0 %v1379
        %1381 = vmatprep.subr.mxu0 0.0
        %v1382 = vand.u32 %v378, 4294901760
        %1383 = vmatpush1.msra.mxu0 %v1382
        %1384 = vmatprep.subr.mxu0 0.0
        %v1385 = vand.u32 %v409, 4294901760
        %1386 = vmatpush2.msra.mxu0 %v1385
        %1387 = vmatprep.subr.mxu0 0.0
        %v1388 = vand.u32 %v408, 4294901760
        %1389 = vmatpush2.msra.mxu0 %v1388
        %1390 = vmatprep.subr.mxu0 0.0
        %v1391 = vand.u32 %v407, 4294901760
        %1392 = vmatpush2.msra.mxu0 %v1391
        %1393 = vmatprep.subr.mxu0 0.0
        %v1394 = vand.u32 %v406, 4294901760
        %1395 = vmatpush2.msra.mxu0 %v1394
        %1396 = vmatprep.subr.mxu0 0.0
        %v1397 = vand.u32 %v405, 4294901760
        %1398 = vmatpush2.msra.mxu0 %v1397
        %1399 = vmatprep.subr.mxu0 0.0
        %v1400 = vand.u32 %v404, 4294901760
        %1401 = vmatpush2.msra.mxu0 %v1400
        %1402 = vmatprep.subr.mxu0 0.0
        %v1403 = vand.u32 %v403, 4294901760
        %1404 = vmatpush2.msra.mxu0 %v1403
        %1405 = vmatprep.subr.mxu0 0.0
        %v1406 = vand.u32 %v402, 4294901760
        %1407 = vmatpush2.msra.mxu0 %v1406
        %1408 = vmatprep.subr.mxu0 0.0
        %v1409 = vand.u32 %v401, 4294901760
        %1410 = vmatpush2.msra.mxu0 %v1409
        %1411 = vmatprep.subr.mxu0 0.0
        %v1412 = vand.u32 %v400, 4294901760
        %1413 = vmatpush2.msra.mxu0 %v1412
        %1414 = vmatprep.subr.mxu0 0.0
        %v1415 = vand.u32 %v399, 4294901760
        %1416 = vmatpush2.msra.mxu0 %v1415
        %1417 = vmatprep.subr.mxu0 0.0
        %v1418 = vand.u32 %v398, 4294901760
        %1419 = vmatpush2.msra.mxu0 %v1418
        %1420 = vmatprep.subr.mxu0 0.0
        %v1421 = vand.u32 %v397, 4294901760
        %1422 = vmatpush2.msra.mxu0 %v1421
        %1423 = vmatprep.subr.mxu0 0.0
        %v1424 = vand.u32 %v396, 4294901760
        %1425 = vmatpush2.msra.mxu0 %v1424
        %1426 = vmatprep.subr.mxu0 0.0
        %v1427 = vand.u32 %v395, 4294901760
        %1428 = vmatpush2.msra.mxu0 %v1427
        %1429 = vmatprep.subr.mxu0 0.0
        %v1430 = vand.u32 %v394, 4294901760
        %1431 = vmatpush2.msra.mxu0 %v1430
        %v1432 = vand.u32 %v283, 4294901760
        %v1433 = vsub.f32 %v283, %v1432
        %v1434 = vand.u32 %v1433, 4294901760
        %1435 = vmatprep.mubr.f32.mxu0 %v1434
        %v1436 = vand.u32 %v282, 4294901760
        %v1437 = vsub.f32 %v282, %v1436
        %v1438 = vand.u32 %v1437, 4294901760
        %1439 = vmatmul.mubr.f32.gmra.mxu0 %v1438
        %v1440 = vpop.f32.mrf.mxu0
        %v1441 = vadd.f32 %v1234, %v1440
        %v1442 = vpop.f32.mrf.mxu0
        %v1443 = vand.u32 %v291, 4294901760
        %v1444 = vsub.f32 %v291, %v1443
        %v1445 = vand.u32 %v1444, 4294901760
        %1446 = vmatprep.mubr.f32.mxu0 %v1445
        %v1447 = vand.u32 %v290, 4294901760
        %v1448 = vsub.f32 %v290, %v1447
        %v1449 = vand.u32 %v1448, 4294901760
        %1450 = vmatmul.mubr.f32.gmra.mxu0 %v1449
        %v1451 = vpop.f32.mrf.mxu0
        %v1452 = vadd.f32 %v1243, %v1451
        %v1453 = vpop.f32.mrf.mxu0
        %v1454 = vand.u32 %v299, 4294901760
        %v1455 = vsub.f32 %v299, %v1454
        %v1456 = vand.u32 %v1455, 4294901760
        %1457 = vmatprep.mubr.f32.mxu0 %v1456
        %v1458 = vand.u32 %v298, 4294901760
        %v1459 = vsub.f32 %v298, %v1458
        %v1460 = vand.u32 %v1459, 4294901760
        %1461 = vmatmul.mubr.f32.gmra.mxu0 %v1460
        %v1462 = vpop.f32.mrf.mxu0
        %v1463 = vadd.f32 %v1252, %v1462
        %v1464 = vpop.f32.mrf.mxu0
        %v1465 = vand.u32 %v307, 4294901760
        %v1466 = vsub.f32 %v307, %v1465
        %v1467 = vand.u32 %v1466, 4294901760
        %1468 = vmatprep.mubr.f32.mxu0 %v1467
        %v1469 = vand.u32 %v306, 4294901760
        %v1470 = vsub.f32 %v306, %v1469
        %v1471 = vand.u32 %v1470, 4294901760
        %1472 = vmatmul.mubr.f32.gmra.mxu0 %v1471
        %v1473 = vpop.f32.mrf.mxu0
        %v1474 = vadd.f32 %v1261, %v1473
        %v1475 = vpop.f32.mrf.mxu0
        %v1476 = vand.u32 %v315, 4294901760
        %v1477 = vsub.f32 %v315, %v1476
        %v1478 = vand.u32 %v1477, 4294901760
        %1479 = vmatprep.mubr.f32.mxu0 %v1478
        %v1480 = vand.u32 %v314, 4294901760
        %v1481 = vsub.f32 %v314, %v1480
        %v1482 = vand.u32 %v1481, 4294901760
        %1483 = vmatmul.mubr.f32.gmra.mxu0 %v1482
        %v1484 = vpop.f32.mrf.mxu0
        %v1485 = vadd.f32 %v1270, %v1484
        %v1486 = vpop.f32.mrf.mxu0
        %v1487 = vand.u32 %v323, 4294901760
        %v1488 = vsub.f32 %v323, %v1487
        %v1489 = vand.u32 %v1488, 4294901760
        %1490 = vmatprep.mubr.f32.mxu0 %v1489
        %v1491 = vand.u32 %v322, 4294901760
        %v1492 = vsub.f32 %v322, %v1491
        %v1493 = vand.u32 %v1492, 4294901760
        %1494 = vmatmul.mubr.f32.gmra.mxu0 %v1493
        %v1495 = vpop.f32.mrf.mxu0
        %v1496 = vadd.f32 %v1279, %v1495
        %v1497 = vpop.f32.mrf.mxu0
        %v1498 = vand.u32 %v331, 4294901760
        %v1499 = vsub.f32 %v331, %v1498
        %v1500 = vand.u32 %v1499, 4294901760
        %1501 = vmatprep.mubr.f32.mxu0 %v1500
        %v1502 = vand.u32 %v330, 4294901760
        %v1503 = vsub.f32 %v330, %v1502
        %v1504 = vand.u32 %v1503, 4294901760
        %1505 = vmatmul.mubr.f32.gmra.mxu0 %v1504
        %v1506 = vpop.f32.mrf.mxu0
        %v1507 = vadd.f32 %v1288, %v1506
        %v1508 = vpop.f32.mrf.mxu0
        %v1509 = vand.u32 %v339, 4294901760
        %v1510 = vsub.f32 %v339, %v1509
        %v1511 = vand.u32 %v1510, 4294901760
        %1512 = vmatprep.mubr.f32.mxu0 %v1511
        %v1513 = vand.u32 %v338, 4294901760
        %v1514 = vsub.f32 %v338, %v1513
        %v1515 = vand.u32 %v1514, 4294901760
        %1516 = vmatmul.mubr.f32.gmra.mxu0 %v1515
        %v1517 = vpop.f32.mrf.mxu0
        %v1518 = vadd.f32 %v1297, %v1517
        %v1519 = vpop.f32.mrf.mxu0
        %v1520 = vand.u32 %v347, 4294901760
        %v1521 = vsub.f32 %v347, %v1520
        %v1522 = vand.u32 %v1521, 4294901760
        %1523 = vmatprep.mubr.f32.mxu0 %v1522
        %v1524 = vand.u32 %v346, 4294901760
        %v1525 = vsub.f32 %v346, %v1524
        %v1526 = vand.u32 %v1525, 4294901760
        %1527 = vmatmul.mubr.f32.gmra.mxu0 %v1526
        %v1528 = vpop.f32.mrf.mxu0
        %v1529 = vadd.f32 %v1306, %v1528
        %v1530 = vpop.f32.mrf.mxu0
        %v1531 = vand.u32 %v355, 4294901760
        %v1532 = vsub.f32 %v355, %v1531
        %v1533 = vand.u32 %v1532, 4294901760
        %1534 = vmatprep.mubr.f32.mxu0 %v1533
        %v1535 = vand.u32 %v354, 4294901760
        %v1536 = vsub.f32 %v354, %v1535
        %v1537 = vand.u32 %v1536, 4294901760
        %1538 = vmatmul.mubr.f32.gmra.mxu0 %v1537
        %v1539 = vpop.f32.mrf.mxu0
        %v1540 = vadd.f32 %v1315, %v1539
        %v1541 = vpop.f32.mrf.mxu0
        %v1542 = vand.u32 %v363, 4294901760
        %v1543 = vsub.f32 %v363, %v1542
        %v1544 = vand.u32 %v1543, 4294901760
        %1545 = vmatprep.mubr.f32.mxu0 %v1544
        %v1546 = vand.u32 %v362, 4294901760
        %v1547 = vsub.f32 %v362, %v1546
        %v1548 = vand.u32 %v1547, 4294901760
        %1549 = vmatmul.mubr.f32.gmra.mxu0 %v1548
        %v1550 = vpop.f32.mrf.mxu0
        %v1551 = vadd.f32 %v1324, %v1550
        %v1552 = vpop.f32.mrf.mxu0
        %v1553 = vand.u32 %v371, 4294901760
        %v1554 = vsub.f32 %v371, %v1553
        %v1555 = vand.u32 %v1554, 4294901760
        %1556 = vmatprep.mubr.f32.mxu0 %v1555
        %v1557 = vand.u32 %v370, 4294901760
        %v1558 = vsub.f32 %v370, %v1557
        %v1559 = vand.u32 %v1558, 4294901760
        %1560 = vmatmul.mubr.f32.gmra.mxu0 %v1559
        %v1561 = vpop.f32.mrf.mxu0
        %v1562 = vadd.f32 %v1333, %v1561
        %v1563 = vpop.f32.mrf.mxu0
        %1564 = vdwg.mxu0
        %1565 = vmatprep.subr.mxu0 0.0
        %v1566 = vand.u32 %v393, 4294901760
        %v1567 = vsub.f32 %v393, %v1566
        %v1568 = vand.u32 %v1567, 4294901760
        %1569 = vmatpush1.msra.mxu0 %v1568
        %1570 = vmatprep.subr.mxu0 0.0
        %v1571 = vand.u32 %v392, 4294901760
        %v1572 = vsub.f32 %v392, %v1571
        %v1573 = vand.u32 %v1572, 4294901760
        %1574 = vmatpush1.msra.mxu0 %v1573
        %1575 = vmatprep.subr.mxu0 0.0
        %v1576 = vand.u32 %v391, 4294901760
        %v1577 = vsub.f32 %v391, %v1576
        %v1578 = vand.u32 %v1577, 4294901760
        %1579 = vmatpush1.msra.mxu0 %v1578
        %1580 = vmatprep.subr.mxu0 0.0
        %v1581 = vand.u32 %v390, 4294901760
        %v1582 = vsub.f32 %v390, %v1581
        %v1583 = vand.u32 %v1582, 4294901760
        %1584 = vmatpush1.msra.mxu0 %v1583
        %1585 = vmatprep.subr.mxu0 0.0
        %v1586 = vand.u32 %v389, 4294901760
        %v1587 = vsub.f32 %v389, %v1586
        %v1588 = vand.u32 %v1587, 4294901760
        %1589 = vmatpush1.msra.mxu0 %v1588
        %1590 = vmatprep.subr.mxu0 0.0
        %v1591 = vand.u32 %v388, 4294901760
        %v1592 = vsub.f32 %v388, %v1591
        %v1593 = vand.u32 %v1592, 4294901760
        %1594 = vmatpush1.msra.mxu0 %v1593
        %1595 = vmatprep.subr.mxu0 0.0
        %v1596 = vand.u32 %v387, 4294901760
        %v1597 = vsub.f32 %v387, %v1596
        %v1598 = vand.u32 %v1597, 4294901760
        %1599 = vmatpush1.msra.mxu0 %v1598
        %1600 = vmatprep.subr.mxu0 0.0
        %v1601 = vand.u32 %v386, 4294901760
        %v1602 = vsub.f32 %v386, %v1601
        %v1603 = vand.u32 %v1602, 4294901760
        %1604 = vmatpush1.msra.mxu0 %v1603
        %1605 = vmatprep.subr.mxu0 0.0
        %v1606 = vand.u32 %v385, 4294901760
        %v1607 = vsub.f32 %v385, %v1606
        %v1608 = vand.u32 %v1607, 4294901760
        %1609 = vmatpush1.msra.mxu0 %v1608
        %1610 = vmatprep.subr.mxu0 0.0
        %v1611 = vand.u32 %v384, 4294901760
        %v1612 = vsub.f32 %v384, %v1611
        %v1613 = vand.u32 %v1612, 4294901760
        %1614 = vmatpush1.msra.mxu0 %v1613
        %1615 = vmatprep.subr.mxu0 0.0
        %v1616 = vand.u32 %v383, 4294901760
        %v1617 = vsub.f32 %v383, %v1616
        %v1618 = vand.u32 %v1617, 4294901760
        %1619 = vmatpush1.msra.mxu0 %v1618
        %1620 = vmatprep.subr.mxu0 0.0
        %v1621 = vand.u32 %v382, 4294901760
        %v1622 = vsub.f32 %v382, %v1621
        %v1623 = vand.u32 %v1622, 4294901760
        %1624 = vmatpush1.msra.mxu0 %v1623
        %1625 = vmatprep.subr.mxu0 0.0
        %v1626 = vand.u32 %v381, 4294901760
        %v1627 = vsub.f32 %v381, %v1626
        %v1628 = vand.u32 %v1627, 4294901760
        %1629 = vmatpush1.msra.mxu0 %v1628
        %1630 = vmatprep.subr.mxu0 0.0
        %v1631 = vand.u32 %v380, 4294901760
        %v1632 = vsub.f32 %v380, %v1631
        %v1633 = vand.u32 %v1632, 4294901760
        %1634 = vmatpush1.msra.mxu0 %v1633
        %1635 = vmatprep.subr.mxu0 0.0
        %v1636 = vand.u32 %v379, 4294901760
        %v1637 = vsub.f32 %v379, %v1636
        %v1638 = vand.u32 %v1637, 4294901760
        %1639 = vmatpush1.msra.mxu0 %v1638
        %1640 = vmatprep.subr.mxu0 0.0
        %v1641 = vand.u32 %v378, 4294901760
        %v1642 = vsub.f32 %v378, %v1641
        %v1643 = vand.u32 %v1642, 4294901760
        %1644 = vmatpush1.msra.mxu0 %v1643
        %1645 = vmatprep.subr.mxu0 0.0
        %v1646 = vand.u32 %v409, 4294901760
        %v1647 = vsub.f32 %v409, %v1646
        %v1648 = vand.u32 %v1647, 4294901760
        %1649 = vmatpush2.msra.mxu0 %v1648
        %1650 = vmatprep.subr.mxu0 0.0
        %v1651 = vand.u32 %v408, 4294901760
        %v1652 = vsub.f32 %v408, %v1651
        %v1653 = vand.u32 %v1652, 4294901760
        %1654 = vmatpush2.msra.mxu0 %v1653
        %1655 = vmatprep.subr.mxu0 0.0
        %v1656 = vand.u32 %v407, 4294901760
        %v1657 = vsub.f32 %v407, %v1656
        %v1658 = vand.u32 %v1657, 4294901760
        %1659 = vmatpush2.msra.mxu0 %v1658
        %1660 = vmatprep.subr.mxu0 0.0
        %v1661 = vand.u32 %v406, 4294901760
        %v1662 = vsub.f32 %v406, %v1661
        %v1663 = vand.u32 %v1662, 4294901760
        %1664 = vmatpush2.msra.mxu0 %v1663
        %1665 = vmatprep.subr.mxu0 0.0
        %v1666 = vand.u32 %v405, 4294901760
        %v1667 = vsub.f32 %v405, %v1666
        %v1668 = vand.u32 %v1667, 4294901760
        %1669 = vmatpush2.msra.mxu0 %v1668
        %1670 = vmatprep.subr.mxu0 0.0
        %v1671 = vand.u32 %v404, 4294901760
        %v1672 = vsub.f32 %v404, %v1671
        %v1673 = vand.u32 %v1672, 4294901760
        %1674 = vmatpush2.msra.mxu0 %v1673
        %1675 = vmatprep.subr.mxu0 0.0
        %v1676 = vand.u32 %v403, 4294901760
        %v1677 = vsub.f32 %v403, %v1676
        %v1678 = vand.u32 %v1677, 4294901760
        %1679 = vmatpush2.msra.mxu0 %v1678
        %1680 = vmatprep.subr.mxu0 0.0
        %v1681 = vand.u32 %v402, 4294901760
        %v1682 = vsub.f32 %v402, %v1681
        %v1683 = vand.u32 %v1682, 4294901760
        %1684 = vmatpush2.msra.mxu0 %v1683
        %1685 = vmatprep.subr.mxu0 0.0
        %v1686 = vand.u32 %v401, 4294901760
        %v1687 = vsub.f32 %v401, %v1686
        %v1688 = vand.u32 %v1687, 4294901760
        %1689 = vmatpush2.msra.mxu0 %v1688
        %1690 = vmatprep.subr.mxu0 0.0
        %v1691 = vand.u32 %v400, 4294901760
        %v1692 = vsub.f32 %v400, %v1691
        %v1693 = vand.u32 %v1692, 4294901760
        %1694 = vmatpush2.msra.mxu0 %v1693
        %1695 = vmatprep.subr.mxu0 0.0
        %v1696 = vand.u32 %v399, 4294901760
        %v1697 = vsub.f32 %v399, %v1696
        %v1698 = vand.u32 %v1697, 4294901760
        %1699 = vmatpush2.msra.mxu0 %v1698
        %1700 = vmatprep.subr.mxu0 0.0
        %v1701 = vand.u32 %v398, 4294901760
        %v1702 = vsub.f32 %v398, %v1701
        %v1703 = vand.u32 %v1702, 4294901760
        %1704 = vmatpush2.msra.mxu0 %v1703
        %1705 = vmatprep.subr.mxu0 0.0
        %v1706 = vand.u32 %v397, 4294901760
        %v1707 = vsub.f32 %v397, %v1706
        %v1708 = vand.u32 %v1707, 4294901760
        %1709 = vmatpush2.msra.mxu0 %v1708
        %1710 = vmatprep.subr.mxu0 0.0
        %v1711 = vand.u32 %v396, 4294901760
        %v1712 = vsub.f32 %v396, %v1711
        %v1713 = vand.u32 %v1712, 4294901760
        %1714 = vmatpush2.msra.mxu0 %v1713
        %1715 = vmatprep.subr.mxu0 0.0
        %v1716 = vand.u32 %v395, 4294901760
        %v1717 = vsub.f32 %v395, %v1716
        %v1718 = vand.u32 %v1717, 4294901760
        %1719 = vmatpush2.msra.mxu0 %v1718
        %1720 = vmatprep.subr.mxu0 0.0
        %v1721 = vand.u32 %v394, 4294901760
        %v1722 = vsub.f32 %v394, %v1721
        %v1723 = vand.u32 %v1722, 4294901760
        %1724 = vmatpush2.msra.mxu0 %v1723
        %v1725 = vand.u32 %v283, 4294901760
        %1726 = vmatprep.mubr.f32.mxu0 %v1725
        %v1727 = vand.u32 %v282, 4294901760
        %1728 = vmatmul.mubr.f32.gmra.mxu0 %v1727
        %v1729 = vpop.f32.mrf.mxu0
        %v1730 = vadd.f32 %v1441, %v1729
        %v1731 = vpop.f32.mrf.mxu0
        %v1732 = vand.u32 %v291, 4294901760
        %1733 = vmatprep.mubr.f32.mxu0 %v1732
        %v1734 = vand.u32 %v290, 4294901760
        %1735 = vmatmul.mubr.f32.gmra.mxu0 %v1734
        %v1736 = vpop.f32.mrf.mxu0
        %v1737 = vadd.f32 %v1452, %v1736
        %v1738 = vpop.f32.mrf.mxu0
        %v1739 = vand.u32 %v299, 4294901760
        %1740 = vmatprep.mubr.f32.mxu0 %v1739
        %v1741 = vand.u32 %v298, 4294901760
        %1742 = vmatmul.mubr.f32.gmra.mxu0 %v1741
        %v1743 = vpop.f32.mrf.mxu0
        %v1744 = vadd.f32 %v1463, %v1743
        %v1745 = vpop.f32.mrf.mxu0
        %v1746 = vand.u32 %v307, 4294901760
        %1747 = vmatprep.mubr.f32.mxu0 %v1746
        %v1748 = vand.u32 %v306, 4294901760
        %1749 = vmatmul.mubr.f32.gmra.mxu0 %v1748
        %v1750 = vpop.f32.mrf.mxu0
        %v1751 = vadd.f32 %v1474, %v1750
        %v1752 = vpop.f32.mrf.mxu0
        %v1753 = vand.u32 %v315, 4294901760
        %1754 = vmatprep.mubr.f32.mxu0 %v1753
        %v1755 = vand.u32 %v314, 4294901760
        %1756 = vmatmul.mubr.f32.gmra.mxu0 %v1755
        %v1757 = vpop.f32.mrf.mxu0
        %v1758 = vadd.f32 %v1485, %v1757
        %v1759 = vpop.f32.mrf.mxu0
        %v1760 = vand.u32 %v323, 4294901760
        %1761 = vmatprep.mubr.f32.mxu0 %v1760
        %v1762 = vand.u32 %v322, 4294901760
        %1763 = vmatmul.mubr.f32.gmra.mxu0 %v1762
        %v1764 = vpop.f32.mrf.mxu0
        %v1765 = vadd.f32 %v1496, %v1764
        %v1766 = vpop.f32.mrf.mxu0
        %v1767 = vand.u32 %v331, 4294901760
        %1768 = vmatprep.mubr.f32.mxu0 %v1767
        %v1769 = vand.u32 %v330, 4294901760
        %1770 = vmatmul.mubr.f32.gmra.mxu0 %v1769
        %v1771 = vpop.f32.mrf.mxu0
        %v1772 = vadd.f32 %v1507, %v1771
        %v1773 = vpop.f32.mrf.mxu0
        %v1774 = vand.u32 %v339, 4294901760
        %1775 = vmatprep.mubr.f32.mxu0 %v1774
        %v1776 = vand.u32 %v338, 4294901760
        %1777 = vmatmul.mubr.f32.gmra.mxu0 %v1776
        %v1778 = vpop.f32.mrf.mxu0
        %v1779 = vadd.f32 %v1518, %v1778
        %v1780 = vpop.f32.mrf.mxu0
        %v1781 = vand.u32 %v347, 4294901760
        %1782 = vmatprep.mubr.f32.mxu0 %v1781
        %v1783 = vand.u32 %v346, 4294901760
        %1784 = vmatmul.mubr.f32.gmra.mxu0 %v1783
        %v1785 = vpop.f32.mrf.mxu0
        %v1786 = vadd.f32 %v1529, %v1785
        %v1787 = vpop.f32.mrf.mxu0
        %v1788 = vand.u32 %v355, 4294901760
        %1789 = vmatprep.mubr.f32.mxu0 %v1788
        %v1790 = vand.u32 %v354, 4294901760
        %1791 = vmatmul.mubr.f32.gmra.mxu0 %v1790
        %v1792 = vpop.f32.mrf.mxu0
        %v1793 = vadd.f32 %v1540, %v1792
        %v1794 = vpop.f32.mrf.mxu0
        %v1795 = vand.u32 %v363, 4294901760
        %1796 = vmatprep.mubr.f32.mxu0 %v1795
        %v1797 = vand.u32 %v362, 4294901760
        %1798 = vmatmul.mubr.f32.gmra.mxu0 %v1797
        %v1799 = vpop.f32.mrf.mxu0
        %v1800 = vadd.f32 %v1551, %v1799
        %v1801 = vpop.f32.mrf.mxu0
        %v1802 = vand.u32 %v371, 4294901760
        %1803 = vmatprep.mubr.f32.mxu0 %v1802
        %v1804 = vand.u32 %v370, 4294901760
        %1805 = vmatmul.mubr.f32.gmra.mxu0 %v1804
        %v1806 = vpop.f32.mrf.mxu0
        %v1807 = vadd.f32 %v1562, %v1806
        %v1808 = vpop.f32.mrf.mxu0
        %1809 = vdwg.mxu0
        %1810 = vmatprep.subr.mxu0 0.0
        %v1811 = vand.u32 %v393, 4294901760
        %1812 = vmatpush1.msra.mxu0 %v1811
        %1813 = vmatprep.subr.mxu0 0.0
        %v1814 = vand.u32 %v392, 4294901760
        %1815 = vmatpush1.msra.mxu0 %v1814
        %1816 = vmatprep.subr.mxu0 0.0
        %v1817 = vand.u32 %v391, 4294901760
        %1818 = vmatpush1.msra.mxu0 %v1817
        %1819 = vmatprep.subr.mxu0 0.0
        %v1820 = vand.u32 %v390, 4294901760
        %1821 = vmatpush1.msra.mxu0 %v1820
        %1822 = vmatprep.subr.mxu0 0.0
        %v1823 = vand.u32 %v389, 4294901760
        %1824 = vmatpush1.msra.mxu0 %v1823
        %1825 = vmatprep.subr.mxu0 0.0
        %v1826 = vand.u32 %v388, 4294901760
        %1827 = vmatpush1.msra.mxu0 %v1826
        %1828 = vmatprep.subr.mxu0 0.0
        %v1829 = vand.u32 %v387, 4294901760
        %1830 = vmatpush1.msra.mxu0 %v1829
        %1831 = vmatprep.subr.mxu0 0.0
        %v1832 = vand.u32 %v386, 4294901760
        %1833 = vmatpush1.msra.mxu0 %v1832
        %1834 = vmatprep.subr.mxu0 0.0
        %v1835 = vand.u32 %v385, 4294901760
        %1836 = vmatpush1.msra.mxu0 %v1835
        %1837 = vmatprep.subr.mxu0 0.0
        %v1838 = vand.u32 %v384, 4294901760
        %1839 = vmatpush1.msra.mxu0 %v1838
        %1840 = vmatprep.subr.mxu0 0.0
        %v1841 = vand.u32 %v383, 4294901760
        %1842 = vmatpush1.msra.mxu0 %v1841
        %1843 = vmatprep.subr.mxu0 0.0
        %v1844 = vand.u32 %v382, 4294901760
        %1845 = vmatpush1.msra.mxu0 %v1844
        %1846 = vmatprep.subr.mxu0 0.0
        %v1847 = vand.u32 %v381, 4294901760
        %1848 = vmatpush1.msra.mxu0 %v1847
        %1849 = vmatprep.subr.mxu0 0.0
        %v1850 = vand.u32 %v380, 4294901760
        %1851 = vmatpush1.msra.mxu0 %v1850
        %1852 = vmatprep.subr.mxu0 0.0
        %v1853 = vand.u32 %v379, 4294901760
        %1854 = vmatpush1.msra.mxu0 %v1853
        %1855 = vmatprep.subr.mxu0 0.0
        %v1856 = vand.u32 %v378, 4294901760
        %1857 = vmatpush1.msra.mxu0 %v1856
        %1858 = vmatprep.subr.mxu0 0.0
        %v1859 = vand.u32 %v409, 4294901760
        %1860 = vmatpush2.msra.mxu0 %v1859
        %1861 = vmatprep.subr.mxu0 0.0
        %v1862 = vand.u32 %v408, 4294901760
        %1863 = vmatpush2.msra.mxu0 %v1862
        %1864 = vmatprep.subr.mxu0 0.0
        %v1865 = vand.u32 %v407, 4294901760
        %1866 = vmatpush2.msra.mxu0 %v1865
        %1867 = vmatprep.subr.mxu0 0.0
        %v1868 = vand.u32 %v406, 4294901760
        %1869 = vmatpush2.msra.mxu0 %v1868
        %1870 = vmatprep.subr.mxu0 0.0
        %v1871 = vand.u32 %v405, 4294901760
        %1872 = vmatpush2.msra.mxu0 %v1871
        %1873 = vmatprep.subr.mxu0 0.0
        %v1874 = vand.u32 %v404, 4294901760
        %1875 = vmatpush2.msra.mxu0 %v1874
        %1876 = vmatprep.subr.mxu0 0.0
        %v1877 = vand.u32 %v403, 4294901760
        %1878 = vmatpush2.msra.mxu0 %v1877
        %1879 = vmatprep.subr.mxu0 0.0
        %v1880 = vand.u32 %v402, 4294901760
        %1881 = vmatpush2.msra.mxu0 %v1880
        %1882 = vmatprep.subr.mxu0 0.0
        %v1883 = vand.u32 %v401, 4294901760
        %1884 = vmatpush2.msra.mxu0 %v1883
        %1885 = vmatprep.subr.mxu0 0.0
        %v1886 = vand.u32 %v400, 4294901760
        %1887 = vmatpush2.msra.mxu0 %v1886
        %1888 = vmatprep.subr.mxu0 0.0
        %v1889 = vand.u32 %v399, 4294901760
        %1890 = vmatpush2.msra.mxu0 %v1889
        %1891 = vmatprep.subr.mxu0 0.0
        %v1892 = vand.u32 %v398, 4294901760
        %1893 = vmatpush2.msra.mxu0 %v1892
        %1894 = vmatprep.subr.mxu0 0.0
        %v1895 = vand.u32 %v397, 4294901760
        %1896 = vmatpush2.msra.mxu0 %v1895
        %1897 = vmatprep.subr.mxu0 0.0
        %v1898 = vand.u32 %v396, 4294901760
        %1899 = vmatpush2.msra.mxu0 %v1898
        %1900 = vmatprep.subr.mxu0 0.0
        %v1901 = vand.u32 %v395, 4294901760
        %1902 = vmatpush2.msra.mxu0 %v1901
        %1903 = vmatprep.subr.mxu0 0.0
        %v1904 = vand.u32 %v394, 4294901760
        %1905 = vmatpush2.msra.mxu0 %v1904
        %v1906 = vand.u32 %v283, 4294901760
        %1907 = vmatprep.mubr.f32.mxu0 %v1906
        %v1908 = vand.u32 %v282, 4294901760
        %1909 = vmatmul.mubr.f32.gmra.mxu0 %v1908
        %v1910 = vpop.f32.mrf.mxu0
        %v1911 = vadd.f32 %v1730, %v1910
        %v1912 = vpop.f32.mrf.mxu0
        %v1913 = vand.u32 %v291, 4294901760
        %1914 = vmatprep.mubr.f32.mxu0 %v1913
        %v1915 = vand.u32 %v290, 4294901760
        %1916 = vmatmul.mubr.f32.gmra.mxu0 %v1915
        %v1917 = vpop.f32.mrf.mxu0
        %v1918 = vadd.f32 %v1737, %v1917
        %v1919 = vpop.f32.mrf.mxu0
        %v1920 = vand.u32 %v299, 4294901760
        %1921 = vmatprep.mubr.f32.mxu0 %v1920
        %v1922 = vand.u32 %v298, 4294901760
        %1923 = vmatmul.mubr.f32.gmra.mxu0 %v1922
        %v1924 = vpop.f32.mrf.mxu0
        %v1925 = vadd.f32 %v1744, %v1924
        %v1926 = vpop.f32.mrf.mxu0
        %v1927 = vand.u32 %v307, 4294901760
        %1928 = vmatprep.mubr.f32.mxu0 %v1927
        %v1929 = vand.u32 %v306, 4294901760
        %1930 = vmatmul.mubr.f32.gmra.mxu0 %v1929
        %v1931 = vpop.f32.mrf.mxu0
        %v1932 = vadd.f32 %v1751, %v1931
        %v1933 = vpop.f32.mrf.mxu0
        %v1934 = vand.u32 %v315, 4294901760
        %1935 = vmatprep.mubr.f32.mxu0 %v1934
        %v1936 = vand.u32 %v314, 4294901760
        %1937 = vmatmul.mubr.f32.gmra.mxu0 %v1936
        %v1938 = vpop.f32.mrf.mxu0
        %v1939 = vadd.f32 %v1758, %v1938
        %v1940 = vpop.f32.mrf.mxu0
        %v1941 = vand.u32 %v323, 4294901760
        %1942 = vmatprep.mubr.f32.mxu0 %v1941
        %v1943 = vand.u32 %v322, 4294901760
        %1944 = vmatmul.mubr.f32.gmra.mxu0 %v1943
        %v1945 = vpop.f32.mrf.mxu0
        %v1946 = vadd.f32 %v1765, %v1945
        %v1947 = vpop.f32.mrf.mxu0
        %v1948 = vand.u32 %v331, 4294901760
        %1949 = vmatprep.mubr.f32.mxu0 %v1948
        %v1950 = vand.u32 %v330, 4294901760
        %1951 = vmatmul.mubr.f32.gmra.mxu0 %v1950
        %v1952 = vpop.f32.mrf.mxu0
        %v1953 = vadd.f32 %v1772, %v1952
        %v1954 = vpop.f32.mrf.mxu0
        %v1955 = vand.u32 %v339, 4294901760
        %1956 = vmatprep.mubr.f32.mxu0 %v1955
        %v1957 = vand.u32 %v338, 4294901760
        %1958 = vmatmul.mubr.f32.gmra.mxu0 %v1957
        %v1959 = vpop.f32.mrf.mxu0
        %v1960 = vadd.f32 %v1779, %v1959
        %v1961 = vpop.f32.mrf.mxu0
        %v1962 = vand.u32 %v347, 4294901760
        %1963 = vmatprep.mubr.f32.mxu0 %v1962
        %v1964 = vand.u32 %v346, 4294901760
        %1965 = vmatmul.mubr.f32.gmra.mxu0 %v1964
        %v1966 = vpop.f32.mrf.mxu0
        %v1967 = vadd.f32 %v1786, %v1966
        %v1968 = vpop.f32.mrf.mxu0
        %v1969 = vand.u32 %v355, 4294901760
        %1970 = vmatprep.mubr.f32.mxu0 %v1969
        %v1971 = vand.u32 %v354, 4294901760
        %1972 = vmatmul.mubr.f32.gmra.mxu0 %v1971
        %v1973 = vpop.f32.mrf.mxu0
        %v1974 = vadd.f32 %v1793, %v1973
        %v1975 = vpop.f32.mrf.mxu0
        %v1976 = vand.u32 %v363, 4294901760
        %1977 = vmatprep.mubr.f32.mxu0 %v1976
        %v1978 = vand.u32 %v362, 4294901760
        %1979 = vmatmul.mubr.f32.gmra.mxu0 %v1978
        %v1980 = vpop.f32.mrf.mxu0
        %v1981 = vadd.f32 %v1800, %v1980
        %v1982 = vpop.f32.mrf.mxu0
        %v1983 = vand.u32 %v371, 4294901760
        %1984 = vmatprep.mubr.f32.mxu0 %v1983
        %v1985 = vand.u32 %v370, 4294901760
        %1986 = vmatmul.mubr.f32.gmra.mxu0 %v1985
        %v1987 = vpop.f32.mrf.mxu0
        %v1988 = vadd.f32 %v1807, %v1987
        %v1989 = vpop.f32.mrf.mxu0
        %1990 = vdwg.mxu0
        %1991 = vmatprep.subr.mxu0 0.0
        %v1992 = vand.u32 %v425, 4294901760
        %1993 = vmatpush1.msra.mxu0 %v1992
        %1994 = vmatprep.subr.mxu0 0.0
        %v1995 = vand.u32 %v424, 4294901760
        %1996 = vmatpush1.msra.mxu0 %v1995
        %1997 = vmatprep.subr.mxu0 0.0
        %v1998 = vand.u32 %v423, 4294901760
        %1999 = vmatpush1.msra.mxu0 %v1998
        %2000 = vmatprep.subr.mxu0 0.0
        %v2001 = vand.u32 %v422, 4294901760
        %2002 = vmatpush1.msra.mxu0 %v2001
        %2003 = vmatprep.subr.mxu0 0.0
        %v2004 = vand.u32 %v421, 4294901760
        %2005 = vmatpush1.msra.mxu0 %v2004
        %2006 = vmatprep.subr.mxu0 0.0
        %v2007 = vand.u32 %v420, 4294901760
        %2008 = vmatpush1.msra.mxu0 %v2007
        %2009 = vmatprep.subr.mxu0 0.0
        %v2010 = vand.u32 %v419, 4294901760
        %2011 = vmatpush1.msra.mxu0 %v2010
        %2012 = vmatprep.subr.mxu0 0.0
        %v2013 = vand.u32 %v418, 4294901760
        %2014 = vmatpush1.msra.mxu0 %v2013
        %2015 = vmatprep.subr.mxu0 0.0
        %v2016 = vand.u32 %v417, 4294901760
        %2017 = vmatpush1.msra.mxu0 %v2016
        %2018 = vmatprep.subr.mxu0 0.0
        %v2019 = vand.u32 %v416, 4294901760
        %2020 = vmatpush1.msra.mxu0 %v2019
        %2021 = vmatprep.subr.mxu0 0.0
        %v2022 = vand.u32 %v415, 4294901760
        %2023 = vmatpush1.msra.mxu0 %v2022
        %2024 = vmatprep.subr.mxu0 0.0
        %v2025 = vand.u32 %v414, 4294901760
        %2026 = vmatpush1.msra.mxu0 %v2025
        %2027 = vmatprep.subr.mxu0 0.0
        %v2028 = vand.u32 %v413, 4294901760
        %2029 = vmatpush1.msra.mxu0 %v2028
        %2030 = vmatprep.subr.mxu0 0.0
        %v2031 = vand.u32 %v412, 4294901760
        %2032 = vmatpush1.msra.mxu0 %v2031
        %2033 = vmatprep.subr.mxu0 0.0
        %v2034 = vand.u32 %v411, 4294901760
        %2035 = vmatpush1.msra.mxu0 %v2034
        %2036 = vmatprep.subr.mxu0 0.0
        %v2037 = vand.u32 %v410, 4294901760
        %2038 = vmatpush1.msra.mxu0 %v2037
        %2039 = vmatprep.subr.mxu0 0.0
        %v2040 = vand.u32 %v441, 4294901760
        %2041 = vmatpush2.msra.mxu0 %v2040
        %2042 = vmatprep.subr.mxu0 0.0
        %v2043 = vand.u32 %v440, 4294901760
        %2044 = vmatpush2.msra.mxu0 %v2043
        %2045 = vmatprep.subr.mxu0 0.0
        %v2046 = vand.u32 %v439, 4294901760
        %2047 = vmatpush2.msra.mxu0 %v2046
        %2048 = vmatprep.subr.mxu0 0.0
        %v2049 = vand.u32 %v438, 4294901760
        %2050 = vmatpush2.msra.mxu0 %v2049
        %2051 = vmatprep.subr.mxu0 0.0
        %v2052 = vand.u32 %v437, 4294901760
        %2053 = vmatpush2.msra.mxu0 %v2052
        %2054 = vmatprep.subr.mxu0 0.0
        %v2055 = vand.u32 %v436, 4294901760
        %2056 = vmatpush2.msra.mxu0 %v2055
        %2057 = vmatprep.subr.mxu0 0.0
        %v2058 = vand.u32 %v435, 4294901760
        %2059 = vmatpush2.msra.mxu0 %v2058
        %2060 = vmatprep.subr.mxu0 0.0
        %v2061 = vand.u32 %v434, 4294901760
        %2062 = vmatpush2.msra.mxu0 %v2061
        %2063 = vmatprep.subr.mxu0 0.0
        %v2064 = vand.u32 %v433, 4294901760
        %2065 = vmatpush2.msra.mxu0 %v2064
        %2066 = vmatprep.subr.mxu0 0.0
        %v2067 = vand.u32 %v432, 4294901760
        %2068 = vmatpush2.msra.mxu0 %v2067
        %2069 = vmatprep.subr.mxu0 0.0
        %v2070 = vand.u32 %v431, 4294901760
        %2071 = vmatpush2.msra.mxu0 %v2070
        %2072 = vmatprep.subr.mxu0 0.0
        %v2073 = vand.u32 %v430, 4294901760
        %2074 = vmatpush2.msra.mxu0 %v2073
        %2075 = vmatprep.subr.mxu0 0.0
        %v2076 = vand.u32 %v429, 4294901760
        %2077 = vmatpush2.msra.mxu0 %v2076
        %2078 = vmatprep.subr.mxu0 0.0
        %v2079 = vand.u32 %v428, 4294901760
        %2080 = vmatpush2.msra.mxu0 %v2079
        %2081 = vmatprep.subr.mxu0 0.0
        %v2082 = vand.u32 %v427, 4294901760
        %2083 = vmatpush2.msra.mxu0 %v2082
        %2084 = vmatprep.subr.mxu0 0.0
        %v2085 = vand.u32 %v426, 4294901760
        %2086 = vmatpush2.msra.mxu0 %v2085
        %v2087 = vand.u32 %v285, 4294901760
        %v2088 = vsub.f32 %v285, %v2087
        %v2089 = vand.u32 %v2088, 4294901760
        %v2090 = vsub.f32 %v2088, %v2089
        %v2091 = vand.u32 %v2090, 4294901760
        %2092 = vmatprep.mubr.f32.mxu0 %v2091
        %v2093 = vand.u32 %v284, 4294901760
        %v2094 = vsub.f32 %v284, %v2093
        %v2095 = vand.u32 %v2094, 4294901760
        %v2096 = vsub.f32 %v2094, %v2095
        %v2097 = vand.u32 %v2096, 4294901760
        %2098 = vmatmul.mubr.f32.gmra.mxu0 %v2097
        %v2099 = vpop.f32.mrf.mxu0
        %v2100 = vadd.f32 %v1911, %v2099
        %v2101 = vpop.f32.mrf.mxu0
        %v2102 = vand.u32 %v293, 4294901760
        %v2103 = vsub.f32 %v293, %v2102
        %v2104 = vand.u32 %v2103, 4294901760
        %v2105 = vsub.f32 %v2103, %v2104
        %v2106 = vand.u32 %v2105, 4294901760
        %2107 = vmatprep.mubr.f32.mxu0 %v2106
        %v2108 = vand.u32 %v292, 4294901760
        %v2109 = vsub.f32 %v292, %v2108
        %v2110 = vand.u32 %v2109, 4294901760
        %v2111 = vsub.f32 %v2109, %v2110
        %v2112 = vand.u32 %v2111, 4294901760
        %2113 = vmatmul.mubr.f32.gmra.mxu0 %v2112
        %v2114 = vpop.f32.mrf.mxu0
        %v2115 = vadd.f32 %v1918, %v2114
        %v2116 = vpop.f32.mrf.mxu0
        %v2117 = vand.u32 %v301, 4294901760
        %v2118 = vsub.f32 %v301, %v2117
        %v2119 = vand.u32 %v2118, 4294901760
        %v2120 = vsub.f32 %v2118, %v2119
        %v2121 = vand.u32 %v2120, 4294901760
        %2122 = vmatprep.mubr.f32.mxu0 %v2121
        %v2123 = vand.u32 %v300, 4294901760
        %v2124 = vsub.f32 %v300, %v2123
        %v2125 = vand.u32 %v2124, 4294901760
        %v2126 = vsub.f32 %v2124, %v2125
        %v2127 = vand.u32 %v2126, 4294901760
        %2128 = vmatmul.mubr.f32.gmra.mxu0 %v2127
        %v2129 = vpop.f32.mrf.mxu0
        %v2130 = vadd.f32 %v1925, %v2129
        %v2131 = vpop.f32.mrf.mxu0
        %v2132 = vand.u32 %v309, 4294901760
        %v2133 = vsub.f32 %v309, %v2132
        %v2134 = vand.u32 %v2133, 4294901760
        %v2135 = vsub.f32 %v2133, %v2134
        %v2136 = vand.u32 %v2135, 4294901760
        %2137 = vmatprep.mubr.f32.mxu0 %v2136
        %v2138 = vand.u32 %v308, 4294901760
        %v2139 = vsub.f32 %v308, %v2138
        %v2140 = vand.u32 %v2139, 4294901760
        %v2141 = vsub.f32 %v2139, %v2140
        %v2142 = vand.u32 %v2141, 4294901760
        %2143 = vmatmul.mubr.f32.gmra.mxu0 %v2142
        %v2144 = vpop.f32.mrf.mxu0
        %v2145 = vadd.f32 %v1932, %v2144
        %v2146 = vpop.f32.mrf.mxu0
        %v2147 = vand.u32 %v317, 4294901760
        %v2148 = vsub.f32 %v317, %v2147
        %v2149 = vand.u32 %v2148, 4294901760
        %v2150 = vsub.f32 %v2148, %v2149
        %v2151 = vand.u32 %v2150, 4294901760
        %2152 = vmatprep.mubr.f32.mxu0 %v2151
        %v2153 = vand.u32 %v316, 4294901760
        %v2154 = vsub.f32 %v316, %v2153
        %v2155 = vand.u32 %v2154, 4294901760
        %v2156 = vsub.f32 %v2154, %v2155
        %v2157 = vand.u32 %v2156, 4294901760
        %2158 = vmatmul.mubr.f32.gmra.mxu0 %v2157
        %v2159 = vpop.f32.mrf.mxu0
        %v2160 = vadd.f32 %v1939, %v2159
        %v2161 = vpop.f32.mrf.mxu0
        %v2162 = vand.u32 %v325, 4294901760
        %v2163 = vsub.f32 %v325, %v2162
        %v2164 = vand.u32 %v2163, 4294901760
        %v2165 = vsub.f32 %v2163, %v2164
        %v2166 = vand.u32 %v2165, 4294901760
        %2167 = vmatprep.mubr.f32.mxu0 %v2166
        %v2168 = vand.u32 %v324, 4294901760
        %v2169 = vsub.f32 %v324, %v2168
        %v2170 = vand.u32 %v2169, 4294901760
        %v2171 = vsub.f32 %v2169, %v2170
        %v2172 = vand.u32 %v2171, 4294901760
        %2173 = vmatmul.mubr.f32.gmra.mxu0 %v2172
        %v2174 = vpop.f32.mrf.mxu0
        %v2175 = vadd.f32 %v1946, %v2174
        %v2176 = vpop.f32.mrf.mxu0
        %v2177 = vand.u32 %v333, 4294901760
        %v2178 = vsub.f32 %v333, %v2177
        %v2179 = vand.u32 %v2178, 4294901760
        %v2180 = vsub.f32 %v2178, %v2179
        %v2181 = vand.u32 %v2180, 4294901760
        %2182 = vmatprep.mubr.f32.mxu0 %v2181
        %v2183 = vand.u32 %v332, 4294901760
        %v2184 = vsub.f32 %v332, %v2183
        %v2185 = vand.u32 %v2184, 4294901760
        %v2186 = vsub.f32 %v2184, %v2185
        %v2187 = vand.u32 %v2186, 4294901760
        %2188 = vmatmul.mubr.f32.gmra.mxu0 %v2187
        %v2189 = vpop.f32.mrf.mxu0
        %v2190 = vadd.f32 %v1953, %v2189
        %v2191 = vpop.f32.mrf.mxu0
        %v2192 = vand.u32 %v341, 4294901760
        %v2193 = vsub.f32 %v341, %v2192
        %v2194 = vand.u32 %v2193, 4294901760
        %v2195 = vsub.f32 %v2193, %v2194
        %v2196 = vand.u32 %v2195, 4294901760
        %2197 = vmatprep.mubr.f32.mxu0 %v2196
        %v2198 = vand.u32 %v340, 4294901760
        %v2199 = vsub.f32 %v340, %v2198
        %v2200 = vand.u32 %v2199, 4294901760
        %v2201 = vsub.f32 %v2199, %v2200
        %v2202 = vand.u32 %v2201, 4294901760
        %2203 = vmatmul.mubr.f32.gmra.mxu0 %v2202
        %v2204 = vpop.f32.mrf.mxu0
        %v2205 = vadd.f32 %v1960, %v2204
        %v2206 = vpop.f32.mrf.mxu0
        %v2207 = vand.u32 %v349, 4294901760
        %v2208 = vsub.f32 %v349, %v2207
        %v2209 = vand.u32 %v2208, 4294901760
        %v2210 = vsub.f32 %v2208, %v2209
        %v2211 = vand.u32 %v2210, 4294901760
        %2212 = vmatprep.mubr.f32.mxu0 %v2211
        %v2213 = vand.u32 %v348, 4294901760
        %v2214 = vsub.f32 %v348, %v2213
        %v2215 = vand.u32 %v2214, 4294901760
        %v2216 = vsub.f32 %v2214, %v2215
        %v2217 = vand.u32 %v2216, 4294901760
        %2218 = vmatmul.mubr.f32.gmra.mxu0 %v2217
        %v2219 = vpop.f32.mrf.mxu0
        %v2220 = vadd.f32 %v1967, %v2219
        %v2221 = vpop.f32.mrf.mxu0
        %v2222 = vand.u32 %v357, 4294901760
        %v2223 = vsub.f32 %v357, %v2222
        %v2224 = vand.u32 %v2223, 4294901760
        %v2225 = vsub.f32 %v2223, %v2224
        %v2226 = vand.u32 %v2225, 4294901760
        %2227 = vmatprep.mubr.f32.mxu0 %v2226
        %v2228 = vand.u32 %v356, 4294901760
        %v2229 = vsub.f32 %v356, %v2228
        %v2230 = vand.u32 %v2229, 4294901760
        %v2231 = vsub.f32 %v2229, %v2230
        %v2232 = vand.u32 %v2231, 4294901760
        %2233 = vmatmul.mubr.f32.gmra.mxu0 %v2232
        %v2234 = vpop.f32.mrf.mxu0
        %v2235 = vadd.f32 %v1974, %v2234
        %v2236 = vpop.f32.mrf.mxu0
        %v2237 = vand.u32 %v365, 4294901760
        %v2238 = vsub.f32 %v365, %v2237
        %v2239 = vand.u32 %v2238, 4294901760
        %v2240 = vsub.f32 %v2238, %v2239
        %v2241 = vand.u32 %v2240, 4294901760
        %2242 = vmatprep.mubr.f32.mxu0 %v2241
        %v2243 = vand.u32 %v364, 4294901760
        %v2244 = vsub.f32 %v364, %v2243
        %v2245 = vand.u32 %v2244, 4294901760
        %v2246 = vsub.f32 %v2244, %v2245
        %v2247 = vand.u32 %v2246, 4294901760
        %2248 = vmatmul.mubr.f32.gmra.mxu0 %v2247
        %v2249 = vpop.f32.mrf.mxu0
        %v2250 = vadd.f32 %v1981, %v2249
        %v2251 = vpop.f32.mrf.mxu0
        %v2252 = vand.u32 %v373, 4294901760
        %v2253 = vsub.f32 %v373, %v2252
        %v2254 = vand.u32 %v2253, 4294901760
        %v2255 = vsub.f32 %v2253, %v2254
        %v2256 = vand.u32 %v2255, 4294901760
        %2257 = vmatprep.mubr.f32.mxu0 %v2256
        %v2258 = vand.u32 %v372, 4294901760
        %v2259 = vsub.f32 %v372, %v2258
        %v2260 = vand.u32 %v2259, 4294901760
        %v2261 = vsub.f32 %v2259, %v2260
        %v2262 = vand.u32 %v2261, 4294901760
        %2263 = vmatmul.mubr.f32.gmra.mxu0 %v2262
        %v2264 = vpop.f32.mrf.mxu0
        %v2265 = vadd.f32 %v1988, %v2264
        %v2266 = vpop.f32.mrf.mxu0
        %2267 = vdwg.mxu0
        %2268 = vmatprep.subr.mxu0 0.0
        %v2269 = vand.u32 %v425, 4294901760
        %v2270 = vsub.f32 %v425, %v2269
        %v2271 = vand.u32 %v2270, 4294901760
        %v2272 = vsub.f32 %v2270, %v2271
        %v2273 = vand.u32 %v2272, 4294901760
        %2274 = vmatpush1.msra.mxu0 %v2273
        %2275 = vmatprep.subr.mxu0 0.0
        %v2276 = vand.u32 %v424, 4294901760
        %v2277 = vsub.f32 %v424, %v2276
        %v2278 = vand.u32 %v2277, 4294901760
        %v2279 = vsub.f32 %v2277, %v2278
        %v2280 = vand.u32 %v2279, 4294901760
        %2281 = vmatpush1.msra.mxu0 %v2280
        %2282 = vmatprep.subr.mxu0 0.0
        %v2283 = vand.u32 %v423, 4294901760
        %v2284 = vsub.f32 %v423, %v2283
        %v2285 = vand.u32 %v2284, 4294901760
        %v2286 = vsub.f32 %v2284, %v2285
        %v2287 = vand.u32 %v2286, 4294901760
        %2288 = vmatpush1.msra.mxu0 %v2287
        %2289 = vmatprep.subr.mxu0 0.0
        %v2290 = vand.u32 %v422, 4294901760
        %v2291 = vsub.f32 %v422, %v2290
        %v2292 = vand.u32 %v2291, 4294901760
        %v2293 = vsub.f32 %v2291, %v2292
        %v2294 = vand.u32 %v2293, 4294901760
        %2295 = vmatpush1.msra.mxu0 %v2294
        %2296 = vmatprep.subr.mxu0 0.0
        %v2297 = vand.u32 %v421, 4294901760
        %v2298 = vsub.f32 %v421, %v2297
        %v2299 = vand.u32 %v2298, 4294901760
        %v2300 = vsub.f32 %v2298, %v2299
        %v2301 = vand.u32 %v2300, 4294901760
        %2302 = vmatpush1.msra.mxu0 %v2301
        %2303 = vmatprep.subr.mxu0 0.0
        %v2304 = vand.u32 %v420, 4294901760
        %v2305 = vsub.f32 %v420, %v2304
        %v2306 = vand.u32 %v2305, 4294901760
        %v2307 = vsub.f32 %v2305, %v2306
        %v2308 = vand.u32 %v2307, 4294901760
        %2309 = vmatpush1.msra.mxu0 %v2308
        %2310 = vmatprep.subr.mxu0 0.0
        %v2311 = vand.u32 %v419, 4294901760
        %v2312 = vsub.f32 %v419, %v2311
        %v2313 = vand.u32 %v2312, 4294901760
        %v2314 = vsub.f32 %v2312, %v2313
        %v2315 = vand.u32 %v2314, 4294901760
        %2316 = vmatpush1.msra.mxu0 %v2315
        %2317 = vmatprep.subr.mxu0 0.0
        %v2318 = vand.u32 %v418, 4294901760
        %v2319 = vsub.f32 %v418, %v2318
        %v2320 = vand.u32 %v2319, 4294901760
        %v2321 = vsub.f32 %v2319, %v2320
        %v2322 = vand.u32 %v2321, 4294901760
        %2323 = vmatpush1.msra.mxu0 %v2322
        %2324 = vmatprep.subr.mxu0 0.0
        %v2325 = vand.u32 %v417, 4294901760
        %v2326 = vsub.f32 %v417, %v2325
        %v2327 = vand.u32 %v2326, 4294901760
        %v2328 = vsub.f32 %v2326, %v2327
        %v2329 = vand.u32 %v2328, 4294901760
        %2330 = vmatpush1.msra.mxu0 %v2329
        %2331 = vmatprep.subr.mxu0 0.0
        %v2332 = vand.u32 %v416, 4294901760
        %v2333 = vsub.f32 %v416, %v2332
        %v2334 = vand.u32 %v2333, 4294901760
        %v2335 = vsub.f32 %v2333, %v2334
        %v2336 = vand.u32 %v2335, 4294901760
        %2337 = vmatpush1.msra.mxu0 %v2336
        %2338 = vmatprep.subr.mxu0 0.0
        %v2339 = vand.u32 %v415, 4294901760
        %v2340 = vsub.f32 %v415, %v2339
        %v2341 = vand.u32 %v2340, 4294901760
        %v2342 = vsub.f32 %v2340, %v2341
        %v2343 = vand.u32 %v2342, 4294901760
        %2344 = vmatpush1.msra.mxu0 %v2343
        %2345 = vmatprep.subr.mxu0 0.0
        %v2346 = vand.u32 %v414, 4294901760
        %v2347 = vsub.f32 %v414, %v2346
        %v2348 = vand.u32 %v2347, 4294901760
        %v2349 = vsub.f32 %v2347, %v2348
        %v2350 = vand.u32 %v2349, 4294901760
        %2351 = vmatpush1.msra.mxu0 %v2350
        %2352 = vmatprep.subr.mxu0 0.0
        %v2353 = vand.u32 %v413, 4294901760
        %v2354 = vsub.f32 %v413, %v2353
        %v2355 = vand.u32 %v2354, 4294901760
        %v2356 = vsub.f32 %v2354, %v2355
        %v2357 = vand.u32 %v2356, 4294901760
        %2358 = vmatpush1.msra.mxu0 %v2357
        %2359 = vmatprep.subr.mxu0 0.0
        %v2360 = vand.u32 %v412, 4294901760
        %v2361 = vsub.f32 %v412, %v2360
        %v2362 = vand.u32 %v2361, 4294901760
        %v2363 = vsub.f32 %v2361, %v2362
        %v2364 = vand.u32 %v2363, 4294901760
        %2365 = vmatpush1.msra.mxu0 %v2364
        %2366 = vmatprep.subr.mxu0 0.0
        %v2367 = vand.u32 %v411, 4294901760
        %v2368 = vsub.f32 %v411, %v2367
        %v2369 = vand.u32 %v2368, 4294901760
        %v2370 = vsub.f32 %v2368, %v2369
        %v2371 = vand.u32 %v2370, 4294901760
        %2372 = vmatpush1.msra.mxu0 %v2371
        %2373 = vmatprep.subr.mxu0 0.0
        %v2374 = vand.u32 %v410, 4294901760
        %v2375 = vsub.f32 %v410, %v2374
        %v2376 = vand.u32 %v2375, 4294901760
        %v2377 = vsub.f32 %v2375, %v2376
        %v2378 = vand.u32 %v2377, 4294901760
        %2379 = vmatpush1.msra.mxu0 %v2378
        %2380 = vmatprep.subr.mxu0 0.0
        %v2381 = vand.u32 %v441, 4294901760
        %v2382 = vsub.f32 %v441, %v2381
        %v2383 = vand.u32 %v2382, 4294901760
        %v2384 = vsub.f32 %v2382, %v2383
        %v2385 = vand.u32 %v2384, 4294901760
        %2386 = vmatpush2.msra.mxu0 %v2385
        %2387 = vmatprep.subr.mxu0 0.0
        %v2388 = vand.u32 %v440, 4294901760
        %v2389 = vsub.f32 %v440, %v2388
        %v2390 = vand.u32 %v2389, 4294901760
        %v2391 = vsub.f32 %v2389, %v2390
        %v2392 = vand.u32 %v2391, 4294901760
        %2393 = vmatpush2.msra.mxu0 %v2392
        %2394 = vmatprep.subr.mxu0 0.0
        %v2395 = vand.u32 %v439, 4294901760
        %v2396 = vsub.f32 %v439, %v2395
        %v2397 = vand.u32 %v2396, 4294901760
        %v2398 = vsub.f32 %v2396, %v2397
        %v2399 = vand.u32 %v2398, 4294901760
        %2400 = vmatpush2.msra.mxu0 %v2399
        %2401 = vmatprep.subr.mxu0 0.0
        %v2402 = vand.u32 %v438, 4294901760
        %v2403 = vsub.f32 %v438, %v2402
        %v2404 = vand.u32 %v2403, 4294901760
        %v2405 = vsub.f32 %v2403, %v2404
        %v2406 = vand.u32 %v2405, 4294901760
        %2407 = vmatpush2.msra.mxu0 %v2406
        %2408 = vmatprep.subr.mxu0 0.0
        %v2409 = vand.u32 %v437, 4294901760
        %v2410 = vsub.f32 %v437, %v2409
        %v2411 = vand.u32 %v2410, 4294901760
        %v2412 = vsub.f32 %v2410, %v2411
        %v2413 = vand.u32 %v2412, 4294901760
        %2414 = vmatpush2.msra.mxu0 %v2413
        %2415 = vmatprep.subr.mxu0 0.0
        %v2416 = vand.u32 %v436, 4294901760
        %v2417 = vsub.f32 %v436, %v2416
        %v2418 = vand.u32 %v2417, 4294901760
        %v2419 = vsub.f32 %v2417, %v2418
        %v2420 = vand.u32 %v2419, 4294901760
        %2421 = vmatpush2.msra.mxu0 %v2420
        %2422 = vmatprep.subr.mxu0 0.0
        %v2423 = vand.u32 %v435, 4294901760
        %v2424 = vsub.f32 %v435, %v2423
        %v2425 = vand.u32 %v2424, 4294901760
        %v2426 = vsub.f32 %v2424, %v2425
        %v2427 = vand.u32 %v2426, 4294901760
        %2428 = vmatpush2.msra.mxu0 %v2427
        %2429 = vmatprep.subr.mxu0 0.0
        %v2430 = vand.u32 %v434, 4294901760
        %v2431 = vsub.f32 %v434, %v2430
        %v2432 = vand.u32 %v2431, 4294901760
        %v2433 = vsub.f32 %v2431, %v2432
        %v2434 = vand.u32 %v2433, 4294901760
        %2435 = vmatpush2.msra.mxu0 %v2434
        %2436 = vmatprep.subr.mxu0 0.0
        %v2437 = vand.u32 %v433, 4294901760
        %v2438 = vsub.f32 %v433, %v2437
        %v2439 = vand.u32 %v2438, 4294901760
        %v2440 = vsub.f32 %v2438, %v2439
        %v2441 = vand.u32 %v2440, 4294901760
        %2442 = vmatpush2.msra.mxu0 %v2441
        %2443 = vmatprep.subr.mxu0 0.0
        %v2444 = vand.u32 %v432, 4294901760
        %v2445 = vsub.f32 %v432, %v2444
        %v2446 = vand.u32 %v2445, 4294901760
        %v2447 = vsub.f32 %v2445, %v2446
        %v2448 = vand.u32 %v2447, 4294901760
        %2449 = vmatpush2.msra.mxu0 %v2448
        %2450 = vmatprep.subr.mxu0 0.0
        %v2451 = vand.u32 %v431, 4294901760
        %v2452 = vsub.f32 %v431, %v2451
        %v2453 = vand.u32 %v2452, 4294901760
        %v2454 = vsub.f32 %v2452, %v2453
        %v2455 = vand.u32 %v2454, 4294901760
        %2456 = vmatpush2.msra.mxu0 %v2455
        %2457 = vmatprep.subr.mxu0 0.0
        %v2458 = vand.u32 %v430, 4294901760
        %v2459 = vsub.f32 %v430, %v2458
        %v2460 = vand.u32 %v2459, 4294901760
        %v2461 = vsub.f32 %v2459, %v2460
        %v2462 = vand.u32 %v2461, 4294901760
        %2463 = vmatpush2.msra.mxu0 %v2462
        %2464 = vmatprep.subr.mxu0 0.0
        %v2465 = vand.u32 %v429, 4294901760
        %v2466 = vsub.f32 %v429, %v2465
        %v2467 = vand.u32 %v2466, 4294901760
        %v2468 = vsub.f32 %v2466, %v2467
        %v2469 = vand.u32 %v2468, 4294901760
        %2470 = vmatpush2.msra.mxu0 %v2469
        %2471 = vmatprep.subr.mxu0 0.0
        %v2472 = vand.u32 %v428, 4294901760
        %v2473 = vsub.f32 %v428, %v2472
        %v2474 = vand.u32 %v2473, 4294901760
        %v2475 = vsub.f32 %v2473, %v2474
        %v2476 = vand.u32 %v2475, 4294901760
        %2477 = vmatpush2.msra.mxu0 %v2476
        %2478 = vmatprep.subr.mxu0 0.0
        %v2479 = vand.u32 %v427, 4294901760
        %v2480 = vsub.f32 %v427, %v2479
        %v2481 = vand.u32 %v2480, 4294901760
        %v2482 = vsub.f32 %v2480, %v2481
        %v2483 = vand.u32 %v2482, 4294901760
        %2484 = vmatpush2.msra.mxu0 %v2483
        %2485 = vmatprep.subr.mxu0 0.0
        %v2486 = vand.u32 %v426, 4294901760
        %v2487 = vsub.f32 %v426, %v2486
        %v2488 = vand.u32 %v2487, 4294901760
        %v2489 = vsub.f32 %v2487, %v2488
        %v2490 = vand.u32 %v2489, 4294901760
        %2491 = vmatpush2.msra.mxu0 %v2490
        %v2492 = vand.u32 %v285, 4294901760
        %2493 = vmatprep.mubr.f32.mxu0 %v2492
        %v2494 = vand.u32 %v284, 4294901760
        %2495 = vmatmul.mubr.f32.gmra.mxu0 %v2494
        %v2496 = vpop.f32.mrf.mxu0
        %v2497 = vadd.f32 %v2100, %v2496
        %v2498 = vpop.f32.mrf.mxu0
        %v2499 = vand.u32 %v293, 4294901760
        %2500 = vmatprep.mubr.f32.mxu0 %v2499
        %v2501 = vand.u32 %v292, 4294901760
        %2502 = vmatmul.mubr.f32.gmra.mxu0 %v2501
        %v2503 = vpop.f32.mrf.mxu0
        %v2504 = vadd.f32 %v2115, %v2503
        %v2505 = vpop.f32.mrf.mxu0
        %v2506 = vand.u32 %v301, 4294901760
        %2507 = vmatprep.mubr.f32.mxu0 %v2506
        %v2508 = vand.u32 %v300, 4294901760
        %2509 = vmatmul.mubr.f32.gmra.mxu0 %v2508
        %v2510 = vpop.f32.mrf.mxu0
        %v2511 = vadd.f32 %v2130, %v2510
        %v2512 = vpop.f32.mrf.mxu0
        %v2513 = vand.u32 %v309, 4294901760
        %2514 = vmatprep.mubr.f32.mxu0 %v2513
        %v2515 = vand.u32 %v308, 4294901760
        %2516 = vmatmul.mubr.f32.gmra.mxu0 %v2515
        %v2517 = vpop.f32.mrf.mxu0
        %v2518 = vadd.f32 %v2145, %v2517
        %v2519 = vpop.f32.mrf.mxu0
        %v2520 = vand.u32 %v317, 4294901760
        %2521 = vmatprep.mubr.f32.mxu0 %v2520
        %v2522 = vand.u32 %v316, 4294901760
        %2523 = vmatmul.mubr.f32.gmra.mxu0 %v2522
        %v2524 = vpop.f32.mrf.mxu0
        %v2525 = vadd.f32 %v2160, %v2524
        %v2526 = vpop.f32.mrf.mxu0
        %v2527 = vand.u32 %v325, 4294901760
        %2528 = vmatprep.mubr.f32.mxu0 %v2527
        %v2529 = vand.u32 %v324, 4294901760
        %2530 = vmatmul.mubr.f32.gmra.mxu0 %v2529
        %v2531 = vpop.f32.mrf.mxu0
        %v2532 = vadd.f32 %v2175, %v2531
        %v2533 = vpop.f32.mrf.mxu0
        %v2534 = vand.u32 %v333, 4294901760
        %2535 = vmatprep.mubr.f32.mxu0 %v2534
        %v2536 = vand.u32 %v332, 4294901760
        %2537 = vmatmul.mubr.f32.gmra.mxu0 %v2536
        %v2538 = vpop.f32.mrf.mxu0
        %v2539 = vadd.f32 %v2190, %v2538
        %v2540 = vpop.f32.mrf.mxu0
        %v2541 = vand.u32 %v341, 4294901760
        %2542 = vmatprep.mubr.f32.mxu0 %v2541
        %v2543 = vand.u32 %v340, 4294901760
        %2544 = vmatmul.mubr.f32.gmra.mxu0 %v2543
        %v2545 = vpop.f32.mrf.mxu0
        %v2546 = vadd.f32 %v2205, %v2545
        %v2547 = vpop.f32.mrf.mxu0
        %v2548 = vand.u32 %v349, 4294901760
        %2549 = vmatprep.mubr.f32.mxu0 %v2548
        %v2550 = vand.u32 %v348, 4294901760
        %2551 = vmatmul.mubr.f32.gmra.mxu0 %v2550
        %v2552 = vpop.f32.mrf.mxu0
        %v2553 = vadd.f32 %v2220, %v2552
        %v2554 = vpop.f32.mrf.mxu0
        %v2555 = vand.u32 %v357, 4294901760
        %2556 = vmatprep.mubr.f32.mxu0 %v2555
        %v2557 = vand.u32 %v356, 4294901760
        %2558 = vmatmul.mubr.f32.gmra.mxu0 %v2557
        %v2559 = vpop.f32.mrf.mxu0
        %v2560 = vadd.f32 %v2235, %v2559
        %v2561 = vpop.f32.mrf.mxu0
        %v2562 = vand.u32 %v365, 4294901760
        %2563 = vmatprep.mubr.f32.mxu0 %v2562
        %v2564 = vand.u32 %v364, 4294901760
        %2565 = vmatmul.mubr.f32.gmra.mxu0 %v2564
        %v2566 = vpop.f32.mrf.mxu0
        %v2567 = vadd.f32 %v2250, %v2566
        %v2568 = vpop.f32.mrf.mxu0
        %v2569 = vand.u32 %v373, 4294901760
        %2570 = vmatprep.mubr.f32.mxu0 %v2569
        %v2571 = vand.u32 %v372, 4294901760
        %2572 = vmatmul.mubr.f32.gmra.mxu0 %v2571
        %v2573 = vpop.f32.mrf.mxu0
        %v2574 = vadd.f32 %v2265, %v2573
        %v2575 = vpop.f32.mrf.mxu0
        %2576 = vdwg.mxu0
        %2577 = vmatprep.subr.mxu0 0.0
        %v2578 = vand.u32 %v425, 4294901760
        %v2579 = vsub.f32 %v425, %v2578
        %2580 = vmatpush1.msra.mxu0 %v2579
        %2581 = vmatprep.subr.mxu0 0.0
        %v2582 = vand.u32 %v424, 4294901760
        %v2583 = vsub.f32 %v424, %v2582
        %2584 = vmatpush1.msra.mxu0 %v2583
        %2585 = vmatprep.subr.mxu0 0.0
        %v2586 = vand.u32 %v423, 4294901760
        %v2587 = vsub.f32 %v423, %v2586
        %2588 = vmatpush1.msra.mxu0 %v2587
        %2589 = vmatprep.subr.mxu0 0.0
        %v2590 = vand.u32 %v422, 4294901760
        %v2591 = vsub.f32 %v422, %v2590
        %2592 = vmatpush1.msra.mxu0 %v2591
        %2593 = vmatprep.subr.mxu0 0.0
        %v2594 = vand.u32 %v421, 4294901760
        %v2595 = vsub.f32 %v421, %v2594
        %2596 = vmatpush1.msra.mxu0 %v2595
        %2597 = vmatprep.subr.mxu0 0.0
        %v2598 = vand.u32 %v420, 4294901760
        %v2599 = vsub.f32 %v420, %v2598
        %2600 = vmatpush1.msra.mxu0 %v2599
        %2601 = vmatprep.subr.mxu0 0.0
        %v2602 = vand.u32 %v419, 4294901760
        %v2603 = vsub.f32 %v419, %v2602
        %2604 = vmatpush1.msra.mxu0 %v2603
        %2605 = vmatprep.subr.mxu0 0.0
        %v2606 = vand.u32 %v418, 4294901760
        %v2607 = vsub.f32 %v418, %v2606
        %2608 = vmatpush1.msra.mxu0 %v2607
        %2609 = vmatprep.subr.mxu0 0.0
        %v2610 = vand.u32 %v417, 4294901760
        %v2611 = vsub.f32 %v417, %v2610
        %2612 = vmatpush1.msra.mxu0 %v2611
        %2613 = vmatprep.subr.mxu0 0.0
        %v2614 = vand.u32 %v416, 4294901760
        %v2615 = vsub.f32 %v416, %v2614
        %2616 = vmatpush1.msra.mxu0 %v2615
        %2617 = vmatprep.subr.mxu0 0.0
        %v2618 = vand.u32 %v415, 4294901760
        %v2619 = vsub.f32 %v415, %v2618
        %2620 = vmatpush1.msra.mxu0 %v2619
        %2621 = vmatprep.subr.mxu0 0.0
        %v2622 = vand.u32 %v414, 4294901760
        %v2623 = vsub.f32 %v414, %v2622
        %2624 = vmatpush1.msra.mxu0 %v2623
        %2625 = vmatprep.subr.mxu0 0.0
        %v2626 = vand.u32 %v413, 4294901760
        %v2627 = vsub.f32 %v413, %v2626
        %2628 = vmatpush1.msra.mxu0 %v2627
        %2629 = vmatprep.subr.mxu0 0.0
        %v2630 = vand.u32 %v412, 4294901760
        %v2631 = vsub.f32 %v412, %v2630
        %2632 = vmatpush1.msra.mxu0 %v2631
        %2633 = vmatprep.subr.mxu0 0.0
        %v2634 = vand.u32 %v411, 4294901760
        %v2635 = vsub.f32 %v411, %v2634
        %2636 = vmatpush1.msra.mxu0 %v2635
        %2637 = vmatprep.subr.mxu0 0.0
        %v2638 = vand.u32 %v410, 4294901760
        %v2639 = vsub.f32 %v410, %v2638
        %2640 = vmatpush1.msra.mxu0 %v2639
        %2641 = vmatprep.subr.mxu0 0.0
        %v2642 = vand.u32 %v441, 4294901760
        %v2643 = vsub.f32 %v441, %v2642
        %2644 = vmatpush2.msra.mxu0 %v2643
        %2645 = vmatprep.subr.mxu0 0.0
        %v2646 = vand.u32 %v440, 4294901760
        %v2647 = vsub.f32 %v440, %v2646
        %2648 = vmatpush2.msra.mxu0 %v2647
        %2649 = vmatprep.subr.mxu0 0.0
        %v2650 = vand.u32 %v439, 4294901760
        %v2651 = vsub.f32 %v439, %v2650
        %2652 = vmatpush2.msra.mxu0 %v2651
        %2653 = vmatprep.subr.mxu0 0.0
        %v2654 = vand.u32 %v438, 4294901760
        %v2655 = vsub.f32 %v438, %v2654
        %2656 = vmatpush2.msra.mxu0 %v2655
        %2657 = vmatprep.subr.mxu0 0.0
        %v2658 = vand.u32 %v437, 4294901760
        %v2659 = vsub.f32 %v437, %v2658
        %2660 = vmatpush2.msra.mxu0 %v2659
        %2661 = vmatprep.subr.mxu0 0.0
        %v2662 = vand.u32 %v436, 4294901760
        %v2663 = vsub.f32 %v436, %v2662
        %2664 = vmatpush2.msra.mxu0 %v2663
        %2665 = vmatprep.subr.mxu0 0.0
        %v2666 = vand.u32 %v435, 4294901760
        %v2667 = vsub.f32 %v435, %v2666
        %2668 = vmatpush2.msra.mxu0 %v2667
        %2669 = vmatprep.subr.mxu0 0.0
        %v2670 = vand.u32 %v434, 4294901760
        %v2671 = vsub.f32 %v434, %v2670
        %2672 = vmatpush2.msra.mxu0 %v2671
        %2673 = vmatprep.subr.mxu0 0.0
        %v2674 = vand.u32 %v433, 4294901760
        %v2675 = vsub.f32 %v433, %v2674
        %2676 = vmatpush2.msra.mxu0 %v2675
        %2677 = vmatprep.subr.mxu0 0.0
        %v2678 = vand.u32 %v432, 4294901760
        %v2679 = vsub.f32 %v432, %v2678
        %2680 = vmatpush2.msra.mxu0 %v2679
        %2681 = vmatprep.subr.mxu0 0.0
        %v2682 = vand.u32 %v431, 4294901760
        %v2683 = vsub.f32 %v431, %v2682
        %2684 = vmatpush2.msra.mxu0 %v2683
        %2685 = vmatprep.subr.mxu0 0.0
        %v2686 = vand.u32 %v430, 4294901760
        %v2687 = vsub.f32 %v430, %v2686
        %2688 = vmatpush2.msra.mxu0 %v2687
        %2689 = vmatprep.subr.mxu0 0.0
        %v2690 = vand.u32 %v429, 4294901760
        %v2691 = vsub.f32 %v429, %v2690
        %2692 = vmatpush2.msra.mxu0 %v2691
        %2693 = vmatprep.subr.mxu0 0.0
        %v2694 = vand.u32 %v428, 4294901760
        %v2695 = vsub.f32 %v428, %v2694
        %2696 = vmatpush2.msra.mxu0 %v2695
        %2697 = vmatprep.subr.mxu0 0.0
        %v2698 = vand.u32 %v427, 4294901760
        %v2699 = vsub.f32 %v427, %v2698
        %2700 = vmatpush2.msra.mxu0 %v2699
        %2701 = vmatprep.subr.mxu0 0.0
        %v2702 = vand.u32 %v426, 4294901760
        %v2703 = vsub.f32 %v426, %v2702
        %2704 = vmatpush2.msra.mxu0 %v2703
        %v2705 = vand.u32 %v285, 4294901760
        %v2706 = vsub.f32 %v285, %v2705
        %2707 = vmatprep.mubr.f32.mxu0 %v2706
        %v2708 = vand.u32 %v284, 4294901760
        %v2709 = vsub.f32 %v284, %v2708
        %2710 = vmatmul.mubr.f32.gmra.mxu0 %v2709
        %v2711 = vpop.f32.mrf.mxu0
        %v2712 = vadd.f32 %v2497, %v2711
        %v2713 = vpop.f32.mrf.mxu0
        %v2714 = vand.u32 %v293, 4294901760
        %v2715 = vsub.f32 %v293, %v2714
        %2716 = vmatprep.mubr.f32.mxu0 %v2715
        %v2717 = vand.u32 %v292, 4294901760
        %v2718 = vsub.f32 %v292, %v2717
        %2719 = vmatmul.mubr.f32.gmra.mxu0 %v2718
        %v2720 = vpop.f32.mrf.mxu0
        %v2721 = vadd.f32 %v2504, %v2720
        %v2722 = vpop.f32.mrf.mxu0
        %v2723 = vand.u32 %v301, 4294901760
        %v2724 = vsub.f32 %v301, %v2723
        %2725 = vmatprep.mubr.f32.mxu0 %v2724
        %v2726 = vand.u32 %v300, 4294901760
        %v2727 = vsub.f32 %v300, %v2726
        %2728 = vmatmul.mubr.f32.gmra.mxu0 %v2727
        %v2729 = vpop.f32.mrf.mxu0
        %v2730 = vadd.f32 %v2511, %v2729
        %v2731 = vpop.f32.mrf.mxu0
        %v2732 = vand.u32 %v309, 4294901760
        %v2733 = vsub.f32 %v309, %v2732
        %2734 = vmatprep.mubr.f32.mxu0 %v2733
        %v2735 = vand.u32 %v308, 4294901760
        %v2736 = vsub.f32 %v308, %v2735
        %2737 = vmatmul.mubr.f32.gmra.mxu0 %v2736
        %v2738 = vpop.f32.mrf.mxu0
        %v2739 = vadd.f32 %v2518, %v2738
        %v2740 = vpop.f32.mrf.mxu0
        %v2741 = vand.u32 %v317, 4294901760
        %v2742 = vsub.f32 %v317, %v2741
        %2743 = vmatprep.mubr.f32.mxu0 %v2742
        %v2744 = vand.u32 %v316, 4294901760
        %v2745 = vsub.f32 %v316, %v2744
        %2746 = vmatmul.mubr.f32.gmra.mxu0 %v2745
        %v2747 = vpop.f32.mrf.mxu0
        %v2748 = vadd.f32 %v2525, %v2747
        %v2749 = vpop.f32.mrf.mxu0
        %v2750 = vand.u32 %v325, 4294901760
        %v2751 = vsub.f32 %v325, %v2750
        %2752 = vmatprep.mubr.f32.mxu0 %v2751
        %v2753 = vand.u32 %v324, 4294901760
        %v2754 = vsub.f32 %v324, %v2753
        %2755 = vmatmul.mubr.f32.gmra.mxu0 %v2754
        %v2756 = vpop.f32.mrf.mxu0
        %v2757 = vadd.f32 %v2532, %v2756
        %v2758 = vpop.f32.mrf.mxu0
        %v2759 = vand.u32 %v333, 4294901760
        %v2760 = vsub.f32 %v333, %v2759
        %2761 = vmatprep.mubr.f32.mxu0 %v2760
        %v2762 = vand.u32 %v332, 4294901760
        %v2763 = vsub.f32 %v332, %v2762
        %2764 = vmatmul.mubr.f32.gmra.mxu0 %v2763
        %v2765 = vpop.f32.mrf.mxu0
        %v2766 = vadd.f32 %v2539, %v2765
        %v2767 = vpop.f32.mrf.mxu0
        %v2768 = vand.u32 %v341, 4294901760
        %v2769 = vsub.f32 %v341, %v2768
        %2770 = vmatprep.mubr.f32.mxu0 %v2769
        %v2771 = vand.u32 %v340, 4294901760
        %v2772 = vsub.f32 %v340, %v2771
        %2773 = vmatmul.mubr.f32.gmra.mxu0 %v2772
        %v2774 = vpop.f32.mrf.mxu0
        %v2775 = vadd.f32 %v2546, %v2774
        %v2776 = vpop.f32.mrf.mxu0
        %v2777 = vand.u32 %v349, 4294901760
        %v2778 = vsub.f32 %v349, %v2777
        %2779 = vmatprep.mubr.f32.mxu0 %v2778
        %v2780 = vand.u32 %v348, 4294901760
        %v2781 = vsub.f32 %v348, %v2780
        %2782 = vmatmul.mubr.f32.gmra.mxu0 %v2781
        %v2783 = vpop.f32.mrf.mxu0
        %v2784 = vadd.f32 %v2553, %v2783
        %v2785 = vpop.f32.mrf.mxu0
        %v2786 = vand.u32 %v357, 4294901760
        %v2787 = vsub.f32 %v357, %v2786
        %2788 = vmatprep.mubr.f32.mxu0 %v2787
        %v2789 = vand.u32 %v356, 4294901760
        %v2790 = vsub.f32 %v356, %v2789
        %2791 = vmatmul.mubr.f32.gmra.mxu0 %v2790
        %v2792 = vpop.f32.mrf.mxu0
        %v2793 = vadd.f32 %v2560, %v2792
        %v2794 = vpop.f32.mrf.mxu0
        %v2795 = vand.u32 %v365, 4294901760
        %v2796 = vsub.f32 %v365, %v2795
        %2797 = vmatprep.mubr.f32.mxu0 %v2796
        %v2798 = vand.u32 %v364, 4294901760
        %v2799 = vsub.f32 %v364, %v2798
        %2800 = vmatmul.mubr.f32.gmra.mxu0 %v2799
        %v2801 = vpop.f32.mrf.mxu0
        %v2802 = vadd.f32 %v2567, %v2801
        %v2803 = vpop.f32.mrf.mxu0
        %v2804 = vand.u32 %v373, 4294901760
        %v2805 = vsub.f32 %v373, %v2804
        %2806 = vmatprep.mubr.f32.mxu0 %v2805
        %v2807 = vand.u32 %v372, 4294901760
        %v2808 = vsub.f32 %v372, %v2807
        %2809 = vmatmul.mubr.f32.gmra.mxu0 %v2808
        %v2810 = vpop.f32.mrf.mxu0
        %v2811 = vadd.f32 %v2574, %v2810
        %v2812 = vpop.f32.mrf.mxu0
        %2813 = vdwg.mxu0
        %2814 = vmatprep.subr.mxu0 0.0
        %v2815 = vand.u32 %v425, 4294901760
        %2816 = vmatpush1.msra.mxu0 %v2815
        %2817 = vmatprep.subr.mxu0 0.0
        %v2818 = vand.u32 %v424, 4294901760
        %2819 = vmatpush1.msra.mxu0 %v2818
        %2820 = vmatprep.subr.mxu0 0.0
        %v2821 = vand.u32 %v423, 4294901760
        %2822 = vmatpush1.msra.mxu0 %v2821
        %2823 = vmatprep.subr.mxu0 0.0
        %v2824 = vand.u32 %v422, 4294901760
        %2825 = vmatpush1.msra.mxu0 %v2824
        %2826 = vmatprep.subr.mxu0 0.0
        %v2827 = vand.u32 %v421, 4294901760
        %2828 = vmatpush1.msra.mxu0 %v2827
        %2829 = vmatprep.subr.mxu0 0.0
        %v2830 = vand.u32 %v420, 4294901760
        %2831 = vmatpush1.msra.mxu0 %v2830
        %2832 = vmatprep.subr.mxu0 0.0
        %v2833 = vand.u32 %v419, 4294901760
        %2834 = vmatpush1.msra.mxu0 %v2833
        %2835 = vmatprep.subr.mxu0 0.0
        %v2836 = vand.u32 %v418, 4294901760
        %2837 = vmatpush1.msra.mxu0 %v2836
        %2838 = vmatprep.subr.mxu0 0.0
        %v2839 = vand.u32 %v417, 4294901760
        %2840 = vmatpush1.msra.mxu0 %v2839
        %2841 = vmatprep.subr.mxu0 0.0
        %v2842 = vand.u32 %v416, 4294901760
        %2843 = vmatpush1.msra.mxu0 %v2842
        %2844 = vmatprep.subr.mxu0 0.0
        %v2845 = vand.u32 %v415, 4294901760
        %2846 = vmatpush1.msra.mxu0 %v2845
        %2847 = vmatprep.subr.mxu0 0.0
        %v2848 = vand.u32 %v414, 4294901760
        %2849 = vmatpush1.msra.mxu0 %v2848
        %2850 = vmatprep.subr.mxu0 0.0
        %v2851 = vand.u32 %v413, 4294901760
        %2852 = vmatpush1.msra.mxu0 %v2851
        %2853 = vmatprep.subr.mxu0 0.0
        %v2854 = vand.u32 %v412, 4294901760
        %2855 = vmatpush1.msra.mxu0 %v2854
        %2856 = vmatprep.subr.mxu0 0.0
        %v2857 = vand.u32 %v411, 4294901760
        %2858 = vmatpush1.msra.mxu0 %v2857
        %2859 = vmatprep.subr.mxu0 0.0
        %v2860 = vand.u32 %v410, 4294901760
        %2861 = vmatpush1.msra.mxu0 %v2860
        %2862 = vmatprep.subr.mxu0 0.0
        %v2863 = vand.u32 %v441, 4294901760
        %2864 = vmatpush2.msra.mxu0 %v2863
        %2865 = vmatprep.subr.mxu0 0.0
        %v2866 = vand.u32 %v440, 4294901760
        %2867 = vmatpush2.msra.mxu0 %v2866
        %2868 = vmatprep.subr.mxu0 0.0
        %v2869 = vand.u32 %v439, 4294901760
        %2870 = vmatpush2.msra.mxu0 %v2869
        %2871 = vmatprep.subr.mxu0 0.0
        %v2872 = vand.u32 %v438, 4294901760
        %2873 = vmatpush2.msra.mxu0 %v2872
        %2874 = vmatprep.subr.mxu0 0.0
        %v2875 = vand.u32 %v437, 4294901760
        %2876 = vmatpush2.msra.mxu0 %v2875
        %2877 = vmatprep.subr.mxu0 0.0
        %v2878 = vand.u32 %v436, 4294901760
        %2879 = vmatpush2.msra.mxu0 %v2878
        %2880 = vmatprep.subr.mxu0 0.0
        %v2881 = vand.u32 %v435, 4294901760
        %2882 = vmatpush2.msra.mxu0 %v2881
        %2883 = vmatprep.subr.mxu0 0.0
        %v2884 = vand.u32 %v434, 4294901760
        %2885 = vmatpush2.msra.mxu0 %v2884
        %2886 = vmatprep.subr.mxu0 0.0
        %v2887 = vand.u32 %v433, 4294901760
        %2888 = vmatpush2.msra.mxu0 %v2887
        %2889 = vmatprep.subr.mxu0 0.0
        %v2890 = vand.u32 %v432, 4294901760
        %2891 = vmatpush2.msra.mxu0 %v2890
        %2892 = vmatprep.subr.mxu0 0.0
        %v2893 = vand.u32 %v431, 4294901760
        %2894 = vmatpush2.msra.mxu0 %v2893
        %2895 = vmatprep.subr.mxu0 0.0
        %v2896 = vand.u32 %v430, 4294901760
        %2897 = vmatpush2.msra.mxu0 %v2896
        %2898 = vmatprep.subr.mxu0 0.0
        %v2899 = vand.u32 %v429, 4294901760
        %2900 = vmatpush2.msra.mxu0 %v2899
        %2901 = vmatprep.subr.mxu0 0.0
        %v2902 = vand.u32 %v428, 4294901760
        %2903 = vmatpush2.msra.mxu0 %v2902
        %2904 = vmatprep.subr.mxu0 0.0
        %v2905 = vand.u32 %v427, 4294901760
        %2906 = vmatpush2.msra.mxu0 %v2905
        %2907 = vmatprep.subr.mxu0 0.0
        %v2908 = vand.u32 %v426, 4294901760
        %2909 = vmatpush2.msra.mxu0 %v2908
        %v2910 = vand.u32 %v285, 4294901760
        %v2911 = vsub.f32 %v285, %v2910
        %v2912 = vand.u32 %v2911, 4294901760
        %2913 = vmatprep.mubr.f32.mxu0 %v2912
        %v2914 = vand.u32 %v284, 4294901760
        %v2915 = vsub.f32 %v284, %v2914
        %v2916 = vand.u32 %v2915, 4294901760
        %2917 = vmatmul.mubr.f32.gmra.mxu0 %v2916
        %v2918 = vpop.f32.mrf.mxu0
        %v2919 = vadd.f32 %v2712, %v2918
        %v2920 = vpop.f32.mrf.mxu0
        %v2921 = vand.u32 %v293, 4294901760
        %v2922 = vsub.f32 %v293, %v2921
        %v2923 = vand.u32 %v2922, 4294901760
        %2924 = vmatprep.mubr.f32.mxu0 %v2923
        %v2925 = vand.u32 %v292, 4294901760
        %v2926 = vsub.f32 %v292, %v2925
        %v2927 = vand.u32 %v2926, 4294901760
        %2928 = vmatmul.mubr.f32.gmra.mxu0 %v2927
        %v2929 = vpop.f32.mrf.mxu0
        %v2930 = vadd.f32 %v2721, %v2929
        %v2931 = vpop.f32.mrf.mxu0
        %v2932 = vand.u32 %v301, 4294901760
        %v2933 = vsub.f32 %v301, %v2932
        %v2934 = vand.u32 %v2933, 4294901760
        %2935 = vmatprep.mubr.f32.mxu0 %v2934
        %v2936 = vand.u32 %v300, 4294901760
        %v2937 = vsub.f32 %v300, %v2936
        %v2938 = vand.u32 %v2937, 4294901760
        %2939 = vmatmul.mubr.f32.gmra.mxu0 %v2938
        %v2940 = vpop.f32.mrf.mxu0
        %v2941 = vadd.f32 %v2730, %v2940
        %v2942 = vpop.f32.mrf.mxu0
        %v2943 = vand.u32 %v309, 4294901760
        %v2944 = vsub.f32 %v309, %v2943
        %v2945 = vand.u32 %v2944, 4294901760
        %2946 = vmatprep.mubr.f32.mxu0 %v2945
        %v2947 = vand.u32 %v308, 4294901760
        %v2948 = vsub.f32 %v308, %v2947
        %v2949 = vand.u32 %v2948, 4294901760
        %2950 = vmatmul.mubr.f32.gmra.mxu0 %v2949
        %v2951 = vpop.f32.mrf.mxu0
        %v2952 = vadd.f32 %v2739, %v2951
        %v2953 = vpop.f32.mrf.mxu0
        %v2954 = vand.u32 %v317, 4294901760
        %v2955 = vsub.f32 %v317, %v2954
        %v2956 = vand.u32 %v2955, 4294901760
        %2957 = vmatprep.mubr.f32.mxu0 %v2956
        %v2958 = vand.u32 %v316, 4294901760
        %v2959 = vsub.f32 %v316, %v2958
        %v2960 = vand.u32 %v2959, 4294901760
        %2961 = vmatmul.mubr.f32.gmra.mxu0 %v2960
        %v2962 = vpop.f32.mrf.mxu0
        %v2963 = vadd.f32 %v2748, %v2962
        %v2964 = vpop.f32.mrf.mxu0
        %v2965 = vand.u32 %v325, 4294901760
        %v2966 = vsub.f32 %v325, %v2965
        %v2967 = vand.u32 %v2966, 4294901760
        %2968 = vmatprep.mubr.f32.mxu0 %v2967
        %v2969 = vand.u32 %v324, 4294901760
        %v2970 = vsub.f32 %v324, %v2969
        %v2971 = vand.u32 %v2970, 4294901760
        %2972 = vmatmul.mubr.f32.gmra.mxu0 %v2971
        %v2973 = vpop.f32.mrf.mxu0
        %v2974 = vadd.f32 %v2757, %v2973
        %v2975 = vpop.f32.mrf.mxu0
        %v2976 = vand.u32 %v333, 4294901760
        %v2977 = vsub.f32 %v333, %v2976
        %v2978 = vand.u32 %v2977, 4294901760
        %2979 = vmatprep.mubr.f32.mxu0 %v2978
        %v2980 = vand.u32 %v332, 4294901760
        %v2981 = vsub.f32 %v332, %v2980
        %v2982 = vand.u32 %v2981, 4294901760
        %2983 = vmatmul.mubr.f32.gmra.mxu0 %v2982
        %v2984 = vpop.f32.mrf.mxu0
        %v2985 = vadd.f32 %v2766, %v2984
        %v2986 = vpop.f32.mrf.mxu0
        %v2987 = vand.u32 %v341, 4294901760
        %v2988 = vsub.f32 %v341, %v2987
        %v2989 = vand.u32 %v2988, 4294901760
        %2990 = vmatprep.mubr.f32.mxu0 %v2989
        %v2991 = vand.u32 %v340, 4294901760
        %v2992 = vsub.f32 %v340, %v2991
        %v2993 = vand.u32 %v2992, 4294901760
        %2994 = vmatmul.mubr.f32.gmra.mxu0 %v2993
        %v2995 = vpop.f32.mrf.mxu0
        %v2996 = vadd.f32 %v2775, %v2995
        %v2997 = vpop.f32.mrf.mxu0
        %v2998 = vand.u32 %v349, 4294901760
        %v2999 = vsub.f32 %v349, %v2998
        %v3000 = vand.u32 %v2999, 4294901760
        %3001 = vmatprep.mubr.f32.mxu0 %v3000
        %v3002 = vand.u32 %v348, 4294901760
        %v3003 = vsub.f32 %v348, %v3002
        %v3004 = vand.u32 %v3003, 4294901760
        %3005 = vmatmul.mubr.f32.gmra.mxu0 %v3004
        %v3006 = vpop.f32.mrf.mxu0
        %v3007 = vadd.f32 %v2784, %v3006
        %v3008 = vpop.f32.mrf.mxu0
        %v3009 = vand.u32 %v357, 4294901760
        %v3010 = vsub.f32 %v357, %v3009
        %v3011 = vand.u32 %v3010, 4294901760
        %3012 = vmatprep.mubr.f32.mxu0 %v3011
        %v3013 = vand.u32 %v356, 4294901760
        %v3014 = vsub.f32 %v356, %v3013
        %v3015 = vand.u32 %v3014, 4294901760
        %3016 = vmatmul.mubr.f32.gmra.mxu0 %v3015
        %v3017 = vpop.f32.mrf.mxu0
        %v3018 = vadd.f32 %v2793, %v3017
        %v3019 = vpop.f32.mrf.mxu0
        %v3020 = vand.u32 %v365, 4294901760
        %v3021 = vsub.f32 %v365, %v3020
        %v3022 = vand.u32 %v3021, 4294901760
        %3023 = vmatprep.mubr.f32.mxu0 %v3022
        %v3024 = vand.u32 %v364, 4294901760
        %v3025 = vsub.f32 %v364, %v3024
        %v3026 = vand.u32 %v3025, 4294901760
        %3027 = vmatmul.mubr.f32.gmra.mxu0 %v3026
        %v3028 = vpop.f32.mrf.mxu0
        %v3029 = vadd.f32 %v2802, %v3028
        %v3030 = vpop.f32.mrf.mxu0
        %v3031 = vand.u32 %v373, 4294901760
        %v3032 = vsub.f32 %v373, %v3031
        %v3033 = vand.u32 %v3032, 4294901760
        %3034 = vmatprep.mubr.f32.mxu0 %v3033
        %v3035 = vand.u32 %v372, 4294901760
        %v3036 = vsub.f32 %v372, %v3035
        %v3037 = vand.u32 %v3036, 4294901760
        %3038 = vmatmul.mubr.f32.gmra.mxu0 %v3037
        %v3039 = vpop.f32.mrf.mxu0
        %v3040 = vadd.f32 %v2811, %v3039
        %v3041 = vpop.f32.mrf.mxu0
        %3042 = vdwg.mxu0
        %3043 = vmatprep.subr.mxu0 0.0
        %v3044 = vand.u32 %v425, 4294901760
        %v3045 = vsub.f32 %v425, %v3044
        %v3046 = vand.u32 %v3045, 4294901760
        %3047 = vmatpush1.msra.mxu0 %v3046
        %3048 = vmatprep.subr.mxu0 0.0
        %v3049 = vand.u32 %v424, 4294901760
        %v3050 = vsub.f32 %v424, %v3049
        %v3051 = vand.u32 %v3050, 4294901760
        %3052 = vmatpush1.msra.mxu0 %v3051
        %3053 = vmatprep.subr.mxu0 0.0
        %v3054 = vand.u32 %v423, 4294901760
        %v3055 = vsub.f32 %v423, %v3054
        %v3056 = vand.u32 %v3055, 4294901760
        %3057 = vmatpush1.msra.mxu0 %v3056
        %3058 = vmatprep.subr.mxu0 0.0
        %v3059 = vand.u32 %v422, 4294901760
        %v3060 = vsub.f32 %v422, %v3059
        %v3061 = vand.u32 %v3060, 4294901760
        %3062 = vmatpush1.msra.mxu0 %v3061
        %3063 = vmatprep.subr.mxu0 0.0
        %v3064 = vand.u32 %v421, 4294901760
        %v3065 = vsub.f32 %v421, %v3064
        %v3066 = vand.u32 %v3065, 4294901760
        %3067 = vmatpush1.msra.mxu0 %v3066
        %3068 = vmatprep.subr.mxu0 0.0
        %v3069 = vand.u32 %v420, 4294901760
        %v3070 = vsub.f32 %v420, %v3069
        %v3071 = vand.u32 %v3070, 4294901760
        %3072 = vmatpush1.msra.mxu0 %v3071
        %3073 = vmatprep.subr.mxu0 0.0
        %v3074 = vand.u32 %v419, 4294901760
        %v3075 = vsub.f32 %v419, %v3074
        %v3076 = vand.u32 %v3075, 4294901760
        %3077 = vmatpush1.msra.mxu0 %v3076
        %3078 = vmatprep.subr.mxu0 0.0
        %v3079 = vand.u32 %v418, 4294901760
        %v3080 = vsub.f32 %v418, %v3079
        %v3081 = vand.u32 %v3080, 4294901760
        %3082 = vmatpush1.msra.mxu0 %v3081
        %3083 = vmatprep.subr.mxu0 0.0
        %v3084 = vand.u32 %v417, 4294901760
        %v3085 = vsub.f32 %v417, %v3084
        %v3086 = vand.u32 %v3085, 4294901760
        %3087 = vmatpush1.msra.mxu0 %v3086
        %3088 = vmatprep.subr.mxu0 0.0
        %v3089 = vand.u32 %v416, 4294901760
        %v3090 = vsub.f32 %v416, %v3089
        %v3091 = vand.u32 %v3090, 4294901760
        %3092 = vmatpush1.msra.mxu0 %v3091
        %3093 = vmatprep.subr.mxu0 0.0
        %v3094 = vand.u32 %v415, 4294901760
        %v3095 = vsub.f32 %v415, %v3094
        %v3096 = vand.u32 %v3095, 4294901760
        %3097 = vmatpush1.msra.mxu0 %v3096
        %3098 = vmatprep.subr.mxu0 0.0
        %v3099 = vand.u32 %v414, 4294901760
        %v3100 = vsub.f32 %v414, %v3099
        %v3101 = vand.u32 %v3100, 4294901760
        %3102 = vmatpush1.msra.mxu0 %v3101
        %3103 = vmatprep.subr.mxu0 0.0
        %v3104 = vand.u32 %v413, 4294901760
        %v3105 = vsub.f32 %v413, %v3104
        %v3106 = vand.u32 %v3105, 4294901760
        %3107 = vmatpush1.msra.mxu0 %v3106
        %3108 = vmatprep.subr.mxu0 0.0
        %v3109 = vand.u32 %v412, 4294901760
        %v3110 = vsub.f32 %v412, %v3109
        %v3111 = vand.u32 %v3110, 4294901760
        %3112 = vmatpush1.msra.mxu0 %v3111
        %3113 = vmatprep.subr.mxu0 0.0
        %v3114 = vand.u32 %v411, 4294901760
        %v3115 = vsub.f32 %v411, %v3114
        %v3116 = vand.u32 %v3115, 4294901760
        %3117 = vmatpush1.msra.mxu0 %v3116
        %3118 = vmatprep.subr.mxu0 0.0
        %v3119 = vand.u32 %v410, 4294901760
        %v3120 = vsub.f32 %v410, %v3119
        %v3121 = vand.u32 %v3120, 4294901760
        %3122 = vmatpush1.msra.mxu0 %v3121
        %3123 = vmatprep.subr.mxu0 0.0
        %v3124 = vand.u32 %v441, 4294901760
        %v3125 = vsub.f32 %v441, %v3124
        %v3126 = vand.u32 %v3125, 4294901760
        %3127 = vmatpush2.msra.mxu0 %v3126
        %3128 = vmatprep.subr.mxu0 0.0
        %v3129 = vand.u32 %v440, 4294901760
        %v3130 = vsub.f32 %v440, %v3129
        %v3131 = vand.u32 %v3130, 4294901760
        %3132 = vmatpush2.msra.mxu0 %v3131
        %3133 = vmatprep.subr.mxu0 0.0
        %v3134 = vand.u32 %v439, 4294901760
        %v3135 = vsub.f32 %v439, %v3134
        %v3136 = vand.u32 %v3135, 4294901760
        %3137 = vmatpush2.msra.mxu0 %v3136
        %3138 = vmatprep.subr.mxu0 0.0
        %v3139 = vand.u32 %v438, 4294901760
        %v3140 = vsub.f32 %v438, %v3139
        %v3141 = vand.u32 %v3140, 4294901760
        %3142 = vmatpush2.msra.mxu0 %v3141
        %3143 = vmatprep.subr.mxu0 0.0
        %v3144 = vand.u32 %v437, 4294901760
        %v3145 = vsub.f32 %v437, %v3144
        %v3146 = vand.u32 %v3145, 4294901760
        %3147 = vmatpush2.msra.mxu0 %v3146
        %3148 = vmatprep.subr.mxu0 0.0
        %v3149 = vand.u32 %v436, 4294901760
        %v3150 = vsub.f32 %v436, %v3149
        %v3151 = vand.u32 %v3150, 4294901760
        %3152 = vmatpush2.msra.mxu0 %v3151
        %3153 = vmatprep.subr.mxu0 0.0
        %v3154 = vand.u32 %v435, 4294901760
        %v3155 = vsub.f32 %v435, %v3154
        %v3156 = vand.u32 %v3155, 4294901760
        %3157 = vmatpush2.msra.mxu0 %v3156
        %3158 = vmatprep.subr.mxu0 0.0
        %v3159 = vand.u32 %v434, 4294901760
        %v3160 = vsub.f32 %v434, %v3159
        %v3161 = vand.u32 %v3160, 4294901760
        %3162 = vmatpush2.msra.mxu0 %v3161
        %3163 = vmatprep.subr.mxu0 0.0
        %v3164 = vand.u32 %v433, 4294901760
        %v3165 = vsub.f32 %v433, %v3164
        %v3166 = vand.u32 %v3165, 4294901760
        %3167 = vmatpush2.msra.mxu0 %v3166
        %3168 = vmatprep.subr.mxu0 0.0
        %v3169 = vand.u32 %v432, 4294901760
        %v3170 = vsub.f32 %v432, %v3169
        %v3171 = vand.u32 %v3170, 4294901760
        %3172 = vmatpush2.msra.mxu0 %v3171
        %3173 = vmatprep.subr.mxu0 0.0
        %v3174 = vand.u32 %v431, 4294901760
        %v3175 = vsub.f32 %v431, %v3174
        %v3176 = vand.u32 %v3175, 4294901760
        %3177 = vmatpush2.msra.mxu0 %v3176
        %3178 = vmatprep.subr.mxu0 0.0
        %v3179 = vand.u32 %v430, 4294901760
        %v3180 = vsub.f32 %v430, %v3179
        %v3181 = vand.u32 %v3180, 4294901760
        %3182 = vmatpush2.msra.mxu0 %v3181
        %3183 = vmatprep.subr.mxu0 0.0
        %v3184 = vand.u32 %v429, 4294901760
        %v3185 = vsub.f32 %v429, %v3184
        %v3186 = vand.u32 %v3185, 4294901760
        %3187 = vmatpush2.msra.mxu0 %v3186
        %3188 = vmatprep.subr.mxu0 0.0
        %v3189 = vand.u32 %v428, 4294901760
        %v3190 = vsub.f32 %v428, %v3189
        %v3191 = vand.u32 %v3190, 4294901760
        %3192 = vmatpush2.msra.mxu0 %v3191
        %3193 = vmatprep.subr.mxu0 0.0
        %v3194 = vand.u32 %v427, 4294901760
        %v3195 = vsub.f32 %v427, %v3194
        %v3196 = vand.u32 %v3195, 4294901760
        %3197 = vmatpush2.msra.mxu0 %v3196
        %3198 = vmatprep.subr.mxu0 0.0
        %v3199 = vand.u32 %v426, 4294901760
        %v3200 = vsub.f32 %v426, %v3199
        %v3201 = vand.u32 %v3200, 4294901760
        %3202 = vmatpush2.msra.mxu0 %v3201
        %v3203 = vand.u32 %v285, 4294901760
        %3204 = vmatprep.mubr.f32.mxu0 %v3203
        %v3205 = vand.u32 %v284, 4294901760
        %3206 = vmatmul.mubr.f32.gmra.mxu0 %v3205
        %v3207 = vpop.f32.mrf.mxu0
        %v3208 = vadd.f32 %v2919, %v3207
        %v3209 = vpop.f32.mrf.mxu0
        %v3210 = vand.u32 %v293, 4294901760
        %3211 = vmatprep.mubr.f32.mxu0 %v3210
        %v3212 = vand.u32 %v292, 4294901760
        %3213 = vmatmul.mubr.f32.gmra.mxu0 %v3212
        %v3214 = vpop.f32.mrf.mxu0
        %v3215 = vadd.f32 %v2930, %v3214
        %v3216 = vpop.f32.mrf.mxu0
        %v3217 = vand.u32 %v301, 4294901760
        %3218 = vmatprep.mubr.f32.mxu0 %v3217
        %v3219 = vand.u32 %v300, 4294901760
        %3220 = vmatmul.mubr.f32.gmra.mxu0 %v3219
        %v3221 = vpop.f32.mrf.mxu0
        %v3222 = vadd.f32 %v2941, %v3221
        %v3223 = vpop.f32.mrf.mxu0
        %v3224 = vand.u32 %v309, 4294901760
        %3225 = vmatprep.mubr.f32.mxu0 %v3224
        %v3226 = vand.u32 %v308, 4294901760
        %3227 = vmatmul.mubr.f32.gmra.mxu0 %v3226
        %v3228 = vpop.f32.mrf.mxu0
        %v3229 = vadd.f32 %v2952, %v3228
        %v3230 = vpop.f32.mrf.mxu0
        %v3231 = vand.u32 %v317, 4294901760
        %3232 = vmatprep.mubr.f32.mxu0 %v3231
        %v3233 = vand.u32 %v316, 4294901760
        %3234 = vmatmul.mubr.f32.gmra.mxu0 %v3233
        %v3235 = vpop.f32.mrf.mxu0
        %v3236 = vadd.f32 %v2963, %v3235
        %v3237 = vpop.f32.mrf.mxu0
        %v3238 = vand.u32 %v325, 4294901760
        %3239 = vmatprep.mubr.f32.mxu0 %v3238
        %v3240 = vand.u32 %v324, 4294901760
        %3241 = vmatmul.mubr.f32.gmra.mxu0 %v3240
        %v3242 = vpop.f32.mrf.mxu0
        %v3243 = vadd.f32 %v2974, %v3242
        %v3244 = vpop.f32.mrf.mxu0
        %v3245 = vand.u32 %v333, 4294901760
        %3246 = vmatprep.mubr.f32.mxu0 %v3245
        %v3247 = vand.u32 %v332, 4294901760
        %3248 = vmatmul.mubr.f32.gmra.mxu0 %v3247
        %v3249 = vpop.f32.mrf.mxu0
        %v3250 = vadd.f32 %v2985, %v3249
        %v3251 = vpop.f32.mrf.mxu0
        %v3252 = vand.u32 %v341, 4294901760
        %3253 = vmatprep.mubr.f32.mxu0 %v3252
        %v3254 = vand.u32 %v340, 4294901760
        %3255 = vmatmul.mubr.f32.gmra.mxu0 %v3254
        %v3256 = vpop.f32.mrf.mxu0
        %v3257 = vadd.f32 %v2996, %v3256
        %v3258 = vpop.f32.mrf.mxu0
        %v3259 = vand.u32 %v349, 4294901760
        %3260 = vmatprep.mubr.f32.mxu0 %v3259
        %v3261 = vand.u32 %v348, 4294901760
        %3262 = vmatmul.mubr.f32.gmra.mxu0 %v3261
        %v3263 = vpop.f32.mrf.mxu0
        %v3264 = vadd.f32 %v3007, %v3263
        %v3265 = vpop.f32.mrf.mxu0
        %v3266 = vand.u32 %v357, 4294901760
        %3267 = vmatprep.mubr.f32.mxu0 %v3266
        %v3268 = vand.u32 %v356, 4294901760
        %3269 = vmatmul.mubr.f32.gmra.mxu0 %v3268
        %v3270 = vpop.f32.mrf.mxu0
        %v3271 = vadd.f32 %v3018, %v3270
        %v3272 = vpop.f32.mrf.mxu0
        %v3273 = vand.u32 %v365, 4294901760
        %3274 = vmatprep.mubr.f32.mxu0 %v3273
        %v3275 = vand.u32 %v364, 4294901760
        %3276 = vmatmul.mubr.f32.gmra.mxu0 %v3275
        %v3277 = vpop.f32.mrf.mxu0
        %v3278 = vadd.f32 %v3029, %v3277
        %v3279 = vpop.f32.mrf.mxu0
        %v3280 = vand.u32 %v373, 4294901760
        %3281 = vmatprep.mubr.f32.mxu0 %v3280
        %v3282 = vand.u32 %v372, 4294901760
        %3283 = vmatmul.mubr.f32.gmra.mxu0 %v3282
        %v3284 = vpop.f32.mrf.mxu0
        %v3285 = vadd.f32 %v3040, %v3284
        %v3286 = vpop.f32.mrf.mxu0
        %3287 = vdwg.mxu0
        %3288 = vmatprep.subr.mxu0 0.0
        %v3289 = vand.u32 %v425, 4294901760
        %3290 = vmatpush1.msra.mxu0 %v3289
        %3291 = vmatprep.subr.mxu0 0.0
        %v3292 = vand.u32 %v424, 4294901760
        %3293 = vmatpush1.msra.mxu0 %v3292
        %3294 = vmatprep.subr.mxu0 0.0
        %v3295 = vand.u32 %v423, 4294901760
        %3296 = vmatpush1.msra.mxu0 %v3295
        %3297 = vmatprep.subr.mxu0 0.0
        %v3298 = vand.u32 %v422, 4294901760
        %3299 = vmatpush1.msra.mxu0 %v3298
        %3300 = vmatprep.subr.mxu0 0.0
        %v3301 = vand.u32 %v421, 4294901760
        %3302 = vmatpush1.msra.mxu0 %v3301
        %3303 = vmatprep.subr.mxu0 0.0
        %v3304 = vand.u32 %v420, 4294901760
        %3305 = vmatpush1.msra.mxu0 %v3304
        %3306 = vmatprep.subr.mxu0 0.0
        %v3307 = vand.u32 %v419, 4294901760
        %3308 = vmatpush1.msra.mxu0 %v3307
        %3309 = vmatprep.subr.mxu0 0.0
        %v3310 = vand.u32 %v418, 4294901760
        %3311 = vmatpush1.msra.mxu0 %v3310
        %3312 = vmatprep.subr.mxu0 0.0
        %v3313 = vand.u32 %v417, 4294901760
        %3314 = vmatpush1.msra.mxu0 %v3313
        %3315 = vmatprep.subr.mxu0 0.0
        %v3316 = vand.u32 %v416, 4294901760
        %3317 = vmatpush1.msra.mxu0 %v3316
        %3318 = vmatprep.subr.mxu0 0.0
        %v3319 = vand.u32 %v415, 4294901760
        %3320 = vmatpush1.msra.mxu0 %v3319
        %3321 = vmatprep.subr.mxu0 0.0
        %v3322 = vand.u32 %v414, 4294901760
        %3323 = vmatpush1.msra.mxu0 %v3322
        %3324 = vmatprep.subr.mxu0 0.0
        %v3325 = vand.u32 %v413, 4294901760
        %3326 = vmatpush1.msra.mxu0 %v3325
        %3327 = vmatprep.subr.mxu0 0.0
        %v3328 = vand.u32 %v412, 4294901760
        %3329 = vmatpush1.msra.mxu0 %v3328
        %3330 = vmatprep.subr.mxu0 0.0
        %v3331 = vand.u32 %v411, 4294901760
        %3332 = vmatpush1.msra.mxu0 %v3331
        %3333 = vmatprep.subr.mxu0 0.0
        %v3334 = vand.u32 %v410, 4294901760
        %3335 = vmatpush1.msra.mxu0 %v3334
        %3336 = vmatprep.subr.mxu0 0.0
        %v3337 = vand.u32 %v441, 4294901760
        %3338 = vmatpush2.msra.mxu0 %v3337
        %3339 = vmatprep.subr.mxu0 0.0
        %v3340 = vand.u32 %v440, 4294901760
        %3341 = vmatpush2.msra.mxu0 %v3340
        %3342 = vmatprep.subr.mxu0 0.0
        %v3343 = vand.u32 %v439, 4294901760
        %3344 = vmatpush2.msra.mxu0 %v3343
        %3345 = vmatprep.subr.mxu0 0.0
        %v3346 = vand.u32 %v438, 4294901760
        %3347 = vmatpush2.msra.mxu0 %v3346
        %3348 = vmatprep.subr.mxu0 0.0
        %v3349 = vand.u32 %v437, 4294901760
        %3350 = vmatpush2.msra.mxu0 %v3349
        %3351 = vmatprep.subr.mxu0 0.0
        %v3352 = vand.u32 %v436, 4294901760
        %3353 = vmatpush2.msra.mxu0 %v3352
        %3354 = vmatprep.subr.mxu0 0.0
        %v3355 = vand.u32 %v435, 4294901760
        %3356 = vmatpush2.msra.mxu0 %v3355
        %3357 = vmatprep.subr.mxu0 0.0
        %v3358 = vand.u32 %v434, 4294901760
        %3359 = vmatpush2.msra.mxu0 %v3358
        %3360 = vmatprep.subr.mxu0 0.0
        %v3361 = vand.u32 %v433, 4294901760
        %3362 = vmatpush2.msra.mxu0 %v3361
        %3363 = vmatprep.subr.mxu0 0.0
        %v3364 = vand.u32 %v432, 4294901760
        %3365 = vmatpush2.msra.mxu0 %v3364
        %3366 = vmatprep.subr.mxu0 0.0
        %v3367 = vand.u32 %v431, 4294901760
        %3368 = vmatpush2.msra.mxu0 %v3367
        %3369 = vmatprep.subr.mxu0 0.0
        %v3370 = vand.u32 %v430, 4294901760
        %3371 = vmatpush2.msra.mxu0 %v3370
        %3372 = vmatprep.subr.mxu0 0.0
        %v3373 = vand.u32 %v429, 4294901760
        %3374 = vmatpush2.msra.mxu0 %v3373
        %3375 = vmatprep.subr.mxu0 0.0
        %v3376 = vand.u32 %v428, 4294901760
        %3377 = vmatpush2.msra.mxu0 %v3376
        %3378 = vmatprep.subr.mxu0 0.0
        %v3379 = vand.u32 %v427, 4294901760
        %3380 = vmatpush2.msra.mxu0 %v3379
        %3381 = vmatprep.subr.mxu0 0.0
        %v3382 = vand.u32 %v426, 4294901760
        %3383 = vmatpush2.msra.mxu0 %v3382
        %v3384 = vand.u32 %v285, 4294901760
        %3385 = vmatprep.mubr.f32.mxu0 %v3384
        %v3386 = vand.u32 %v284, 4294901760
        %3387 = vmatmul.mubr.f32.gmra.mxu0 %v3386
        %v3388 = vpop.f32.mrf.mxu0
        %v3389 = vadd.f32 %v3208, %v3388
        %v3390 = vpop.f32.mrf.mxu0
        %v3391 = vand.u32 %v293, 4294901760
        %3392 = vmatprep.mubr.f32.mxu0 %v3391
        %v3393 = vand.u32 %v292, 4294901760
        %3394 = vmatmul.mubr.f32.gmra.mxu0 %v3393
        %v3395 = vpop.f32.mrf.mxu0
        %v3396 = vadd.f32 %v3215, %v3395
        %v3397 = vpop.f32.mrf.mxu0
        %v3398 = vand.u32 %v301, 4294901760
        %3399 = vmatprep.mubr.f32.mxu0 %v3398
        %v3400 = vand.u32 %v300, 4294901760
        %3401 = vmatmul.mubr.f32.gmra.mxu0 %v3400
        %v3402 = vpop.f32.mrf.mxu0
        %v3403 = vadd.f32 %v3222, %v3402
        %v3404 = vpop.f32.mrf.mxu0
        %v3405 = vand.u32 %v309, 4294901760
        %3406 = vmatprep.mubr.f32.mxu0 %v3405
        %v3407 = vand.u32 %v308, 4294901760
        %3408 = vmatmul.mubr.f32.gmra.mxu0 %v3407
        %v3409 = vpop.f32.mrf.mxu0
        %v3410 = vadd.f32 %v3229, %v3409
        %v3411 = vpop.f32.mrf.mxu0
        %v3412 = vand.u32 %v317, 4294901760
        %3413 = vmatprep.mubr.f32.mxu0 %v3412
        %v3414 = vand.u32 %v316, 4294901760
        %3415 = vmatmul.mubr.f32.gmra.mxu0 %v3414
        %v3416 = vpop.f32.mrf.mxu0
        %v3417 = vadd.f32 %v3236, %v3416
        %v3418 = vpop.f32.mrf.mxu0
        %v3419 = vand.u32 %v325, 4294901760
        %3420 = vmatprep.mubr.f32.mxu0 %v3419
        %v3421 = vand.u32 %v324, 4294901760
        %3422 = vmatmul.mubr.f32.gmra.mxu0 %v3421
        %v3423 = vpop.f32.mrf.mxu0
        %v3424 = vadd.f32 %v3243, %v3423
        %v3425 = vpop.f32.mrf.mxu0
        %v3426 = vand.u32 %v333, 4294901760
        %3427 = vmatprep.mubr.f32.mxu0 %v3426
        %v3428 = vand.u32 %v332, 4294901760
        %3429 = vmatmul.mubr.f32.gmra.mxu0 %v3428
        %v3430 = vpop.f32.mrf.mxu0
        %v3431 = vadd.f32 %v3250, %v3430
        %v3432 = vpop.f32.mrf.mxu0
        %v3433 = vand.u32 %v341, 4294901760
        %3434 = vmatprep.mubr.f32.mxu0 %v3433
        %v3435 = vand.u32 %v340, 4294901760
        %3436 = vmatmul.mubr.f32.gmra.mxu0 %v3435
        %v3437 = vpop.f32.mrf.mxu0
        %v3438 = vadd.f32 %v3257, %v3437
        %v3439 = vpop.f32.mrf.mxu0
        %v3440 = vand.u32 %v349, 4294901760
        %3441 = vmatprep.mubr.f32.mxu0 %v3440
        %v3442 = vand.u32 %v348, 4294901760
        %3443 = vmatmul.mubr.f32.gmra.mxu0 %v3442
        %v3444 = vpop.f32.mrf.mxu0
        %v3445 = vadd.f32 %v3264, %v3444
        %v3446 = vpop.f32.mrf.mxu0
        %v3447 = vand.u32 %v357, 4294901760
        %3448 = vmatprep.mubr.f32.mxu0 %v3447
        %v3449 = vand.u32 %v356, 4294901760
        %3450 = vmatmul.mubr.f32.gmra.mxu0 %v3449
        %v3451 = vpop.f32.mrf.mxu0
        %v3452 = vadd.f32 %v3271, %v3451
        %v3453 = vpop.f32.mrf.mxu0
        %v3454 = vand.u32 %v365, 4294901760
        %3455 = vmatprep.mubr.f32.mxu0 %v3454
        %v3456 = vand.u32 %v364, 4294901760
        %3457 = vmatmul.mubr.f32.gmra.mxu0 %v3456
        %v3458 = vpop.f32.mrf.mxu0
        %v3459 = vadd.f32 %v3278, %v3458
        %v3460 = vpop.f32.mrf.mxu0
        %v3461 = vand.u32 %v373, 4294901760
        %3462 = vmatprep.mubr.f32.mxu0 %v3461
        %v3463 = vand.u32 %v372, 4294901760
        %3464 = vmatmul.mubr.f32.gmra.mxu0 %v3463
        %v3465 = vpop.f32.mrf.mxu0
        %v3466 = vadd.f32 %v3285, %v3465
        %v3467 = vpop.f32.mrf.mxu0
        %3468 = vdwg.mxu0
        %3469 = vmatprep.subr.mxu0 0.0
        %v3470 = vand.u32 %v457, 4294901760
        %3471 = vmatpush1.msra.mxu0 %v3470
        %3472 = vmatprep.subr.mxu0 0.0
        %v3473 = vand.u32 %v456, 4294901760
        %3474 = vmatpush1.msra.mxu0 %v3473
        %3475 = vmatprep.subr.mxu0 0.0
        %v3476 = vand.u32 %v455, 4294901760
        %3477 = vmatpush1.msra.mxu0 %v3476
        %3478 = vmatprep.subr.mxu0 0.0
        %v3479 = vand.u32 %v454, 4294901760
        %3480 = vmatpush1.msra.mxu0 %v3479
        %3481 = vmatprep.subr.mxu0 0.0
        %v3482 = vand.u32 %v453, 4294901760
        %3483 = vmatpush1.msra.mxu0 %v3482
        %3484 = vmatprep.subr.mxu0 0.0
        %v3485 = vand.u32 %v452, 4294901760
        %3486 = vmatpush1.msra.mxu0 %v3485
        %3487 = vmatprep.subr.mxu0 0.0
        %v3488 = vand.u32 %v451, 4294901760
        %3489 = vmatpush1.msra.mxu0 %v3488
        %3490 = vmatprep.subr.mxu0 0.0
        %v3491 = vand.u32 %v450, 4294901760
        %3492 = vmatpush1.msra.mxu0 %v3491
        %3493 = vmatprep.subr.mxu0 0.0
        %v3494 = vand.u32 %v449, 4294901760
        %3495 = vmatpush1.msra.mxu0 %v3494
        %3496 = vmatprep.subr.mxu0 0.0
        %v3497 = vand.u32 %v448, 4294901760
        %3498 = vmatpush1.msra.mxu0 %v3497
        %3499 = vmatprep.subr.mxu0 0.0
        %v3500 = vand.u32 %v447, 4294901760
        %3501 = vmatpush1.msra.mxu0 %v3500
        %3502 = vmatprep.subr.mxu0 0.0
        %v3503 = vand.u32 %v446, 4294901760
        %3504 = vmatpush1.msra.mxu0 %v3503
        %3505 = vmatprep.subr.mxu0 0.0
        %v3506 = vand.u32 %v445, 4294901760
        %3507 = vmatpush1.msra.mxu0 %v3506
        %3508 = vmatprep.subr.mxu0 0.0
        %v3509 = vand.u32 %v444, 4294901760
        %3510 = vmatpush1.msra.mxu0 %v3509
        %3511 = vmatprep.subr.mxu0 0.0
        %v3512 = vand.u32 %v443, 4294901760
        %3513 = vmatpush1.msra.mxu0 %v3512
        %3514 = vmatprep.subr.mxu0 0.0
        %v3515 = vand.u32 %v442, 4294901760
        %3516 = vmatpush1.msra.mxu0 %v3515
        %3517 = vmatprep.subr.mxu0 0.0
        %v3518 = vand.u32 %v473, 4294901760
        %3519 = vmatpush2.msra.mxu0 %v3518
        %3520 = vmatprep.subr.mxu0 0.0
        %v3521 = vand.u32 %v472, 4294901760
        %3522 = vmatpush2.msra.mxu0 %v3521
        %3523 = vmatprep.subr.mxu0 0.0
        %v3524 = vand.u32 %v471, 4294901760
        %3525 = vmatpush2.msra.mxu0 %v3524
        %3526 = vmatprep.subr.mxu0 0.0
        %v3527 = vand.u32 %v470, 4294901760
        %3528 = vmatpush2.msra.mxu0 %v3527
        %3529 = vmatprep.subr.mxu0 0.0
        %v3530 = vand.u32 %v469, 4294901760
        %3531 = vmatpush2.msra.mxu0 %v3530
        %3532 = vmatprep.subr.mxu0 0.0
        %v3533 = vand.u32 %v468, 4294901760
        %3534 = vmatpush2.msra.mxu0 %v3533
        %3535 = vmatprep.subr.mxu0 0.0
        %v3536 = vand.u32 %v467, 4294901760
        %3537 = vmatpush2.msra.mxu0 %v3536
        %3538 = vmatprep.subr.mxu0 0.0
        %v3539 = vand.u32 %v466, 4294901760
        %3540 = vmatpush2.msra.mxu0 %v3539
        %3541 = vmatprep.subr.mxu0 0.0
        %v3542 = vand.u32 %v465, 4294901760
        %3543 = vmatpush2.msra.mxu0 %v3542
        %3544 = vmatprep.subr.mxu0 0.0
        %v3545 = vand.u32 %v464, 4294901760
        %3546 = vmatpush2.msra.mxu0 %v3545
        %3547 = vmatprep.subr.mxu0 0.0
        %v3548 = vand.u32 %v463, 4294901760
        %3549 = vmatpush2.msra.mxu0 %v3548
        %3550 = vmatprep.subr.mxu0 0.0
        %v3551 = vand.u32 %v462, 4294901760
        %3552 = vmatpush2.msra.mxu0 %v3551
        %3553 = vmatprep.subr.mxu0 0.0
        %v3554 = vand.u32 %v461, 4294901760
        %3555 = vmatpush2.msra.mxu0 %v3554
        %3556 = vmatprep.subr.mxu0 0.0
        %v3557 = vand.u32 %v460, 4294901760
        %3558 = vmatpush2.msra.mxu0 %v3557
        %3559 = vmatprep.subr.mxu0 0.0
        %v3560 = vand.u32 %v459, 4294901760
        %3561 = vmatpush2.msra.mxu0 %v3560
        %3562 = vmatprep.subr.mxu0 0.0
        %v3563 = vand.u32 %v458, 4294901760
        %3564 = vmatpush2.msra.mxu0 %v3563
        %v3565 = vand.u32 %v287, 4294901760
        %v3566 = vsub.f32 %v287, %v3565
        %v3567 = vand.u32 %v3566, 4294901760
        %v3568 = vsub.f32 %v3566, %v3567
        %v3569 = vand.u32 %v3568, 4294901760
        %3570 = vmatprep.mubr.f32.mxu0 %v3569
        %v3571 = vand.u32 %v286, 4294901760
        %v3572 = vsub.f32 %v286, %v3571
        %v3573 = vand.u32 %v3572, 4294901760
        %v3574 = vsub.f32 %v3572, %v3573
        %v3575 = vand.u32 %v3574, 4294901760
        %3576 = vmatmul.mubr.f32.gmra.mxu0 %v3575
        %v3577 = vpop.f32.mrf.mxu0
        %v3578 = vadd.f32 %v3389, %v3577
        %v3579 = vpop.f32.mrf.mxu0
        %v3580 = vand.u32 %v295, 4294901760
        %v3581 = vsub.f32 %v295, %v3580
        %v3582 = vand.u32 %v3581, 4294901760
        %v3583 = vsub.f32 %v3581, %v3582
        %v3584 = vand.u32 %v3583, 4294901760
        %3585 = vmatprep.mubr.f32.mxu0 %v3584
        %v3586 = vand.u32 %v294, 4294901760
        %v3587 = vsub.f32 %v294, %v3586
        %v3588 = vand.u32 %v3587, 4294901760
        %v3589 = vsub.f32 %v3587, %v3588
        %v3590 = vand.u32 %v3589, 4294901760
        %3591 = vmatmul.mubr.f32.gmra.mxu0 %v3590
        %v3592 = vpop.f32.mrf.mxu0
        %v3593 = vadd.f32 %v3396, %v3592
        %v3594 = vpop.f32.mrf.mxu0
        %v3595 = vand.u32 %v303, 4294901760
        %v3596 = vsub.f32 %v303, %v3595
        %v3597 = vand.u32 %v3596, 4294901760
        %v3598 = vsub.f32 %v3596, %v3597
        %v3599 = vand.u32 %v3598, 4294901760
        %3600 = vmatprep.mubr.f32.mxu0 %v3599
        %v3601 = vand.u32 %v302, 4294901760
        %v3602 = vsub.f32 %v302, %v3601
        %v3603 = vand.u32 %v3602, 4294901760
        %v3604 = vsub.f32 %v3602, %v3603
        %v3605 = vand.u32 %v3604, 4294901760
        %3606 = vmatmul.mubr.f32.gmra.mxu0 %v3605
        %v3607 = vpop.f32.mrf.mxu0
        %v3608 = vadd.f32 %v3403, %v3607
        %v3609 = vpop.f32.mrf.mxu0
        %v3610 = vand.u32 %v311, 4294901760
        %v3611 = vsub.f32 %v311, %v3610
        %v3612 = vand.u32 %v3611, 4294901760
        %v3613 = vsub.f32 %v3611, %v3612
        %v3614 = vand.u32 %v3613, 4294901760
        %3615 = vmatprep.mubr.f32.mxu0 %v3614
        %v3616 = vand.u32 %v310, 4294901760
        %v3617 = vsub.f32 %v310, %v3616
        %v3618 = vand.u32 %v3617, 4294901760
        %v3619 = vsub.f32 %v3617, %v3618
        %v3620 = vand.u32 %v3619, 4294901760
        %3621 = vmatmul.mubr.f32.gmra.mxu0 %v3620
        %v3622 = vpop.f32.mrf.mxu0
        %v3623 = vadd.f32 %v3410, %v3622
        %v3624 = vpop.f32.mrf.mxu0
        %v3625 = vand.u32 %v319, 4294901760
        %v3626 = vsub.f32 %v319, %v3625
        %v3627 = vand.u32 %v3626, 4294901760
        %v3628 = vsub.f32 %v3626, %v3627
        %v3629 = vand.u32 %v3628, 4294901760
        %3630 = vmatprep.mubr.f32.mxu0 %v3629
        %v3631 = vand.u32 %v318, 4294901760
        %v3632 = vsub.f32 %v318, %v3631
        %v3633 = vand.u32 %v3632, 4294901760
        %v3634 = vsub.f32 %v3632, %v3633
        %v3635 = vand.u32 %v3634, 4294901760
        %3636 = vmatmul.mubr.f32.gmra.mxu0 %v3635
        %v3637 = vpop.f32.mrf.mxu0
        %v3638 = vadd.f32 %v3417, %v3637
        %v3639 = vpop.f32.mrf.mxu0
        %v3640 = vand.u32 %v327, 4294901760
        %v3641 = vsub.f32 %v327, %v3640
        %v3642 = vand.u32 %v3641, 4294901760
        %v3643 = vsub.f32 %v3641, %v3642
        %v3644 = vand.u32 %v3643, 4294901760
        %3645 = vmatprep.mubr.f32.mxu0 %v3644
        %v3646 = vand.u32 %v326, 4294901760
        %v3647 = vsub.f32 %v326, %v3646
        %v3648 = vand.u32 %v3647, 4294901760
        %v3649 = vsub.f32 %v3647, %v3648
        %v3650 = vand.u32 %v3649, 4294901760
        %3651 = vmatmul.mubr.f32.gmra.mxu0 %v3650
        %v3652 = vpop.f32.mrf.mxu0
        %v3653 = vadd.f32 %v3424, %v3652
        %v3654 = vpop.f32.mrf.mxu0
        %v3655 = vand.u32 %v335, 4294901760
        %v3656 = vsub.f32 %v335, %v3655
        %v3657 = vand.u32 %v3656, 4294901760
        %v3658 = vsub.f32 %v3656, %v3657
        %v3659 = vand.u32 %v3658, 4294901760
        %3660 = vmatprep.mubr.f32.mxu0 %v3659
        %v3661 = vand.u32 %v334, 4294901760
        %v3662 = vsub.f32 %v334, %v3661
        %v3663 = vand.u32 %v3662, 4294901760
        %v3664 = vsub.f32 %v3662, %v3663
        %v3665 = vand.u32 %v3664, 4294901760
        %3666 = vmatmul.mubr.f32.gmra.mxu0 %v3665
        %v3667 = vpop.f32.mrf.mxu0
        %v3668 = vadd.f32 %v3431, %v3667
        %v3669 = vpop.f32.mrf.mxu0
        %v3670 = vand.u32 %v343, 4294901760
        %v3671 = vsub.f32 %v343, %v3670
        %v3672 = vand.u32 %v3671, 4294901760
        %v3673 = vsub.f32 %v3671, %v3672
        %v3674 = vand.u32 %v3673, 4294901760
        %3675 = vmatprep.mubr.f32.mxu0 %v3674
        %v3676 = vand.u32 %v342, 4294901760
        %v3677 = vsub.f32 %v342, %v3676
        %v3678 = vand.u32 %v3677, 4294901760
        %v3679 = vsub.f32 %v3677, %v3678
        %v3680 = vand.u32 %v3679, 4294901760
        %3681 = vmatmul.mubr.f32.gmra.mxu0 %v3680
        %v3682 = vpop.f32.mrf.mxu0
        %v3683 = vadd.f32 %v3438, %v3682
        %v3684 = vpop.f32.mrf.mxu0
        %v3685 = vand.u32 %v351, 4294901760
        %v3686 = vsub.f32 %v351, %v3685
        %v3687 = vand.u32 %v3686, 4294901760
        %v3688 = vsub.f32 %v3686, %v3687
        %v3689 = vand.u32 %v3688, 4294901760
        %3690 = vmatprep.mubr.f32.mxu0 %v3689
        %v3691 = vand.u32 %v350, 4294901760
        %v3692 = vsub.f32 %v350, %v3691
        %v3693 = vand.u32 %v3692, 4294901760
        %v3694 = vsub.f32 %v3692, %v3693
        %v3695 = vand.u32 %v3694, 4294901760
        %3696 = vmatmul.mubr.f32.gmra.mxu0 %v3695
        %v3697 = vpop.f32.mrf.mxu0
        %v3698 = vadd.f32 %v3445, %v3697
        %v3699 = vpop.f32.mrf.mxu0
        %v3700 = vand.u32 %v359, 4294901760
        %v3701 = vsub.f32 %v359, %v3700
        %v3702 = vand.u32 %v3701, 4294901760
        %v3703 = vsub.f32 %v3701, %v3702
        %v3704 = vand.u32 %v3703, 4294901760
        %3705 = vmatprep.mubr.f32.mxu0 %v3704
        %v3706 = vand.u32 %v358, 4294901760
        %v3707 = vsub.f32 %v358, %v3706
        %v3708 = vand.u32 %v3707, 4294901760
        %v3709 = vsub.f32 %v3707, %v3708
        %v3710 = vand.u32 %v3709, 4294901760
        %3711 = vmatmul.mubr.f32.gmra.mxu0 %v3710
        %v3712 = vpop.f32.mrf.mxu0
        %v3713 = vadd.f32 %v3452, %v3712
        %v3714 = vpop.f32.mrf.mxu0
        %v3715 = vand.u32 %v367, 4294901760
        %v3716 = vsub.f32 %v367, %v3715
        %v3717 = vand.u32 %v3716, 4294901760
        %v3718 = vsub.f32 %v3716, %v3717
        %v3719 = vand.u32 %v3718, 4294901760
        %3720 = vmatprep.mubr.f32.mxu0 %v3719
        %v3721 = vand.u32 %v366, 4294901760
        %v3722 = vsub.f32 %v366, %v3721
        %v3723 = vand.u32 %v3722, 4294901760
        %v3724 = vsub.f32 %v3722, %v3723
        %v3725 = vand.u32 %v3724, 4294901760
        %3726 = vmatmul.mubr.f32.gmra.mxu0 %v3725
        %v3727 = vpop.f32.mrf.mxu0
        %v3728 = vadd.f32 %v3459, %v3727
        %v3729 = vpop.f32.mrf.mxu0
        %v3730 = vand.u32 %v375, 4294901760
        %v3731 = vsub.f32 %v375, %v3730
        %v3732 = vand.u32 %v3731, 4294901760
        %v3733 = vsub.f32 %v3731, %v3732
        %v3734 = vand.u32 %v3733, 4294901760
        %3735 = vmatprep.mubr.f32.mxu0 %v3734
        %v3736 = vand.u32 %v374, 4294901760
        %v3737 = vsub.f32 %v374, %v3736
        %v3738 = vand.u32 %v3737, 4294901760
        %v3739 = vsub.f32 %v3737, %v3738
        %v3740 = vand.u32 %v3739, 4294901760
        %3741 = vmatmul.mubr.f32.gmra.mxu0 %v3740
        %v3742 = vpop.f32.mrf.mxu0
        %v3743 = vadd.f32 %v3466, %v3742
        %v3744 = vpop.f32.mrf.mxu0
        %3745 = vdwg.mxu0
        %3746 = vmatprep.subr.mxu0 0.0
        %v3747 = vand.u32 %v457, 4294901760
        %v3748 = vsub.f32 %v457, %v3747
        %v3749 = vand.u32 %v3748, 4294901760
        %v3750 = vsub.f32 %v3748, %v3749
        %v3751 = vand.u32 %v3750, 4294901760
        %3752 = vmatpush1.msra.mxu0 %v3751
        %3753 = vmatprep.subr.mxu0 0.0
        %v3754 = vand.u32 %v456, 4294901760
        %v3755 = vsub.f32 %v456, %v3754
        %v3756 = vand.u32 %v3755, 4294901760
        %v3757 = vsub.f32 %v3755, %v3756
        %v3758 = vand.u32 %v3757, 4294901760
        %3759 = vmatpush1.msra.mxu0 %v3758
        %3760 = vmatprep.subr.mxu0 0.0
        %v3761 = vand.u32 %v455, 4294901760
        %v3762 = vsub.f32 %v455, %v3761
        %v3763 = vand.u32 %v3762, 4294901760
        %v3764 = vsub.f32 %v3762, %v3763
        %v3765 = vand.u32 %v3764, 4294901760
        %3766 = vmatpush1.msra.mxu0 %v3765
        %3767 = vmatprep.subr.mxu0 0.0
        %v3768 = vand.u32 %v454, 4294901760
        %v3769 = vsub.f32 %v454, %v3768
        %v3770 = vand.u32 %v3769, 4294901760
        %v3771 = vsub.f32 %v3769, %v3770
        %v3772 = vand.u32 %v3771, 4294901760
        %3773 = vmatpush1.msra.mxu0 %v3772
        %3774 = vmatprep.subr.mxu0 0.0
        %v3775 = vand.u32 %v453, 4294901760
        %v3776 = vsub.f32 %v453, %v3775
        %v3777 = vand.u32 %v3776, 4294901760
        %v3778 = vsub.f32 %v3776, %v3777
        %v3779 = vand.u32 %v3778, 4294901760
        %3780 = vmatpush1.msra.mxu0 %v3779
        %3781 = vmatprep.subr.mxu0 0.0
        %v3782 = vand.u32 %v452, 4294901760
        %v3783 = vsub.f32 %v452, %v3782
        %v3784 = vand.u32 %v3783, 4294901760
        %v3785 = vsub.f32 %v3783, %v3784
        %v3786 = vand.u32 %v3785, 4294901760
        %3787 = vmatpush1.msra.mxu0 %v3786
        %3788 = vmatprep.subr.mxu0 0.0
        %v3789 = vand.u32 %v451, 4294901760
        %v3790 = vsub.f32 %v451, %v3789
        %v3791 = vand.u32 %v3790, 4294901760
        %v3792 = vsub.f32 %v3790, %v3791
        %v3793 = vand.u32 %v3792, 4294901760
        %3794 = vmatpush1.msra.mxu0 %v3793
        %3795 = vmatprep.subr.mxu0 0.0
        %v3796 = vand.u32 %v450, 4294901760
        %v3797 = vsub.f32 %v450, %v3796
        %v3798 = vand.u32 %v3797, 4294901760
        %v3799 = vsub.f32 %v3797, %v3798
        %v3800 = vand.u32 %v3799, 4294901760
        %3801 = vmatpush1.msra.mxu0 %v3800
        %3802 = vmatprep.subr.mxu0 0.0
        %v3803 = vand.u32 %v449, 4294901760
        %v3804 = vsub.f32 %v449, %v3803
        %v3805 = vand.u32 %v3804, 4294901760
        %v3806 = vsub.f32 %v3804, %v3805
        %v3807 = vand.u32 %v3806, 4294901760
        %3808 = vmatpush1.msra.mxu0 %v3807
        %3809 = vmatprep.subr.mxu0 0.0
        %v3810 = vand.u32 %v448, 4294901760
        %v3811 = vsub.f32 %v448, %v3810
        %v3812 = vand.u32 %v3811, 4294901760
        %v3813 = vsub.f32 %v3811, %v3812
        %v3814 = vand.u32 %v3813, 4294901760
        %3815 = vmatpush1.msra.mxu0 %v3814
        %3816 = vmatprep.subr.mxu0 0.0
        %v3817 = vand.u32 %v447, 4294901760
        %v3818 = vsub.f32 %v447, %v3817
        %v3819 = vand.u32 %v3818, 4294901760
        %v3820 = vsub.f32 %v3818, %v3819
        %v3821 = vand.u32 %v3820, 4294901760
        %3822 = vmatpush1.msra.mxu0 %v3821
        %3823 = vmatprep.subr.mxu0 0.0
        %v3824 = vand.u32 %v446, 4294901760
        %v3825 = vsub.f32 %v446, %v3824
        %v3826 = vand.u32 %v3825, 4294901760
        %v3827 = vsub.f32 %v3825, %v3826
        %v3828 = vand.u32 %v3827, 4294901760
        %3829 = vmatpush1.msra.mxu0 %v3828
        %3830 = vmatprep.subr.mxu0 0.0
        %v3831 = vand.u32 %v445, 4294901760
        %v3832 = vsub.f32 %v445, %v3831
        %v3833 = vand.u32 %v3832, 4294901760
        %v3834 = vsub.f32 %v3832, %v3833
        %v3835 = vand.u32 %v3834, 4294901760
        %3836 = vmatpush1.msra.mxu0 %v3835
        %3837 = vmatprep.subr.mxu0 0.0
        %v3838 = vand.u32 %v444, 4294901760
        %v3839 = vsub.f32 %v444, %v3838
        %v3840 = vand.u32 %v3839, 4294901760
        %v3841 = vsub.f32 %v3839, %v3840
        %v3842 = vand.u32 %v3841, 4294901760
        %3843 = vmatpush1.msra.mxu0 %v3842
        %3844 = vmatprep.subr.mxu0 0.0
        %v3845 = vand.u32 %v443, 4294901760
        %v3846 = vsub.f32 %v443, %v3845
        %v3847 = vand.u32 %v3846, 4294901760
        %v3848 = vsub.f32 %v3846, %v3847
        %v3849 = vand.u32 %v3848, 4294901760
        %3850 = vmatpush1.msra.mxu0 %v3849
        %3851 = vmatprep.subr.mxu0 0.0
        %v3852 = vand.u32 %v442, 4294901760
        %v3853 = vsub.f32 %v442, %v3852
        %v3854 = vand.u32 %v3853, 4294901760
        %v3855 = vsub.f32 %v3853, %v3854
        %v3856 = vand.u32 %v3855, 4294901760
        %3857 = vmatpush1.msra.mxu0 %v3856
        %3858 = vmatprep.subr.mxu0 0.0
        %v3859 = vand.u32 %v473, 4294901760
        %v3860 = vsub.f32 %v473, %v3859
        %v3861 = vand.u32 %v3860, 4294901760
        %v3862 = vsub.f32 %v3860, %v3861
        %v3863 = vand.u32 %v3862, 4294901760
        %3864 = vmatpush2.msra.mxu0 %v3863
        %3865 = vmatprep.subr.mxu0 0.0
        %v3866 = vand.u32 %v472, 4294901760
        %v3867 = vsub.f32 %v472, %v3866
        %v3868 = vand.u32 %v3867, 4294901760
        %v3869 = vsub.f32 %v3867, %v3868
        %v3870 = vand.u32 %v3869, 4294901760
        %3871 = vmatpush2.msra.mxu0 %v3870
        %3872 = vmatprep.subr.mxu0 0.0
        %v3873 = vand.u32 %v471, 4294901760
        %v3874 = vsub.f32 %v471, %v3873
        %v3875 = vand.u32 %v3874, 4294901760
        %v3876 = vsub.f32 %v3874, %v3875
        %v3877 = vand.u32 %v3876, 4294901760
        %3878 = vmatpush2.msra.mxu0 %v3877
        %3879 = vmatprep.subr.mxu0 0.0
        %v3880 = vand.u32 %v470, 4294901760
        %v3881 = vsub.f32 %v470, %v3880
        %v3882 = vand.u32 %v3881, 4294901760
        %v3883 = vsub.f32 %v3881, %v3882
        %v3884 = vand.u32 %v3883, 4294901760
        %3885 = vmatpush2.msra.mxu0 %v3884
        %3886 = vmatprep.subr.mxu0 0.0
        %v3887 = vand.u32 %v469, 4294901760
        %v3888 = vsub.f32 %v469, %v3887
        %v3889 = vand.u32 %v3888, 4294901760
        %v3890 = vsub.f32 %v3888, %v3889
        %v3891 = vand.u32 %v3890, 4294901760
        %3892 = vmatpush2.msra.mxu0 %v3891
        %3893 = vmatprep.subr.mxu0 0.0
        %v3894 = vand.u32 %v468, 4294901760
        %v3895 = vsub.f32 %v468, %v3894
        %v3896 = vand.u32 %v3895, 4294901760
        %v3897 = vsub.f32 %v3895, %v3896
        %v3898 = vand.u32 %v3897, 4294901760
        %3899 = vmatpush2.msra.mxu0 %v3898
        %3900 = vmatprep.subr.mxu0 0.0
        %v3901 = vand.u32 %v467, 4294901760
        %v3902 = vsub.f32 %v467, %v3901
        %v3903 = vand.u32 %v3902, 4294901760
        %v3904 = vsub.f32 %v3902, %v3903
        %v3905 = vand.u32 %v3904, 4294901760
        %3906 = vmatpush2.msra.mxu0 %v3905
        %3907 = vmatprep.subr.mxu0 0.0
        %v3908 = vand.u32 %v466, 4294901760
        %v3909 = vsub.f32 %v466, %v3908
        %v3910 = vand.u32 %v3909, 4294901760
        %v3911 = vsub.f32 %v3909, %v3910
        %v3912 = vand.u32 %v3911, 4294901760
        %3913 = vmatpush2.msra.mxu0 %v3912
        %3914 = vmatprep.subr.mxu0 0.0
        %v3915 = vand.u32 %v465, 4294901760
        %v3916 = vsub.f32 %v465, %v3915
        %v3917 = vand.u32 %v3916, 4294901760
        %v3918 = vsub.f32 %v3916, %v3917
        %v3919 = vand.u32 %v3918, 4294901760
        %3920 = vmatpush2.msra.mxu0 %v3919
        %3921 = vmatprep.subr.mxu0 0.0
        %v3922 = vand.u32 %v464, 4294901760
        %v3923 = vsub.f32 %v464, %v3922
        %v3924 = vand.u32 %v3923, 4294901760
        %v3925 = vsub.f32 %v3923, %v3924
        %v3926 = vand.u32 %v3925, 4294901760
        %3927 = vmatpush2.msra.mxu0 %v3926
        %3928 = vmatprep.subr.mxu0 0.0
        %v3929 = vand.u32 %v463, 4294901760
        %v3930 = vsub.f32 %v463, %v3929
        %v3931 = vand.u32 %v3930, 4294901760
        %v3932 = vsub.f32 %v3930, %v3931
        %v3933 = vand.u32 %v3932, 4294901760
        %3934 = vmatpush2.msra.mxu0 %v3933
        %3935 = vmatprep.subr.mxu0 0.0
        %v3936 = vand.u32 %v462, 4294901760
        %v3937 = vsub.f32 %v462, %v3936
        %v3938 = vand.u32 %v3937, 4294901760
        %v3939 = vsub.f32 %v3937, %v3938
        %v3940 = vand.u32 %v3939, 4294901760
        %3941 = vmatpush2.msra.mxu0 %v3940
        %3942 = vmatprep.subr.mxu0 0.0
        %v3943 = vand.u32 %v461, 4294901760
        %v3944 = vsub.f32 %v461, %v3943
        %v3945 = vand.u32 %v3944, 4294901760
        %v3946 = vsub.f32 %v3944, %v3945
        %v3947 = vand.u32 %v3946, 4294901760
        %3948 = vmatpush2.msra.mxu0 %v3947
        %3949 = vmatprep.subr.mxu0 0.0
        %v3950 = vand.u32 %v460, 4294901760
        %v3951 = vsub.f32 %v460, %v3950
        %v3952 = vand.u32 %v3951, 4294901760
        %v3953 = vsub.f32 %v3951, %v3952
        %v3954 = vand.u32 %v3953, 4294901760
        %3955 = vmatpush2.msra.mxu0 %v3954
        %3956 = vmatprep.subr.mxu0 0.0
        %v3957 = vand.u32 %v459, 4294901760
        %v3958 = vsub.f32 %v459, %v3957
        %v3959 = vand.u32 %v3958, 4294901760
        %v3960 = vsub.f32 %v3958, %v3959
        %v3961 = vand.u32 %v3960, 4294901760
        %3962 = vmatpush2.msra.mxu0 %v3961
        %3963 = vmatprep.subr.mxu0 0.0
        %v3964 = vand.u32 %v458, 4294901760
        %v3965 = vsub.f32 %v458, %v3964
        %v3966 = vand.u32 %v3965, 4294901760
        %v3967 = vsub.f32 %v3965, %v3966
        %v3968 = vand.u32 %v3967, 4294901760
        %3969 = vmatpush2.msra.mxu0 %v3968
        %v3970 = vand.u32 %v287, 4294901760
        %3971 = vmatprep.mubr.f32.mxu0 %v3970
        %v3972 = vand.u32 %v286, 4294901760
        %3973 = vmatmul.mubr.f32.gmra.mxu0 %v3972
        %v3974 = vpop.f32.mrf.mxu0
        %v3975 = vadd.f32 %v3578, %v3974
        %v3976 = vpop.f32.mrf.mxu0
        %v3977 = vand.u32 %v295, 4294901760
        %3978 = vmatprep.mubr.f32.mxu0 %v3977
        %v3979 = vand.u32 %v294, 4294901760
        %3980 = vmatmul.mubr.f32.gmra.mxu0 %v3979
        %v3981 = vpop.f32.mrf.mxu0
        %v3982 = vadd.f32 %v3593, %v3981
        %v3983 = vpop.f32.mrf.mxu0
        %v3984 = vand.u32 %v303, 4294901760
        %3985 = vmatprep.mubr.f32.mxu0 %v3984
        %v3986 = vand.u32 %v302, 4294901760
        %3987 = vmatmul.mubr.f32.gmra.mxu0 %v3986
        %v3988 = vpop.f32.mrf.mxu0
        %v3989 = vadd.f32 %v3608, %v3988
        %v3990 = vpop.f32.mrf.mxu0
        %v3991 = vand.u32 %v311, 4294901760
        %3992 = vmatprep.mubr.f32.mxu0 %v3991
        %v3993 = vand.u32 %v310, 4294901760
        %3994 = vmatmul.mubr.f32.gmra.mxu0 %v3993
        %v3995 = vpop.f32.mrf.mxu0
        %v3996 = vadd.f32 %v3623, %v3995
        %v3997 = vpop.f32.mrf.mxu0
        %v3998 = vand.u32 %v319, 4294901760
        %3999 = vmatprep.mubr.f32.mxu0 %v3998
        %v4000 = vand.u32 %v318, 4294901760
        %4001 = vmatmul.mubr.f32.gmra.mxu0 %v4000
        %v4002 = vpop.f32.mrf.mxu0
        %v4003 = vadd.f32 %v3638, %v4002
        %v4004 = vpop.f32.mrf.mxu0
        %v4005 = vand.u32 %v327, 4294901760
        %4006 = vmatprep.mubr.f32.mxu0 %v4005
        %v4007 = vand.u32 %v326, 4294901760
        %4008 = vmatmul.mubr.f32.gmra.mxu0 %v4007
        %v4009 = vpop.f32.mrf.mxu0
        %v4010 = vadd.f32 %v3653, %v4009
        %v4011 = vpop.f32.mrf.mxu0
        %v4012 = vand.u32 %v335, 4294901760
        %4013 = vmatprep.mubr.f32.mxu0 %v4012
        %v4014 = vand.u32 %v334, 4294901760
        %4015 = vmatmul.mubr.f32.gmra.mxu0 %v4014
        %v4016 = vpop.f32.mrf.mxu0
        %v4017 = vadd.f32 %v3668, %v4016
        %v4018 = vpop.f32.mrf.mxu0
        %v4019 = vand.u32 %v343, 4294901760
        %4020 = vmatprep.mubr.f32.mxu0 %v4019
        %v4021 = vand.u32 %v342, 4294901760
        %4022 = vmatmul.mubr.f32.gmra.mxu0 %v4021
        %v4023 = vpop.f32.mrf.mxu0
        %v4024 = vadd.f32 %v3683, %v4023
        %v4025 = vpop.f32.mrf.mxu0
        %v4026 = vand.u32 %v351, 4294901760
        %4027 = vmatprep.mubr.f32.mxu0 %v4026
        %v4028 = vand.u32 %v350, 4294901760
        %4029 = vmatmul.mubr.f32.gmra.mxu0 %v4028
        %v4030 = vpop.f32.mrf.mxu0
        %v4031 = vadd.f32 %v3698, %v4030
        %v4032 = vpop.f32.mrf.mxu0
        %v4033 = vand.u32 %v359, 4294901760
        %4034 = vmatprep.mubr.f32.mxu0 %v4033
        %v4035 = vand.u32 %v358, 4294901760
        %4036 = vmatmul.mubr.f32.gmra.mxu0 %v4035
        %v4037 = vpop.f32.mrf.mxu0
        %v4038 = vadd.f32 %v3713, %v4037
        %v4039 = vpop.f32.mrf.mxu0
        %v4040 = vand.u32 %v367, 4294901760
        %4041 = vmatprep.mubr.f32.mxu0 %v4040
        %v4042 = vand.u32 %v366, 4294901760
        %4043 = vmatmul.mubr.f32.gmra.mxu0 %v4042
        %v4044 = vpop.f32.mrf.mxu0
        %v4045 = vadd.f32 %v3728, %v4044
        %v4046 = vpop.f32.mrf.mxu0
        %v4047 = vand.u32 %v375, 4294901760
        %4048 = vmatprep.mubr.f32.mxu0 %v4047
        %v4049 = vand.u32 %v374, 4294901760
        %4050 = vmatmul.mubr.f32.gmra.mxu0 %v4049
        %v4051 = vpop.f32.mrf.mxu0
        %v4052 = vadd.f32 %v3743, %v4051
        %v4053 = vpop.f32.mrf.mxu0
        %4054 = vdwg.mxu0
        %4055 = vmatprep.subr.mxu0 0.0
        %v4056 = vand.u32 %v457, 4294901760
        %v4057 = vsub.f32 %v457, %v4056
        %4058 = vmatpush1.msra.mxu0 %v4057
        %4059 = vmatprep.subr.mxu0 0.0
        %v4060 = vand.u32 %v456, 4294901760
        %v4061 = vsub.f32 %v456, %v4060
        %4062 = vmatpush1.msra.mxu0 %v4061
        %4063 = vmatprep.subr.mxu0 0.0
        %v4064 = vand.u32 %v455, 4294901760
        %v4065 = vsub.f32 %v455, %v4064
        %4066 = vmatpush1.msra.mxu0 %v4065
        %4067 = vmatprep.subr.mxu0 0.0
        %v4068 = vand.u32 %v454, 4294901760
        %v4069 = vsub.f32 %v454, %v4068
        %4070 = vmatpush1.msra.mxu0 %v4069
        %4071 = vmatprep.subr.mxu0 0.0
        %v4072 = vand.u32 %v453, 4294901760
        %v4073 = vsub.f32 %v453, %v4072
        %4074 = vmatpush1.msra.mxu0 %v4073
        %4075 = vmatprep.subr.mxu0 0.0
        %v4076 = vand.u32 %v452, 4294901760
        %v4077 = vsub.f32 %v452, %v4076
        %4078 = vmatpush1.msra.mxu0 %v4077
        %4079 = vmatprep.subr.mxu0 0.0
        %v4080 = vand.u32 %v451, 4294901760
        %v4081 = vsub.f32 %v451, %v4080
        %4082 = vmatpush1.msra.mxu0 %v4081
        %4083 = vmatprep.subr.mxu0 0.0
        %v4084 = vand.u32 %v450, 4294901760
        %v4085 = vsub.f32 %v450, %v4084
        %4086 = vmatpush1.msra.mxu0 %v4085
        %4087 = vmatprep.subr.mxu0 0.0
        %v4088 = vand.u32 %v449, 4294901760
        %v4089 = vsub.f32 %v449, %v4088
        %4090 = vmatpush1.msra.mxu0 %v4089
        %4091 = vmatprep.subr.mxu0 0.0
        %v4092 = vand.u32 %v448, 4294901760
        %v4093 = vsub.f32 %v448, %v4092
        %4094 = vmatpush1.msra.mxu0 %v4093
        %4095 = vmatprep.subr.mxu0 0.0
        %v4096 = vand.u32 %v447, 4294901760
        %v4097 = vsub.f32 %v447, %v4096
        %4098 = vmatpush1.msra.mxu0 %v4097
        %4099 = vmatprep.subr.mxu0 0.0
        %v4100 = vand.u32 %v446, 4294901760
        %v4101 = vsub.f32 %v446, %v4100
        %4102 = vmatpush1.msra.mxu0 %v4101
        %4103 = vmatprep.subr.mxu0 0.0
        %v4104 = vand.u32 %v445, 4294901760
        %v4105 = vsub.f32 %v445, %v4104
        %4106 = vmatpush1.msra.mxu0 %v4105
        %4107 = vmatprep.subr.mxu0 0.0
        %v4108 = vand.u32 %v444, 4294901760
        %v4109 = vsub.f32 %v444, %v4108
        %4110 = vmatpush1.msra.mxu0 %v4109
        %4111 = vmatprep.subr.mxu0 0.0
        %v4112 = vand.u32 %v443, 4294901760
        %v4113 = vsub.f32 %v443, %v4112
        %4114 = vmatpush1.msra.mxu0 %v4113
        %4115 = vmatprep.subr.mxu0 0.0
        %v4116 = vand.u32 %v442, 4294901760
        %v4117 = vsub.f32 %v442, %v4116
        %4118 = vmatpush1.msra.mxu0 %v4117
        %4119 = vmatprep.subr.mxu0 0.0
        %v4120 = vand.u32 %v473, 4294901760
        %v4121 = vsub.f32 %v473, %v4120
        %4122 = vmatpush2.msra.mxu0 %v4121
        %4123 = vmatprep.subr.mxu0 0.0
        %v4124 = vand.u32 %v472, 4294901760
        %v4125 = vsub.f32 %v472, %v4124
        %4126 = vmatpush2.msra.mxu0 %v4125
        %4127 = vmatprep.subr.mxu0 0.0
        %v4128 = vand.u32 %v471, 4294901760
        %v4129 = vsub.f32 %v471, %v4128
        %4130 = vmatpush2.msra.mxu0 %v4129
        %4131 = vmatprep.subr.mxu0 0.0
        %v4132 = vand.u32 %v470, 4294901760
        %v4133 = vsub.f32 %v470, %v4132
        %4134 = vmatpush2.msra.mxu0 %v4133
        %4135 = vmatprep.subr.mxu0 0.0
        %v4136 = vand.u32 %v469, 4294901760
        %v4137 = vsub.f32 %v469, %v4136
        %4138 = vmatpush2.msra.mxu0 %v4137
        %4139 = vmatprep.subr.mxu0 0.0
        %v4140 = vand.u32 %v468, 4294901760
        %v4141 = vsub.f32 %v468, %v4140
        %4142 = vmatpush2.msra.mxu0 %v4141
        %4143 = vmatprep.subr.mxu0 0.0
        %v4144 = vand.u32 %v467, 4294901760
        %v4145 = vsub.f32 %v467, %v4144
        %4146 = vmatpush2.msra.mxu0 %v4145
        %4147 = vmatprep.subr.mxu0 0.0
        %v4148 = vand.u32 %v466, 4294901760
        %v4149 = vsub.f32 %v466, %v4148
        %4150 = vmatpush2.msra.mxu0 %v4149
        %4151 = vmatprep.subr.mxu0 0.0
        %v4152 = vand.u32 %v465, 4294901760
        %v4153 = vsub.f32 %v465, %v4152
        %4154 = vmatpush2.msra.mxu0 %v4153
        %4155 = vmatprep.subr.mxu0 0.0
        %v4156 = vand.u32 %v464, 4294901760
        %v4157 = vsub.f32 %v464, %v4156
        %4158 = vmatpush2.msra.mxu0 %v4157
        %4159 = vmatprep.subr.mxu0 0.0
        %v4160 = vand.u32 %v463, 4294901760
        %v4161 = vsub.f32 %v463, %v4160
        %4162 = vmatpush2.msra.mxu0 %v4161
        %4163 = vmatprep.subr.mxu0 0.0
        %v4164 = vand.u32 %v462, 4294901760
        %v4165 = vsub.f32 %v462, %v4164
        %4166 = vmatpush2.msra.mxu0 %v4165
        %4167 = vmatprep.subr.mxu0 0.0
        %v4168 = vand.u32 %v461, 4294901760
        %v4169 = vsub.f32 %v461, %v4168
        %4170 = vmatpush2.msra.mxu0 %v4169
        %4171 = vmatprep.subr.mxu0 0.0
        %v4172 = vand.u32 %v460, 4294901760
        %v4173 = vsub.f32 %v460, %v4172
        %4174 = vmatpush2.msra.mxu0 %v4173
        %4175 = vmatprep.subr.mxu0 0.0
        %v4176 = vand.u32 %v459, 4294901760
        %v4177 = vsub.f32 %v459, %v4176
        %4178 = vmatpush2.msra.mxu0 %v4177
        %4179 = vmatprep.subr.mxu0 0.0
        %v4180 = vand.u32 %v458, 4294901760
        %v4181 = vsub.f32 %v458, %v4180
        %4182 = vmatpush2.msra.mxu0 %v4181
        %v4183 = vand.u32 %v287, 4294901760
        %v4184 = vsub.f32 %v287, %v4183
        %4185 = vmatprep.mubr.f32.mxu0 %v4184
        %v4186 = vand.u32 %v286, 4294901760
        %v4187 = vsub.f32 %v286, %v4186
        %4188 = vmatmul.mubr.f32.gmra.mxu0 %v4187
        %v4189 = vpop.f32.mrf.mxu0
        %v4190 = vadd.f32 %v3975, %v4189
        %v4191 = vpop.f32.mrf.mxu0
        %v4192 = vand.u32 %v295, 4294901760
        %v4193 = vsub.f32 %v295, %v4192
        %4194 = vmatprep.mubr.f32.mxu0 %v4193
        %v4195 = vand.u32 %v294, 4294901760
        %v4196 = vsub.f32 %v294, %v4195
        %4197 = vmatmul.mubr.f32.gmra.mxu0 %v4196
        %v4198 = vpop.f32.mrf.mxu0
        %v4199 = vadd.f32 %v3982, %v4198
        %v4200 = vpop.f32.mrf.mxu0
        %v4201 = vand.u32 %v303, 4294901760
        %v4202 = vsub.f32 %v303, %v4201
        %4203 = vmatprep.mubr.f32.mxu0 %v4202
        %v4204 = vand.u32 %v302, 4294901760
        %v4205 = vsub.f32 %v302, %v4204
        %4206 = vmatmul.mubr.f32.gmra.mxu0 %v4205
        %v4207 = vpop.f32.mrf.mxu0
        %v4208 = vadd.f32 %v3989, %v4207
        %v4209 = vpop.f32.mrf.mxu0
        %v4210 = vand.u32 %v311, 4294901760
        %v4211 = vsub.f32 %v311, %v4210
        %4212 = vmatprep.mubr.f32.mxu0 %v4211
        %v4213 = vand.u32 %v310, 4294901760
        %v4214 = vsub.f32 %v310, %v4213
        %4215 = vmatmul.mubr.f32.gmra.mxu0 %v4214
        %v4216 = vpop.f32.mrf.mxu0
        %v4217 = vadd.f32 %v3996, %v4216
        %v4218 = vpop.f32.mrf.mxu0
        %v4219 = vand.u32 %v319, 4294901760
        %v4220 = vsub.f32 %v319, %v4219
        %4221 = vmatprep.mubr.f32.mxu0 %v4220
        %v4222 = vand.u32 %v318, 4294901760
        %v4223 = vsub.f32 %v318, %v4222
        %4224 = vmatmul.mubr.f32.gmra.mxu0 %v4223
        %v4225 = vpop.f32.mrf.mxu0
        %v4226 = vadd.f32 %v4003, %v4225
        %v4227 = vpop.f32.mrf.mxu0
        %v4228 = vand.u32 %v327, 4294901760
        %v4229 = vsub.f32 %v327, %v4228
        %4230 = vmatprep.mubr.f32.mxu0 %v4229
        %v4231 = vand.u32 %v326, 4294901760
        %v4232 = vsub.f32 %v326, %v4231
        %4233 = vmatmul.mubr.f32.gmra.mxu0 %v4232
        %v4234 = vpop.f32.mrf.mxu0
        %v4235 = vadd.f32 %v4010, %v4234
        %v4236 = vpop.f32.mrf.mxu0
        %v4237 = vand.u32 %v335, 4294901760
        %v4238 = vsub.f32 %v335, %v4237
        %4239 = vmatprep.mubr.f32.mxu0 %v4238
        %v4240 = vand.u32 %v334, 4294901760
        %v4241 = vsub.f32 %v334, %v4240
        %4242 = vmatmul.mubr.f32.gmra.mxu0 %v4241
        %v4243 = vpop.f32.mrf.mxu0
        %v4244 = vadd.f32 %v4017, %v4243
        %v4245 = vpop.f32.mrf.mxu0
        %v4246 = vand.u32 %v343, 4294901760
        %v4247 = vsub.f32 %v343, %v4246
        %4248 = vmatprep.mubr.f32.mxu0 %v4247
        %v4249 = vand.u32 %v342, 4294901760
        %v4250 = vsub.f32 %v342, %v4249
        %4251 = vmatmul.mubr.f32.gmra.mxu0 %v4250
        %v4252 = vpop.f32.mrf.mxu0
        %v4253 = vadd.f32 %v4024, %v4252
        %v4254 = vpop.f32.mrf.mxu0
        %v4255 = vand.u32 %v351, 4294901760
        %v4256 = vsub.f32 %v351, %v4255
        %4257 = vmatprep.mubr.f32.mxu0 %v4256
        %v4258 = vand.u32 %v350, 4294901760
        %v4259 = vsub.f32 %v350, %v4258
        %4260 = vmatmul.mubr.f32.gmra.mxu0 %v4259
        %v4261 = vpop.f32.mrf.mxu0
        %v4262 = vadd.f32 %v4031, %v4261
        %v4263 = vpop.f32.mrf.mxu0
        %v4264 = vand.u32 %v359, 4294901760
        %v4265 = vsub.f32 %v359, %v4264
        %4266 = vmatprep.mubr.f32.mxu0 %v4265
        %v4267 = vand.u32 %v358, 4294901760
        %v4268 = vsub.f32 %v358, %v4267
        %4269 = vmatmul.mubr.f32.gmra.mxu0 %v4268
        %v4270 = vpop.f32.mrf.mxu0
        %v4271 = vadd.f32 %v4038, %v4270
        %v4272 = vpop.f32.mrf.mxu0
        %v4273 = vand.u32 %v367, 4294901760
        %v4274 = vsub.f32 %v367, %v4273
        %4275 = vmatprep.mubr.f32.mxu0 %v4274
        %v4276 = vand.u32 %v366, 4294901760
        %v4277 = vsub.f32 %v366, %v4276
        %4278 = vmatmul.mubr.f32.gmra.mxu0 %v4277
        %v4279 = vpop.f32.mrf.mxu0
        %v4280 = vadd.f32 %v4045, %v4279
        %v4281 = vpop.f32.mrf.mxu0
        %v4282 = vand.u32 %v375, 4294901760
        %v4283 = vsub.f32 %v375, %v4282
        %4284 = vmatprep.mubr.f32.mxu0 %v4283
        %v4285 = vand.u32 %v374, 4294901760
        %v4286 = vsub.f32 %v374, %v4285
        %4287 = vmatmul.mubr.f32.gmra.mxu0 %v4286
        %v4288 = vpop.f32.mrf.mxu0
        %v4289 = vadd.f32 %v4052, %v4288
        %v4290 = vpop.f32.mrf.mxu0
        %4291 = vdwg.mxu0
        %4292 = vmatprep.subr.mxu0 0.0
        %v4293 = vand.u32 %v457, 4294901760
        %4294 = vmatpush1.msra.mxu0 %v4293
        %4295 = vmatprep.subr.mxu0 0.0
        %v4296 = vand.u32 %v456, 4294901760
        %4297 = vmatpush1.msra.mxu0 %v4296
        %4298 = vmatprep.subr.mxu0 0.0
        %v4299 = vand.u32 %v455, 4294901760
        %4300 = vmatpush1.msra.mxu0 %v4299
        %4301 = vmatprep.subr.mxu0 0.0
        %v4302 = vand.u32 %v454, 4294901760
        %4303 = vmatpush1.msra.mxu0 %v4302
        %4304 = vmatprep.subr.mxu0 0.0
        %v4305 = vand.u32 %v453, 4294901760
        %4306 = vmatpush1.msra.mxu0 %v4305
        %4307 = vmatprep.subr.mxu0 0.0
        %v4308 = vand.u32 %v452, 4294901760
        %4309 = vmatpush1.msra.mxu0 %v4308
        %4310 = vmatprep.subr.mxu0 0.0
        %v4311 = vand.u32 %v451, 4294901760
        %4312 = vmatpush1.msra.mxu0 %v4311
        %4313 = vmatprep.subr.mxu0 0.0
        %v4314 = vand.u32 %v450, 4294901760
        %4315 = vmatpush1.msra.mxu0 %v4314
        %4316 = vmatprep.subr.mxu0 0.0
        %v4317 = vand.u32 %v449, 4294901760
        %4318 = vmatpush1.msra.mxu0 %v4317
        %4319 = vmatprep.subr.mxu0 0.0
        %v4320 = vand.u32 %v448, 4294901760
        %4321 = vmatpush1.msra.mxu0 %v4320
        %4322 = vmatprep.subr.mxu0 0.0
        %v4323 = vand.u32 %v447, 4294901760
        %4324 = vmatpush1.msra.mxu0 %v4323
        %4325 = vmatprep.subr.mxu0 0.0
        %v4326 = vand.u32 %v446, 4294901760
        %4327 = vmatpush1.msra.mxu0 %v4326
        %4328 = vmatprep.subr.mxu0 0.0
        %v4329 = vand.u32 %v445, 4294901760
        %4330 = vmatpush1.msra.mxu0 %v4329
        %4331 = vmatprep.subr.mxu0 0.0
        %v4332 = vand.u32 %v444, 4294901760
        %4333 = vmatpush1.msra.mxu0 %v4332
        %4334 = vmatprep.subr.mxu0 0.0
        %v4335 = vand.u32 %v443, 4294901760
        %4336 = vmatpush1.msra.mxu0 %v4335
        %4337 = vmatprep.subr.mxu0 0.0
        %v4338 = vand.u32 %v442, 4294901760
        %4339 = vmatpush1.msra.mxu0 %v4338
        %4340 = vmatprep.subr.mxu0 0.0
        %v4341 = vand.u32 %v473, 4294901760
        %4342 = vmatpush2.msra.mxu0 %v4341
        %4343 = vmatprep.subr.mxu0 0.0
        %v4344 = vand.u32 %v472, 4294901760
        %4345 = vmatpush2.msra.mxu0 %v4344
        %4346 = vmatprep.subr.mxu0 0.0
        %v4347 = vand.u32 %v471, 4294901760
        %4348 = vmatpush2.msra.mxu0 %v4347
        %4349 = vmatprep.subr.mxu0 0.0
        %v4350 = vand.u32 %v470, 4294901760
        %4351 = vmatpush2.msra.mxu0 %v4350
        %4352 = vmatprep.subr.mxu0 0.0
        %v4353 = vand.u32 %v469, 4294901760
        %4354 = vmatpush2.msra.mxu0 %v4353
        %4355 = vmatprep.subr.mxu0 0.0
        %v4356 = vand.u32 %v468, 4294901760
        %4357 = vmatpush2.msra.mxu0 %v4356
        %4358 = vmatprep.subr.mxu0 0.0
        %v4359 = vand.u32 %v467, 4294901760
        %4360 = vmatpush2.msra.mxu0 %v4359
        %4361 = vmatprep.subr.mxu0 0.0
        %v4362 = vand.u32 %v466, 4294901760
        %4363 = vmatpush2.msra.mxu0 %v4362
        %4364 = vmatprep.subr.mxu0 0.0
        %v4365 = vand.u32 %v465, 4294901760
        %4366 = vmatpush2.msra.mxu0 %v4365
        %4367 = vmatprep.subr.mxu0 0.0
        %v4368 = vand.u32 %v464, 4294901760
        %4369 = vmatpush2.msra.mxu0 %v4368
        %4370 = vmatprep.subr.mxu0 0.0
        %v4371 = vand.u32 %v463, 4294901760
        %4372 = vmatpush2.msra.mxu0 %v4371
        %4373 = vmatprep.subr.mxu0 0.0
        %v4374 = vand.u32 %v462, 4294901760
        %4375 = vmatpush2.msra.mxu0 %v4374
        %4376 = vmatprep.subr.mxu0 0.0
        %v4377 = vand.u32 %v461, 4294901760
        %4378 = vmatpush2.msra.mxu0 %v4377
        %4379 = vmatprep.subr.mxu0 0.0
        %v4380 = vand.u32 %v460, 4294901760
        %4381 = vmatpush2.msra.mxu0 %v4380
        %4382 = vmatprep.subr.mxu0 0.0
        %v4383 = vand.u32 %v459, 4294901760
        %4384 = vmatpush2.msra.mxu0 %v4383
        %4385 = vmatprep.subr.mxu0 0.0
        %v4386 = vand.u32 %v458, 4294901760
        %4387 = vmatpush2.msra.mxu0 %v4386
        %v4388 = vand.u32 %v287, 4294901760
        %v4389 = vsub.f32 %v287, %v4388
        %v4390 = vand.u32 %v4389, 4294901760
        %4391 = vmatprep.mubr.f32.mxu0 %v4390
        %v4392 = vand.u32 %v286, 4294901760
        %v4393 = vsub.f32 %v286, %v4392
        %v4394 = vand.u32 %v4393, 4294901760
        %4395 = vmatmul.mubr.f32.gmra.mxu0 %v4394
        %v4396 = vpop.f32.mrf.mxu0
        %v4397 = vadd.f32 %v4190, %v4396
        %v4398 = vpop.f32.mrf.mxu0
        %v4399 = vand.u32 %v295, 4294901760
        %v4400 = vsub.f32 %v295, %v4399
        %v4401 = vand.u32 %v4400, 4294901760
        %4402 = vmatprep.mubr.f32.mxu0 %v4401
        %v4403 = vand.u32 %v294, 4294901760
        %v4404 = vsub.f32 %v294, %v4403
        %v4405 = vand.u32 %v4404, 4294901760
        %4406 = vmatmul.mubr.f32.gmra.mxu0 %v4405
        %v4407 = vpop.f32.mrf.mxu0
        %v4408 = vadd.f32 %v4199, %v4407
        %v4409 = vpop.f32.mrf.mxu0
        %v4410 = vand.u32 %v303, 4294901760
        %v4411 = vsub.f32 %v303, %v4410
        %v4412 = vand.u32 %v4411, 4294901760
        %4413 = vmatprep.mubr.f32.mxu0 %v4412
        %v4414 = vand.u32 %v302, 4294901760
        %v4415 = vsub.f32 %v302, %v4414
        %v4416 = vand.u32 %v4415, 4294901760
        %4417 = vmatmul.mubr.f32.gmra.mxu0 %v4416
        %v4418 = vpop.f32.mrf.mxu0
        %v4419 = vadd.f32 %v4208, %v4418
        %v4420 = vpop.f32.mrf.mxu0
        %v4421 = vand.u32 %v311, 4294901760
        %v4422 = vsub.f32 %v311, %v4421
        %v4423 = vand.u32 %v4422, 4294901760
        %4424 = vmatprep.mubr.f32.mxu0 %v4423
        %v4425 = vand.u32 %v310, 4294901760
        %v4426 = vsub.f32 %v310, %v4425
        %v4427 = vand.u32 %v4426, 4294901760
        %4428 = vmatmul.mubr.f32.gmra.mxu0 %v4427
        %v4429 = vpop.f32.mrf.mxu0
        %v4430 = vadd.f32 %v4217, %v4429
        %v4431 = vpop.f32.mrf.mxu0
        %v4432 = vand.u32 %v319, 4294901760
        %v4433 = vsub.f32 %v319, %v4432
        %v4434 = vand.u32 %v4433, 4294901760
        %4435 = vmatprep.mubr.f32.mxu0 %v4434
        %v4436 = vand.u32 %v318, 4294901760
        %v4437 = vsub.f32 %v318, %v4436
        %v4438 = vand.u32 %v4437, 4294901760
        %4439 = vmatmul.mubr.f32.gmra.mxu0 %v4438
        %v4440 = vpop.f32.mrf.mxu0
        %v4441 = vadd.f32 %v4226, %v4440
        %v4442 = vpop.f32.mrf.mxu0
        %v4443 = vand.u32 %v327, 4294901760
        %v4444 = vsub.f32 %v327, %v4443
        %v4445 = vand.u32 %v4444, 4294901760
        %4446 = vmatprep.mubr.f32.mxu0 %v4445
        %v4447 = vand.u32 %v326, 4294901760
        %v4448 = vsub.f32 %v326, %v4447
        %v4449 = vand.u32 %v4448, 4294901760
        %4450 = vmatmul.mubr.f32.gmra.mxu0 %v4449
        %v4451 = vpop.f32.mrf.mxu0
        %v4452 = vadd.f32 %v4235, %v4451
        %v4453 = vpop.f32.mrf.mxu0
        %v4454 = vand.u32 %v335, 4294901760
        %v4455 = vsub.f32 %v335, %v4454
        %v4456 = vand.u32 %v4455, 4294901760
        %4457 = vmatprep.mubr.f32.mxu0 %v4456
        %v4458 = vand.u32 %v334, 4294901760
        %v4459 = vsub.f32 %v334, %v4458
        %v4460 = vand.u32 %v4459, 4294901760
        %4461 = vmatmul.mubr.f32.gmra.mxu0 %v4460
        %v4462 = vpop.f32.mrf.mxu0
        %v4463 = vadd.f32 %v4244, %v4462
        %v4464 = vpop.f32.mrf.mxu0
        %v4465 = vand.u32 %v343, 4294901760
        %v4466 = vsub.f32 %v343, %v4465
        %v4467 = vand.u32 %v4466, 4294901760
        %4468 = vmatprep.mubr.f32.mxu0 %v4467
        %v4469 = vand.u32 %v342, 4294901760
        %v4470 = vsub.f32 %v342, %v4469
        %v4471 = vand.u32 %v4470, 4294901760
        %4472 = vmatmul.mubr.f32.gmra.mxu0 %v4471
        %v4473 = vpop.f32.mrf.mxu0
        %v4474 = vadd.f32 %v4253, %v4473
        %v4475 = vpop.f32.mrf.mxu0
        %v4476 = vand.u32 %v351, 4294901760
        %v4477 = vsub.f32 %v351, %v4476
        %v4478 = vand.u32 %v4477, 4294901760
        %4479 = vmatprep.mubr.f32.mxu0 %v4478
        %v4480 = vand.u32 %v350, 4294901760
        %v4481 = vsub.f32 %v350, %v4480
        %v4482 = vand.u32 %v4481, 4294901760
        %4483 = vmatmul.mubr.f32.gmra.mxu0 %v4482
        %v4484 = vpop.f32.mrf.mxu0
        %v4485 = vadd.f32 %v4262, %v4484
        %v4486 = vpop.f32.mrf.mxu0
        %v4487 = vand.u32 %v359, 4294901760
        %v4488 = vsub.f32 %v359, %v4487
        %v4489 = vand.u32 %v4488, 4294901760
        %4490 = vmatprep.mubr.f32.mxu0 %v4489
        %v4491 = vand.u32 %v358, 4294901760
        %v4492 = vsub.f32 %v358, %v4491
        %v4493 = vand.u32 %v4492, 4294901760
        %4494 = vmatmul.mubr.f32.gmra.mxu0 %v4493
        %v4495 = vpop.f32.mrf.mxu0
        %v4496 = vadd.f32 %v4271, %v4495
        %v4497 = vpop.f32.mrf.mxu0
        %v4498 = vand.u32 %v367, 4294901760
        %v4499 = vsub.f32 %v367, %v4498
        %v4500 = vand.u32 %v4499, 4294901760
        %4501 = vmatprep.mubr.f32.mxu0 %v4500
        %v4502 = vand.u32 %v366, 4294901760
        %v4503 = vsub.f32 %v366, %v4502
        %v4504 = vand.u32 %v4503, 4294901760
        %4505 = vmatmul.mubr.f32.gmra.mxu0 %v4504
        %v4506 = vpop.f32.mrf.mxu0
        %v4507 = vadd.f32 %v4280, %v4506
        %v4508 = vpop.f32.mrf.mxu0
        %v4509 = vand.u32 %v375, 4294901760
        %v4510 = vsub.f32 %v375, %v4509
        %v4511 = vand.u32 %v4510, 4294901760
        %4512 = vmatprep.mubr.f32.mxu0 %v4511
        %v4513 = vand.u32 %v374, 4294901760
        %v4514 = vsub.f32 %v374, %v4513
        %v4515 = vand.u32 %v4514, 4294901760
        %4516 = vmatmul.mubr.f32.gmra.mxu0 %v4515
        %v4517 = vpop.f32.mrf.mxu0
        %v4518 = vadd.f32 %v4289, %v4517
        %v4519 = vpop.f32.mrf.mxu0
        %4520 = vdwg.mxu0
        %4521 = vmatprep.subr.mxu0 0.0
        %v4522 = vand.u32 %v457, 4294901760
        %v4523 = vsub.f32 %v457, %v4522
        %v4524 = vand.u32 %v4523, 4294901760
        %4525 = vmatpush1.msra.mxu0 %v4524
        %4526 = vmatprep.subr.mxu0 0.0
        %v4527 = vand.u32 %v456, 4294901760
        %v4528 = vsub.f32 %v456, %v4527
        %v4529 = vand.u32 %v4528, 4294901760
        %4530 = vmatpush1.msra.mxu0 %v4529
        %4531 = vmatprep.subr.mxu0 0.0
        %v4532 = vand.u32 %v455, 4294901760
        %v4533 = vsub.f32 %v455, %v4532
        %v4534 = vand.u32 %v4533, 4294901760
        %4535 = vmatpush1.msra.mxu0 %v4534
        %4536 = vmatprep.subr.mxu0 0.0
        %v4537 = vand.u32 %v454, 4294901760
        %v4538 = vsub.f32 %v454, %v4537
        %v4539 = vand.u32 %v4538, 4294901760
        %4540 = vmatpush1.msra.mxu0 %v4539
        %4541 = vmatprep.subr.mxu0 0.0
        %v4542 = vand.u32 %v453, 4294901760
        %v4543 = vsub.f32 %v453, %v4542
        %v4544 = vand.u32 %v4543, 4294901760
        %4545 = vmatpush1.msra.mxu0 %v4544
        %4546 = vmatprep.subr.mxu0 0.0
        %v4547 = vand.u32 %v452, 4294901760
        %v4548 = vsub.f32 %v452, %v4547
        %v4549 = vand.u32 %v4548, 4294901760
        %4550 = vmatpush1.msra.mxu0 %v4549
        %4551 = vmatprep.subr.mxu0 0.0
        %v4552 = vand.u32 %v451, 4294901760
        %v4553 = vsub.f32 %v451, %v4552
        %v4554 = vand.u32 %v4553, 4294901760
        %4555 = vmatpush1.msra.mxu0 %v4554
        %4556 = vmatprep.subr.mxu0 0.0
        %v4557 = vand.u32 %v450, 4294901760
        %v4558 = vsub.f32 %v450, %v4557
        %v4559 = vand.u32 %v4558, 4294901760
        %4560 = vmatpush1.msra.mxu0 %v4559
        %4561 = vmatprep.subr.mxu0 0.0
        %v4562 = vand.u32 %v449, 4294901760
        %v4563 = vsub.f32 %v449, %v4562
        %v4564 = vand.u32 %v4563, 4294901760
        %4565 = vmatpush1.msra.mxu0 %v4564
        %4566 = vmatprep.subr.mxu0 0.0
        %v4567 = vand.u32 %v448, 4294901760
        %v4568 = vsub.f32 %v448, %v4567
        %v4569 = vand.u32 %v4568, 4294901760
        %4570 = vmatpush1.msra.mxu0 %v4569
        %4571 = vmatprep.subr.mxu0 0.0
        %v4572 = vand.u32 %v447, 4294901760
        %v4573 = vsub.f32 %v447, %v4572
        %v4574 = vand.u32 %v4573, 4294901760
        %4575 = vmatpush1.msra.mxu0 %v4574
        %4576 = vmatprep.subr.mxu0 0.0
        %v4577 = vand.u32 %v446, 4294901760
        %v4578 = vsub.f32 %v446, %v4577
        %v4579 = vand.u32 %v4578, 4294901760
        %4580 = vmatpush1.msra.mxu0 %v4579
        %4581 = vmatprep.subr.mxu0 0.0
        %v4582 = vand.u32 %v445, 4294901760
        %v4583 = vsub.f32 %v445, %v4582
        %v4584 = vand.u32 %v4583, 4294901760
        %4585 = vmatpush1.msra.mxu0 %v4584
        %4586 = vmatprep.subr.mxu0 0.0
        %v4587 = vand.u32 %v444, 4294901760
        %v4588 = vsub.f32 %v444, %v4587
        %v4589 = vand.u32 %v4588, 4294901760
        %4590 = vmatpush1.msra.mxu0 %v4589
        %4591 = vmatprep.subr.mxu0 0.0
        %v4592 = vand.u32 %v443, 4294901760
        %v4593 = vsub.f32 %v443, %v4592
        %v4594 = vand.u32 %v4593, 4294901760
        %4595 = vmatpush1.msra.mxu0 %v4594
        %4596 = vmatprep.subr.mxu0 0.0
        %v4597 = vand.u32 %v442, 4294901760
        %v4598 = vsub.f32 %v442, %v4597
        %v4599 = vand.u32 %v4598, 4294901760
        %4600 = vmatpush1.msra.mxu0 %v4599
        %4601 = vmatprep.subr.mxu0 0.0
        %v4602 = vand.u32 %v473, 4294901760
        %v4603 = vsub.f32 %v473, %v4602
        %v4604 = vand.u32 %v4603, 4294901760
        %4605 = vmatpush2.msra.mxu0 %v4604
        %4606 = vmatprep.subr.mxu0 0.0
        %v4607 = vand.u32 %v472, 4294901760
        %v4608 = vsub.f32 %v472, %v4607
        %v4609 = vand.u32 %v4608, 4294901760
        %4610 = vmatpush2.msra.mxu0 %v4609
        %4611 = vmatprep.subr.mxu0 0.0
        %v4612 = vand.u32 %v471, 4294901760
        %v4613 = vsub.f32 %v471, %v4612
        %v4614 = vand.u32 %v4613, 4294901760
        %4615 = vmatpush2.msra.mxu0 %v4614
        %4616 = vmatprep.subr.mxu0 0.0
        %v4617 = vand.u32 %v470, 4294901760
        %v4618 = vsub.f32 %v470, %v4617
        %v4619 = vand.u32 %v4618, 4294901760
        %4620 = vmatpush2.msra.mxu0 %v4619
        %4621 = vmatprep.subr.mxu0 0.0
        %v4622 = vand.u32 %v469, 4294901760
        %v4623 = vsub.f32 %v469, %v4622
        %v4624 = vand.u32 %v4623, 4294901760
        %4625 = vmatpush2.msra.mxu0 %v4624
        %4626 = vmatprep.subr.mxu0 0.0
        %v4627 = vand.u32 %v468, 4294901760
        %v4628 = vsub.f32 %v468, %v4627
        %v4629 = vand.u32 %v4628, 4294901760
        %4630 = vmatpush2.msra.mxu0 %v4629
        %4631 = vmatprep.subr.mxu0 0.0
        %v4632 = vand.u32 %v467, 4294901760
        %v4633 = vsub.f32 %v467, %v4632
        %v4634 = vand.u32 %v4633, 4294901760
        %4635 = vmatpush2.msra.mxu0 %v4634
        %4636 = vmatprep.subr.mxu0 0.0
        %v4637 = vand.u32 %v466, 4294901760
        %v4638 = vsub.f32 %v466, %v4637
        %v4639 = vand.u32 %v4638, 4294901760
        %4640 = vmatpush2.msra.mxu0 %v4639
        %4641 = vmatprep.subr.mxu0 0.0
        %v4642 = vand.u32 %v465, 4294901760
        %v4643 = vsub.f32 %v465, %v4642
        %v4644 = vand.u32 %v4643, 4294901760
        %4645 = vmatpush2.msra.mxu0 %v4644
        %4646 = vmatprep.subr.mxu0 0.0
        %v4647 = vand.u32 %v464, 4294901760
        %v4648 = vsub.f32 %v464, %v4647
        %v4649 = vand.u32 %v4648, 4294901760
        %4650 = vmatpush2.msra.mxu0 %v4649
        %4651 = vmatprep.subr.mxu0 0.0
        %v4652 = vand.u32 %v463, 4294901760
        %v4653 = vsub.f32 %v463, %v4652
        %v4654 = vand.u32 %v4653, 4294901760
        %4655 = vmatpush2.msra.mxu0 %v4654
        %4656 = vmatprep.subr.mxu0 0.0
        %v4657 = vand.u32 %v462, 4294901760
        %v4658 = vsub.f32 %v462, %v4657
        %v4659 = vand.u32 %v4658, 4294901760
        %4660 = vmatpush2.msra.mxu0 %v4659
        %4661 = vmatprep.subr.mxu0 0.0
        %v4662 = vand.u32 %v461, 4294901760
        %v4663 = vsub.f32 %v461, %v4662
        %v4664 = vand.u32 %v4663, 4294901760
        %4665 = vmatpush2.msra.mxu0 %v4664
        %4666 = vmatprep.subr.mxu0 0.0
        %v4667 = vand.u32 %v460, 4294901760
        %v4668 = vsub.f32 %v460, %v4667
        %v4669 = vand.u32 %v4668, 4294901760
        %4670 = vmatpush2.msra.mxu0 %v4669
        %4671 = vmatprep.subr.mxu0 0.0
        %v4672 = vand.u32 %v459, 4294901760
        %v4673 = vsub.f32 %v459, %v4672
        %v4674 = vand.u32 %v4673, 4294901760
        %4675 = vmatpush2.msra.mxu0 %v4674
        %4676 = vmatprep.subr.mxu0 0.0
        %v4677 = vand.u32 %v458, 4294901760
        %v4678 = vsub.f32 %v458, %v4677
        %v4679 = vand.u32 %v4678, 4294901760
        %4680 = vmatpush2.msra.mxu0 %v4679
        %v4681 = vand.u32 %v287, 4294901760
        %4682 = vmatprep.mubr.f32.mxu0 %v4681
        %v4683 = vand.u32 %v286, 4294901760
        %4684 = vmatmul.mubr.f32.gmra.mxu0 %v4683
        %v4685 = vpop.f32.mrf.mxu0
        %v4686 = vadd.f32 %v4397, %v4685
        %v4687 = vpop.f32.mrf.mxu0
        %v4688 = vand.u32 %v295, 4294901760
        %4689 = vmatprep.mubr.f32.mxu0 %v4688
        %v4690 = vand.u32 %v294, 4294901760
        %4691 = vmatmul.mubr.f32.gmra.mxu0 %v4690
        %v4692 = vpop.f32.mrf.mxu0
        %v4693 = vadd.f32 %v4408, %v4692
        %v4694 = vpop.f32.mrf.mxu0
        %v4695 = vand.u32 %v303, 4294901760
        %4696 = vmatprep.mubr.f32.mxu0 %v4695
        %v4697 = vand.u32 %v302, 4294901760
        %4698 = vmatmul.mubr.f32.gmra.mxu0 %v4697
        %v4699 = vpop.f32.mrf.mxu0
        %v4700 = vadd.f32 %v4419, %v4699
        %v4701 = vpop.f32.mrf.mxu0
        %v4702 = vand.u32 %v311, 4294901760
        %4703 = vmatprep.mubr.f32.mxu0 %v4702
        %v4704 = vand.u32 %v310, 4294901760
        %4705 = vmatmul.mubr.f32.gmra.mxu0 %v4704
        %v4706 = vpop.f32.mrf.mxu0
        %v4707 = vadd.f32 %v4430, %v4706
        %v4708 = vpop.f32.mrf.mxu0
        %v4709 = vand.u32 %v319, 4294901760
        %4710 = vmatprep.mubr.f32.mxu0 %v4709
        %v4711 = vand.u32 %v318, 4294901760
        %4712 = vmatmul.mubr.f32.gmra.mxu0 %v4711
        %v4713 = vpop.f32.mrf.mxu0
        %v4714 = vadd.f32 %v4441, %v4713
        %v4715 = vpop.f32.mrf.mxu0
        %v4716 = vand.u32 %v327, 4294901760
        %4717 = vmatprep.mubr.f32.mxu0 %v4716
        %v4718 = vand.u32 %v326, 4294901760
        %4719 = vmatmul.mubr.f32.gmra.mxu0 %v4718
        %v4720 = vpop.f32.mrf.mxu0
        %v4721 = vadd.f32 %v4452, %v4720
        %v4722 = vpop.f32.mrf.mxu0
        %v4723 = vand.u32 %v335, 4294901760
        %4724 = vmatprep.mubr.f32.mxu0 %v4723
        %v4725 = vand.u32 %v334, 4294901760
        %4726 = vmatmul.mubr.f32.gmra.mxu0 %v4725
        %v4727 = vpop.f32.mrf.mxu0
        %v4728 = vadd.f32 %v4463, %v4727
        %v4729 = vpop.f32.mrf.mxu0
        %v4730 = vand.u32 %v343, 4294901760
        %4731 = vmatprep.mubr.f32.mxu0 %v4730
        %v4732 = vand.u32 %v342, 4294901760
        %4733 = vmatmul.mubr.f32.gmra.mxu0 %v4732
        %v4734 = vpop.f32.mrf.mxu0
        %v4735 = vadd.f32 %v4474, %v4734
        %v4736 = vpop.f32.mrf.mxu0
        %v4737 = vand.u32 %v351, 4294901760
        %4738 = vmatprep.mubr.f32.mxu0 %v4737
        %v4739 = vand.u32 %v350, 4294901760
        %4740 = vmatmul.mubr.f32.gmra.mxu0 %v4739
        %v4741 = vpop.f32.mrf.mxu0
        %v4742 = vadd.f32 %v4485, %v4741
        %v4743 = vpop.f32.mrf.mxu0
        %v4744 = vand.u32 %v359, 4294901760
        %4745 = vmatprep.mubr.f32.mxu0 %v4744
        %v4746 = vand.u32 %v358, 4294901760
        %4747 = vmatmul.mubr.f32.gmra.mxu0 %v4746
        %v4748 = vpop.f32.mrf.mxu0
        %v4749 = vadd.f32 %v4496, %v4748
        %v4750 = vpop.f32.mrf.mxu0
        %v4751 = vand.u32 %v367, 4294901760
        %4752 = vmatprep.mubr.f32.mxu0 %v4751
        %v4753 = vand.u32 %v366, 4294901760
        %4754 = vmatmul.mubr.f32.gmra.mxu0 %v4753
        %v4755 = vpop.f32.mrf.mxu0
        %v4756 = vadd.f32 %v4507, %v4755
        %v4757 = vpop.f32.mrf.mxu0
        %v4758 = vand.u32 %v375, 4294901760
        %4759 = vmatprep.mubr.f32.mxu0 %v4758
        %v4760 = vand.u32 %v374, 4294901760
        %4761 = vmatmul.mubr.f32.gmra.mxu0 %v4760
        %v4762 = vpop.f32.mrf.mxu0
        %v4763 = vadd.f32 %v4518, %v4762
        %v4764 = vpop.f32.mrf.mxu0
        %4765 = vdwg.mxu0
        %4766 = vmatprep.subr.mxu0 0.0
        %v4767 = vand.u32 %v457, 4294901760
        %4768 = vmatpush1.msra.mxu0 %v4767
        %4769 = vmatprep.subr.mxu0 0.0
        %v4770 = vand.u32 %v456, 4294901760
        %4771 = vmatpush1.msra.mxu0 %v4770
        %4772 = vmatprep.subr.mxu0 0.0
        %v4773 = vand.u32 %v455, 4294901760
        %4774 = vmatpush1.msra.mxu0 %v4773
        %4775 = vmatprep.subr.mxu0 0.0
        %v4776 = vand.u32 %v454, 4294901760
        %4777 = vmatpush1.msra.mxu0 %v4776
        %4778 = vmatprep.subr.mxu0 0.0
        %v4779 = vand.u32 %v453, 4294901760
        %4780 = vmatpush1.msra.mxu0 %v4779
        %4781 = vmatprep.subr.mxu0 0.0
        %v4782 = vand.u32 %v452, 4294901760
        %4783 = vmatpush1.msra.mxu0 %v4782
        %4784 = vmatprep.subr.mxu0 0.0
        %v4785 = vand.u32 %v451, 4294901760
        %4786 = vmatpush1.msra.mxu0 %v4785
        %4787 = vmatprep.subr.mxu0 0.0
        %v4788 = vand.u32 %v450, 4294901760
        %4789 = vmatpush1.msra.mxu0 %v4788
        %4790 = vmatprep.subr.mxu0 0.0
        %v4791 = vand.u32 %v449, 4294901760
        %4792 = vmatpush1.msra.mxu0 %v4791
        %4793 = vmatprep.subr.mxu0 0.0
        %v4794 = vand.u32 %v448, 4294901760
        %4795 = vmatpush1.msra.mxu0 %v4794
        %4796 = vmatprep.subr.mxu0 0.0
        %v4797 = vand.u32 %v447, 4294901760
        %4798 = vmatpush1.msra.mxu0 %v4797
        %4799 = vmatprep.subr.mxu0 0.0
        %v4800 = vand.u32 %v446, 4294901760
        %4801 = vmatpush1.msra.mxu0 %v4800
        %4802 = vmatprep.subr.mxu0 0.0
        %v4803 = vand.u32 %v445, 4294901760
        %4804 = vmatpush1.msra.mxu0 %v4803
        %4805 = vmatprep.subr.mxu0 0.0
        %v4806 = vand.u32 %v444, 4294901760
        %4807 = vmatpush1.msra.mxu0 %v4806
        %4808 = vmatprep.subr.mxu0 0.0
        %v4809 = vand.u32 %v443, 4294901760
        %4810 = vmatpush1.msra.mxu0 %v4809
        %4811 = vmatprep.subr.mxu0 0.0
        %v4812 = vand.u32 %v442, 4294901760
        %4813 = vmatpush1.msra.mxu0 %v4812
        %4814 = vmatprep.subr.mxu0 0.0
        %v4815 = vand.u32 %v473, 4294901760
        %4816 = vmatpush2.msra.mxu0 %v4815
        %4817 = vmatprep.subr.mxu0 0.0
        %v4818 = vand.u32 %v472, 4294901760
        %4819 = vmatpush2.msra.mxu0 %v4818
        %4820 = vmatprep.subr.mxu0 0.0
        %v4821 = vand.u32 %v471, 4294901760
        %4822 = vmatpush2.msra.mxu0 %v4821
        %4823 = vmatprep.subr.mxu0 0.0
        %v4824 = vand.u32 %v470, 4294901760
        %4825 = vmatpush2.msra.mxu0 %v4824
        %4826 = vmatprep.subr.mxu0 0.0
        %v4827 = vand.u32 %v469, 4294901760
        %4828 = vmatpush2.msra.mxu0 %v4827
        %4829 = vmatprep.subr.mxu0 0.0
        %v4830 = vand.u32 %v468, 4294901760
        %4831 = vmatpush2.msra.mxu0 %v4830
        %4832 = vmatprep.subr.mxu0 0.0
        %v4833 = vand.u32 %v467, 4294901760
        %4834 = vmatpush2.msra.mxu0 %v4833
        %4835 = vmatprep.subr.mxu0 0.0
        %v4836 = vand.u32 %v466, 4294901760
        %4837 = vmatpush2.msra.mxu0 %v4836
        %4838 = vmatprep.subr.mxu0 0.0
        %v4839 = vand.u32 %v465, 4294901760
        %4840 = vmatpush2.msra.mxu0 %v4839
        %4841 = vmatprep.subr.mxu0 0.0
        %v4842 = vand.u32 %v464, 4294901760
        %4843 = vmatpush2.msra.mxu0 %v4842
        %4844 = vmatprep.subr.mxu0 0.0
        %v4845 = vand.u32 %v463, 4294901760
        %4846 = vmatpush2.msra.mxu0 %v4845
        %4847 = vmatprep.subr.mxu0 0.0
        %v4848 = vand.u32 %v462, 4294901760
        %4849 = vmatpush2.msra.mxu0 %v4848
        %4850 = vmatprep.subr.mxu0 0.0
        %v4851 = vand.u32 %v461, 4294901760
        %4852 = vmatpush2.msra.mxu0 %v4851
        %4853 = vmatprep.subr.mxu0 0.0
        %v4854 = vand.u32 %v460, 4294901760
        %4855 = vmatpush2.msra.mxu0 %v4854
        %4856 = vmatprep.subr.mxu0 0.0
        %v4857 = vand.u32 %v459, 4294901760
        %4858 = vmatpush2.msra.mxu0 %v4857
        %4859 = vmatprep.subr.mxu0 0.0
        %v4860 = vand.u32 %v458, 4294901760
        %4861 = vmatpush2.msra.mxu0 %v4860
        %v4862 = vand.u32 %v287, 4294901760
        %4863 = vmatprep.mubr.f32.mxu0 %v4862
        %v4864 = vand.u32 %v286, 4294901760
        %4865 = vmatmul.mubr.f32.gmra.mxu0 %v4864
        %v4866 = vpop.f32.mrf.mxu0
        %v4867 = vadd.f32 %v4686, %v4866
        %v4868 = vpop.f32.mrf.mxu0
        %v4869 = vand.u32 %v295, 4294901760
        %4870 = vmatprep.mubr.f32.mxu0 %v4869
        %v4871 = vand.u32 %v294, 4294901760
        %4872 = vmatmul.mubr.f32.gmra.mxu0 %v4871
        %v4873 = vpop.f32.mrf.mxu0
        %v4874 = vadd.f32 %v4693, %v4873
        %v4875 = vpop.f32.mrf.mxu0
        %v4876 = vand.u32 %v303, 4294901760
        %4877 = vmatprep.mubr.f32.mxu0 %v4876
        %v4878 = vand.u32 %v302, 4294901760
        %4879 = vmatmul.mubr.f32.gmra.mxu0 %v4878
        %v4880 = vpop.f32.mrf.mxu0
        %v4881 = vadd.f32 %v4700, %v4880
        %v4882 = vpop.f32.mrf.mxu0
        %v4883 = vand.u32 %v311, 4294901760
        %4884 = vmatprep.mubr.f32.mxu0 %v4883
        %v4885 = vand.u32 %v310, 4294901760
        %4886 = vmatmul.mubr.f32.gmra.mxu0 %v4885
        %v4887 = vpop.f32.mrf.mxu0
        %v4888 = vadd.f32 %v4707, %v4887
        %v4889 = vpop.f32.mrf.mxu0
        %v4890 = vand.u32 %v319, 4294901760
        %4891 = vmatprep.mubr.f32.mxu0 %v4890
        %v4892 = vand.u32 %v318, 4294901760
        %4893 = vmatmul.mubr.f32.gmra.mxu0 %v4892
        %v4894 = vpop.f32.mrf.mxu0
        %v4895 = vadd.f32 %v4714, %v4894
        %v4896 = vpop.f32.mrf.mxu0
        %v4897 = vand.u32 %v327, 4294901760
        %4898 = vmatprep.mubr.f32.mxu0 %v4897
        %v4899 = vand.u32 %v326, 4294901760
        %4900 = vmatmul.mubr.f32.gmra.mxu0 %v4899
        %v4901 = vpop.f32.mrf.mxu0
        %v4902 = vadd.f32 %v4721, %v4901
        %v4903 = vpop.f32.mrf.mxu0
        %v4904 = vand.u32 %v335, 4294901760
        %4905 = vmatprep.mubr.f32.mxu0 %v4904
        %v4906 = vand.u32 %v334, 4294901760
        %4907 = vmatmul.mubr.f32.gmra.mxu0 %v4906
        %v4908 = vpop.f32.mrf.mxu0
        %v4909 = vadd.f32 %v4728, %v4908
        %v4910 = vpop.f32.mrf.mxu0
        %v4911 = vand.u32 %v343, 4294901760
        %4912 = vmatprep.mubr.f32.mxu0 %v4911
        %v4913 = vand.u32 %v342, 4294901760
        %4914 = vmatmul.mubr.f32.gmra.mxu0 %v4913
        %v4915 = vpop.f32.mrf.mxu0
        %v4916 = vadd.f32 %v4735, %v4915
        %v4917 = vpop.f32.mrf.mxu0
        %v4918 = vand.u32 %v351, 4294901760
        %4919 = vmatprep.mubr.f32.mxu0 %v4918
        %v4920 = vand.u32 %v350, 4294901760
        %4921 = vmatmul.mubr.f32.gmra.mxu0 %v4920
        %v4922 = vpop.f32.mrf.mxu0
        %v4923 = vadd.f32 %v4742, %v4922
        %v4924 = vpop.f32.mrf.mxu0
        %v4925 = vand.u32 %v359, 4294901760
        %4926 = vmatprep.mubr.f32.mxu0 %v4925
        %v4927 = vand.u32 %v358, 4294901760
        %4928 = vmatmul.mubr.f32.gmra.mxu0 %v4927
        %v4929 = vpop.f32.mrf.mxu0
        %v4930 = vadd.f32 %v4749, %v4929
        %v4931 = vpop.f32.mrf.mxu0
        %v4932 = vand.u32 %v367, 4294901760
        %4933 = vmatprep.mubr.f32.mxu0 %v4932
        %v4934 = vand.u32 %v366, 4294901760
        %4935 = vmatmul.mubr.f32.gmra.mxu0 %v4934
        %v4936 = vpop.f32.mrf.mxu0
        %v4937 = vadd.f32 %v4756, %v4936
        %v4938 = vpop.f32.mrf.mxu0
        %v4939 = vand.u32 %v375, 4294901760
        %4940 = vmatprep.mubr.f32.mxu0 %v4939
        %v4941 = vand.u32 %v374, 4294901760
        %4942 = vmatmul.mubr.f32.gmra.mxu0 %v4941
        %v4943 = vpop.f32.mrf.mxu0
        %v4944 = vadd.f32 %v4763, %v4943
        %v4945 = vpop.f32.mrf.mxu0
        %4946 = vdwg.mxu0
        %4947 = vmatprep.subr.mxu0 0.0
        %v4948 = vand.u32 %v489, 4294901760
        %4949 = vmatpush1.msra.mxu0 %v4948
        %4950 = vmatprep.subr.mxu0 0.0
        %v4951 = vand.u32 %v488, 4294901760
        %4952 = vmatpush1.msra.mxu0 %v4951
        %4953 = vmatprep.subr.mxu0 0.0
        %v4954 = vand.u32 %v487, 4294901760
        %4955 = vmatpush1.msra.mxu0 %v4954
        %4956 = vmatprep.subr.mxu0 0.0
        %v4957 = vand.u32 %v486, 4294901760
        %4958 = vmatpush1.msra.mxu0 %v4957
        %4959 = vmatprep.subr.mxu0 0.0
        %v4960 = vand.u32 %v485, 4294901760
        %4961 = vmatpush1.msra.mxu0 %v4960
        %4962 = vmatprep.subr.mxu0 0.0
        %v4963 = vand.u32 %v484, 4294901760
        %4964 = vmatpush1.msra.mxu0 %v4963
        %4965 = vmatprep.subr.mxu0 0.0
        %v4966 = vand.u32 %v483, 4294901760
        %4967 = vmatpush1.msra.mxu0 %v4966
        %4968 = vmatprep.subr.mxu0 0.0
        %v4969 = vand.u32 %v482, 4294901760
        %4970 = vmatpush1.msra.mxu0 %v4969
        %4971 = vmatprep.subr.mxu0 0.0
        %v4972 = vand.u32 %v481, 4294901760
        %4973 = vmatpush1.msra.mxu0 %v4972
        %4974 = vmatprep.subr.mxu0 0.0
        %v4975 = vand.u32 %v480, 4294901760
        %4976 = vmatpush1.msra.mxu0 %v4975
        %4977 = vmatprep.subr.mxu0 0.0
        %v4978 = vand.u32 %v479, 4294901760
        %4979 = vmatpush1.msra.mxu0 %v4978
        %4980 = vmatprep.subr.mxu0 0.0
        %v4981 = vand.u32 %v478, 4294901760
        %4982 = vmatpush1.msra.mxu0 %v4981
        %4983 = vmatprep.subr.mxu0 0.0
        %v4984 = vand.u32 %v477, 4294901760
        %4985 = vmatpush1.msra.mxu0 %v4984
        %4986 = vmatprep.subr.mxu0 0.0
        %v4987 = vand.u32 %v476, 4294901760
        %4988 = vmatpush1.msra.mxu0 %v4987
        %4989 = vmatprep.subr.mxu0 0.0
        %v4990 = vand.u32 %v475, 4294901760
        %4991 = vmatpush1.msra.mxu0 %v4990
        %4992 = vmatprep.subr.mxu0 0.0
        %v4993 = vand.u32 %v474, 4294901760
        %4994 = vmatpush1.msra.mxu0 %v4993
        %4995 = vmatprep.subr.mxu0 0.0
        %v4996 = vand.u32 %v505, 4294901760
        %4997 = vmatpush2.msra.mxu0 %v4996
        %4998 = vmatprep.subr.mxu0 0.0
        %v4999 = vand.u32 %v504, 4294901760
        %5000 = vmatpush2.msra.mxu0 %v4999
        %5001 = vmatprep.subr.mxu0 0.0
        %v5002 = vand.u32 %v503, 4294901760
        %5003 = vmatpush2.msra.mxu0 %v5002
        %5004 = vmatprep.subr.mxu0 0.0
        %v5005 = vand.u32 %v502, 4294901760
        %5006 = vmatpush2.msra.mxu0 %v5005
        %5007 = vmatprep.subr.mxu0 0.0
        %v5008 = vand.u32 %v501, 4294901760
        %5009 = vmatpush2.msra.mxu0 %v5008
        %5010 = vmatprep.subr.mxu0 0.0
        %v5011 = vand.u32 %v500, 4294901760
        %5012 = vmatpush2.msra.mxu0 %v5011
        %5013 = vmatprep.subr.mxu0 0.0
        %v5014 = vand.u32 %v499, 4294901760
        %5015 = vmatpush2.msra.mxu0 %v5014
        %5016 = vmatprep.subr.mxu0 0.0
        %v5017 = vand.u32 %v498, 4294901760
        %5018 = vmatpush2.msra.mxu0 %v5017
        %5019 = vmatprep.subr.mxu0 0.0
        %v5020 = vand.u32 %v497, 4294901760
        %5021 = vmatpush2.msra.mxu0 %v5020
        %5022 = vmatprep.subr.mxu0 0.0
        %v5023 = vand.u32 %v496, 4294901760
        %5024 = vmatpush2.msra.mxu0 %v5023
        %5025 = vmatprep.subr.mxu0 0.0
        %v5026 = vand.u32 %v495, 4294901760
        %5027 = vmatpush2.msra.mxu0 %v5026
        %5028 = vmatprep.subr.mxu0 0.0
        %v5029 = vand.u32 %v494, 4294901760
        %5030 = vmatpush2.msra.mxu0 %v5029
        %5031 = vmatprep.subr.mxu0 0.0
        %v5032 = vand.u32 %v493, 4294901760
        %5033 = vmatpush2.msra.mxu0 %v5032
        %5034 = vmatprep.subr.mxu0 0.0
        %v5035 = vand.u32 %v492, 4294901760
        %5036 = vmatpush2.msra.mxu0 %v5035
        %5037 = vmatprep.subr.mxu0 0.0
        %v5038 = vand.u32 %v491, 4294901760
        %5039 = vmatpush2.msra.mxu0 %v5038
        %5040 = vmatprep.subr.mxu0 0.0
        %v5041 = vand.u32 %v490, 4294901760
        %5042 = vmatpush2.msra.mxu0 %v5041
        %v5043 = vand.u32 %v289, 4294901760
        %v5044 = vsub.f32 %v289, %v5043
        %v5045 = vand.u32 %v5044, 4294901760
        %v5046 = vsub.f32 %v5044, %v5045
        %v5047 = vand.u32 %v5046, 4294901760
        %5048 = vmatprep.mubr.f32.mxu0 %v5047
        %v5049 = vand.u32 %v288, 4294901760
        %v5050 = vsub.f32 %v288, %v5049
        %v5051 = vand.u32 %v5050, 4294901760
        %v5052 = vsub.f32 %v5050, %v5051
        %v5053 = vand.u32 %v5052, 4294901760
        %5054 = vmatmul.mubr.f32.gmra.mxu0 %v5053
        %v5055 = vpop.f32.mrf.mxu0
        %v5056 = vadd.f32 %v4867, %v5055
        %v5057 = vpop.f32.mrf.mxu0
        %v5058 = vand.u32 %v297, 4294901760
        %v5059 = vsub.f32 %v297, %v5058
        %v5060 = vand.u32 %v5059, 4294901760
        %v5061 = vsub.f32 %v5059, %v5060
        %v5062 = vand.u32 %v5061, 4294901760
        %5063 = vmatprep.mubr.f32.mxu0 %v5062
        %v5064 = vand.u32 %v296, 4294901760
        %v5065 = vsub.f32 %v296, %v5064
        %v5066 = vand.u32 %v5065, 4294901760
        %v5067 = vsub.f32 %v5065, %v5066
        %v5068 = vand.u32 %v5067, 4294901760
        %5069 = vmatmul.mubr.f32.gmra.mxu0 %v5068
        %v5070 = vpop.f32.mrf.mxu0
        %v5071 = vadd.f32 %v4874, %v5070
        %v5072 = vpop.f32.mrf.mxu0
        %v5073 = vand.u32 %v305, 4294901760
        %v5074 = vsub.f32 %v305, %v5073
        %v5075 = vand.u32 %v5074, 4294901760
        %v5076 = vsub.f32 %v5074, %v5075
        %v5077 = vand.u32 %v5076, 4294901760
        %5078 = vmatprep.mubr.f32.mxu0 %v5077
        %v5079 = vand.u32 %v304, 4294901760
        %v5080 = vsub.f32 %v304, %v5079
        %v5081 = vand.u32 %v5080, 4294901760
        %v5082 = vsub.f32 %v5080, %v5081
        %v5083 = vand.u32 %v5082, 4294901760
        %5084 = vmatmul.mubr.f32.gmra.mxu0 %v5083
        %v5085 = vpop.f32.mrf.mxu0
        %v5086 = vadd.f32 %v4881, %v5085
        %v5087 = vpop.f32.mrf.mxu0
        %v5088 = vand.u32 %v313, 4294901760
        %v5089 = vsub.f32 %v313, %v5088
        %v5090 = vand.u32 %v5089, 4294901760
        %v5091 = vsub.f32 %v5089, %v5090
        %v5092 = vand.u32 %v5091, 4294901760
        %5093 = vmatprep.mubr.f32.mxu0 %v5092
        %v5094 = vand.u32 %v312, 4294901760
        %v5095 = vsub.f32 %v312, %v5094
        %v5096 = vand.u32 %v5095, 4294901760
        %v5097 = vsub.f32 %v5095, %v5096
        %v5098 = vand.u32 %v5097, 4294901760
        %5099 = vmatmul.mubr.f32.gmra.mxu0 %v5098
        %v5100 = vpop.f32.mrf.mxu0
        %v5101 = vadd.f32 %v4888, %v5100
        %v5102 = vpop.f32.mrf.mxu0
        %v5103 = vand.u32 %v321, 4294901760
        %v5104 = vsub.f32 %v321, %v5103
        %v5105 = vand.u32 %v5104, 4294901760
        %v5106 = vsub.f32 %v5104, %v5105
        %v5107 = vand.u32 %v5106, 4294901760
        %5108 = vmatprep.mubr.f32.mxu0 %v5107
        %v5109 = vand.u32 %v320, 4294901760
        %v5110 = vsub.f32 %v320, %v5109
        %v5111 = vand.u32 %v5110, 4294901760
        %v5112 = vsub.f32 %v5110, %v5111
        %v5113 = vand.u32 %v5112, 4294901760
        %5114 = vmatmul.mubr.f32.gmra.mxu0 %v5113
        %v5115 = vpop.f32.mrf.mxu0
        %v5116 = vadd.f32 %v4895, %v5115
        %v5117 = vpop.f32.mrf.mxu0
        %v5118 = vand.u32 %v329, 4294901760
        %v5119 = vsub.f32 %v329, %v5118
        %v5120 = vand.u32 %v5119, 4294901760
        %v5121 = vsub.f32 %v5119, %v5120
        %v5122 = vand.u32 %v5121, 4294901760
        %5123 = vmatprep.mubr.f32.mxu0 %v5122
        %v5124 = vand.u32 %v328, 4294901760
        %v5125 = vsub.f32 %v328, %v5124
        %v5126 = vand.u32 %v5125, 4294901760
        %v5127 = vsub.f32 %v5125, %v5126
        %v5128 = vand.u32 %v5127, 4294901760
        %5129 = vmatmul.mubr.f32.gmra.mxu0 %v5128
        %v5130 = vpop.f32.mrf.mxu0
        %v5131 = vadd.f32 %v4902, %v5130
        %v5132 = vpop.f32.mrf.mxu0
        %v5133 = vand.u32 %v337, 4294901760
        %v5134 = vsub.f32 %v337, %v5133
        %v5135 = vand.u32 %v5134, 4294901760
        %v5136 = vsub.f32 %v5134, %v5135
        %v5137 = vand.u32 %v5136, 4294901760
        %5138 = vmatprep.mubr.f32.mxu0 %v5137
        %v5139 = vand.u32 %v336, 4294901760
        %v5140 = vsub.f32 %v336, %v5139
        %v5141 = vand.u32 %v5140, 4294901760
        %v5142 = vsub.f32 %v5140, %v5141
        %v5143 = vand.u32 %v5142, 4294901760
        %5144 = vmatmul.mubr.f32.gmra.mxu0 %v5143
        %v5145 = vpop.f32.mrf.mxu0
        %v5146 = vadd.f32 %v4909, %v5145
        %v5147 = vpop.f32.mrf.mxu0
        %v5148 = vand.u32 %v345, 4294901760
        %v5149 = vsub.f32 %v345, %v5148
        %v5150 = vand.u32 %v5149, 4294901760
        %v5151 = vsub.f32 %v5149, %v5150
        %v5152 = vand.u32 %v5151, 4294901760
        %5153 = vmatprep.mubr.f32.mxu0 %v5152
        %v5154 = vand.u32 %v344, 4294901760
        %v5155 = vsub.f32 %v344, %v5154
        %v5156 = vand.u32 %v5155, 4294901760
        %v5157 = vsub.f32 %v5155, %v5156
        %v5158 = vand.u32 %v5157, 4294901760
        %5159 = vmatmul.mubr.f32.gmra.mxu0 %v5158
        %v5160 = vpop.f32.mrf.mxu0
        %v5161 = vadd.f32 %v4916, %v5160
        %v5162 = vpop.f32.mrf.mxu0
        %v5163 = vand.u32 %v353, 4294901760
        %v5164 = vsub.f32 %v353, %v5163
        %v5165 = vand.u32 %v5164, 4294901760
        %v5166 = vsub.f32 %v5164, %v5165
        %v5167 = vand.u32 %v5166, 4294901760
        %5168 = vmatprep.mubr.f32.mxu0 %v5167
        %v5169 = vand.u32 %v352, 4294901760
        %v5170 = vsub.f32 %v352, %v5169
        %v5171 = vand.u32 %v5170, 4294901760
        %v5172 = vsub.f32 %v5170, %v5171
        %v5173 = vand.u32 %v5172, 4294901760
        %5174 = vmatmul.mubr.f32.gmra.mxu0 %v5173
        %v5175 = vpop.f32.mrf.mxu0
        %v5176 = vadd.f32 %v4923, %v5175
        %v5177 = vpop.f32.mrf.mxu0
        %v5178 = vand.u32 %v361, 4294901760
        %v5179 = vsub.f32 %v361, %v5178
        %v5180 = vand.u32 %v5179, 4294901760
        %v5181 = vsub.f32 %v5179, %v5180
        %v5182 = vand.u32 %v5181, 4294901760
        %5183 = vmatprep.mubr.f32.mxu0 %v5182
        %v5184 = vand.u32 %v360, 4294901760
        %v5185 = vsub.f32 %v360, %v5184
        %v5186 = vand.u32 %v5185, 4294901760
        %v5187 = vsub.f32 %v5185, %v5186
        %v5188 = vand.u32 %v5187, 4294901760
        %5189 = vmatmul.mubr.f32.gmra.mxu0 %v5188
        %v5190 = vpop.f32.mrf.mxu0
        %v5191 = vadd.f32 %v4930, %v5190
        %v5192 = vpop.f32.mrf.mxu0
        %v5193 = vand.u32 %v369, 4294901760
        %v5194 = vsub.f32 %v369, %v5193
        %v5195 = vand.u32 %v5194, 4294901760
        %v5196 = vsub.f32 %v5194, %v5195
        %v5197 = vand.u32 %v5196, 4294901760
        %5198 = vmatprep.mubr.f32.mxu0 %v5197
        %v5199 = vand.u32 %v368, 4294901760
        %v5200 = vsub.f32 %v368, %v5199
        %v5201 = vand.u32 %v5200, 4294901760
        %v5202 = vsub.f32 %v5200, %v5201
        %v5203 = vand.u32 %v5202, 4294901760
        %5204 = vmatmul.mubr.f32.gmra.mxu0 %v5203
        %v5205 = vpop.f32.mrf.mxu0
        %v5206 = vadd.f32 %v4937, %v5205
        %v5207 = vpop.f32.mrf.mxu0
        %v5208 = vand.u32 %v377, 4294901760
        %v5209 = vsub.f32 %v377, %v5208
        %v5210 = vand.u32 %v5209, 4294901760
        %v5211 = vsub.f32 %v5209, %v5210
        %v5212 = vand.u32 %v5211, 4294901760
        %5213 = vmatprep.mubr.f32.mxu0 %v5212
        %v5214 = vand.u32 %v376, 4294901760
        %v5215 = vsub.f32 %v376, %v5214
        %v5216 = vand.u32 %v5215, 4294901760
        %v5217 = vsub.f32 %v5215, %v5216
        %v5218 = vand.u32 %v5217, 4294901760
        %5219 = vmatmul.mubr.f32.gmra.mxu0 %v5218
        %v5220 = vpop.f32.mrf.mxu0
        %v5221 = vadd.f32 %v4944, %v5220
        %v5222 = vpop.f32.mrf.mxu0
        %5223 = vdwg.mxu0
        %5224 = vmatprep.subr.mxu0 0.0
        %v5225 = vand.u32 %v489, 4294901760
        %v5226 = vsub.f32 %v489, %v5225
        %v5227 = vand.u32 %v5226, 4294901760
        %v5228 = vsub.f32 %v5226, %v5227
        %v5229 = vand.u32 %v5228, 4294901760
        %5230 = vmatpush1.msra.mxu0 %v5229
        %5231 = vmatprep.subr.mxu0 0.0
        %v5232 = vand.u32 %v488, 4294901760
        %v5233 = vsub.f32 %v488, %v5232
        %v5234 = vand.u32 %v5233, 4294901760
        %v5235 = vsub.f32 %v5233, %v5234
        %v5236 = vand.u32 %v5235, 4294901760
        %5237 = vmatpush1.msra.mxu0 %v5236
        %5238 = vmatprep.subr.mxu0 0.0
        %v5239 = vand.u32 %v487, 4294901760
        %v5240 = vsub.f32 %v487, %v5239
        %v5241 = vand.u32 %v5240, 4294901760
        %v5242 = vsub.f32 %v5240, %v5241
        %v5243 = vand.u32 %v5242, 4294901760
        %5244 = vmatpush1.msra.mxu0 %v5243
        %5245 = vmatprep.subr.mxu0 0.0
        %v5246 = vand.u32 %v486, 4294901760
        %v5247 = vsub.f32 %v486, %v5246
        %v5248 = vand.u32 %v5247, 4294901760
        %v5249 = vsub.f32 %v5247, %v5248
        %v5250 = vand.u32 %v5249, 4294901760
        %5251 = vmatpush1.msra.mxu0 %v5250
        %5252 = vmatprep.subr.mxu0 0.0
        %v5253 = vand.u32 %v485, 4294901760
        %v5254 = vsub.f32 %v485, %v5253
        %v5255 = vand.u32 %v5254, 4294901760
        %v5256 = vsub.f32 %v5254, %v5255
        %v5257 = vand.u32 %v5256, 4294901760
        %5258 = vmatpush1.msra.mxu0 %v5257
        %5259 = vmatprep.subr.mxu0 0.0
        %v5260 = vand.u32 %v484, 4294901760
        %v5261 = vsub.f32 %v484, %v5260
        %v5262 = vand.u32 %v5261, 4294901760
        %v5263 = vsub.f32 %v5261, %v5262
        %v5264 = vand.u32 %v5263, 4294901760
        %5265 = vmatpush1.msra.mxu0 %v5264
        %5266 = vmatprep.subr.mxu0 0.0
        %v5267 = vand.u32 %v483, 4294901760
        %v5268 = vsub.f32 %v483, %v5267
        %v5269 = vand.u32 %v5268, 4294901760
        %v5270 = vsub.f32 %v5268, %v5269
        %v5271 = vand.u32 %v5270, 4294901760
        %5272 = vmatpush1.msra.mxu0 %v5271
        %5273 = vmatprep.subr.mxu0 0.0
        %v5274 = vand.u32 %v482, 4294901760
        %v5275 = vsub.f32 %v482, %v5274
        %v5276 = vand.u32 %v5275, 4294901760
        %v5277 = vsub.f32 %v5275, %v5276
        %v5278 = vand.u32 %v5277, 4294901760
        %5279 = vmatpush1.msra.mxu0 %v5278
        %5280 = vmatprep.subr.mxu0 0.0
        %v5281 = vand.u32 %v481, 4294901760
        %v5282 = vsub.f32 %v481, %v5281
        %v5283 = vand.u32 %v5282, 4294901760
        %v5284 = vsub.f32 %v5282, %v5283
        %v5285 = vand.u32 %v5284, 4294901760
        %5286 = vmatpush1.msra.mxu0 %v5285
        %5287 = vmatprep.subr.mxu0 0.0
        %v5288 = vand.u32 %v480, 4294901760
        %v5289 = vsub.f32 %v480, %v5288
        %v5290 = vand.u32 %v5289, 4294901760
        %v5291 = vsub.f32 %v5289, %v5290
        %v5292 = vand.u32 %v5291, 4294901760
        %5293 = vmatpush1.msra.mxu0 %v5292
        %5294 = vmatprep.subr.mxu0 0.0
        %v5295 = vand.u32 %v479, 4294901760
        %v5296 = vsub.f32 %v479, %v5295
        %v5297 = vand.u32 %v5296, 4294901760
        %v5298 = vsub.f32 %v5296, %v5297
        %v5299 = vand.u32 %v5298, 4294901760
        %5300 = vmatpush1.msra.mxu0 %v5299
        %5301 = vmatprep.subr.mxu0 0.0
        %v5302 = vand.u32 %v478, 4294901760
        %v5303 = vsub.f32 %v478, %v5302
        %v5304 = vand.u32 %v5303, 4294901760
        %v5305 = vsub.f32 %v5303, %v5304
        %v5306 = vand.u32 %v5305, 4294901760
        %5307 = vmatpush1.msra.mxu0 %v5306
        %5308 = vmatprep.subr.mxu0 0.0
        %v5309 = vand.u32 %v477, 4294901760
        %v5310 = vsub.f32 %v477, %v5309
        %v5311 = vand.u32 %v5310, 4294901760
        %v5312 = vsub.f32 %v5310, %v5311
        %v5313 = vand.u32 %v5312, 4294901760
        %5314 = vmatpush1.msra.mxu0 %v5313
        %5315 = vmatprep.subr.mxu0 0.0
        %v5316 = vand.u32 %v476, 4294901760
        %v5317 = vsub.f32 %v476, %v5316
        %v5318 = vand.u32 %v5317, 4294901760
        %v5319 = vsub.f32 %v5317, %v5318
        %v5320 = vand.u32 %v5319, 4294901760
        %5321 = vmatpush1.msra.mxu0 %v5320
        %5322 = vmatprep.subr.mxu0 0.0
        %v5323 = vand.u32 %v475, 4294901760
        %v5324 = vsub.f32 %v475, %v5323
        %v5325 = vand.u32 %v5324, 4294901760
        %v5326 = vsub.f32 %v5324, %v5325
        %v5327 = vand.u32 %v5326, 4294901760
        %5328 = vmatpush1.msra.mxu0 %v5327
        %5329 = vmatprep.subr.mxu0 0.0
        %v5330 = vand.u32 %v474, 4294901760
        %v5331 = vsub.f32 %v474, %v5330
        %v5332 = vand.u32 %v5331, 4294901760
        %v5333 = vsub.f32 %v5331, %v5332
        %v5334 = vand.u32 %v5333, 4294901760
        %5335 = vmatpush1.msra.mxu0 %v5334
        %5336 = vmatprep.subr.mxu0 0.0
        %v5337 = vand.u32 %v505, 4294901760
        %v5338 = vsub.f32 %v505, %v5337
        %v5339 = vand.u32 %v5338, 4294901760
        %v5340 = vsub.f32 %v5338, %v5339
        %v5341 = vand.u32 %v5340, 4294901760
        %5342 = vmatpush2.msra.mxu0 %v5341
        %5343 = vmatprep.subr.mxu0 0.0
        %v5344 = vand.u32 %v504, 4294901760
        %v5345 = vsub.f32 %v504, %v5344
        %v5346 = vand.u32 %v5345, 4294901760
        %v5347 = vsub.f32 %v5345, %v5346
        %v5348 = vand.u32 %v5347, 4294901760
        %5349 = vmatpush2.msra.mxu0 %v5348
        %5350 = vmatprep.subr.mxu0 0.0
        %v5351 = vand.u32 %v503, 4294901760
        %v5352 = vsub.f32 %v503, %v5351
        %v5353 = vand.u32 %v5352, 4294901760
        %v5354 = vsub.f32 %v5352, %v5353
        %v5355 = vand.u32 %v5354, 4294901760
        %5356 = vmatpush2.msra.mxu0 %v5355
        %5357 = vmatprep.subr.mxu0 0.0
        %v5358 = vand.u32 %v502, 4294901760
        %v5359 = vsub.f32 %v502, %v5358
        %v5360 = vand.u32 %v5359, 4294901760
        %v5361 = vsub.f32 %v5359, %v5360
        %v5362 = vand.u32 %v5361, 4294901760
        %5363 = vmatpush2.msra.mxu0 %v5362
        %5364 = vmatprep.subr.mxu0 0.0
        %v5365 = vand.u32 %v501, 4294901760
        %v5366 = vsub.f32 %v501, %v5365
        %v5367 = vand.u32 %v5366, 4294901760
        %v5368 = vsub.f32 %v5366, %v5367
        %v5369 = vand.u32 %v5368, 4294901760
        %5370 = vmatpush2.msra.mxu0 %v5369
        %5371 = vmatprep.subr.mxu0 0.0
        %v5372 = vand.u32 %v500, 4294901760
        %v5373 = vsub.f32 %v500, %v5372
        %v5374 = vand.u32 %v5373, 4294901760
        %v5375 = vsub.f32 %v5373, %v5374
        %v5376 = vand.u32 %v5375, 4294901760
        %5377 = vmatpush2.msra.mxu0 %v5376
        %5378 = vmatprep.subr.mxu0 0.0
        %v5379 = vand.u32 %v499, 4294901760
        %v5380 = vsub.f32 %v499, %v5379
        %v5381 = vand.u32 %v5380, 4294901760
        %v5382 = vsub.f32 %v5380, %v5381
        %v5383 = vand.u32 %v5382, 4294901760
        %5384 = vmatpush2.msra.mxu0 %v5383
        %5385 = vmatprep.subr.mxu0 0.0
        %v5386 = vand.u32 %v498, 4294901760
        %v5387 = vsub.f32 %v498, %v5386
        %v5388 = vand.u32 %v5387, 4294901760
        %v5389 = vsub.f32 %v5387, %v5388
        %v5390 = vand.u32 %v5389, 4294901760
        %5391 = vmatpush2.msra.mxu0 %v5390
        %5392 = vmatprep.subr.mxu0 0.0
        %v5393 = vand.u32 %v497, 4294901760
        %v5394 = vsub.f32 %v497, %v5393
        %v5395 = vand.u32 %v5394, 4294901760
        %v5396 = vsub.f32 %v5394, %v5395
        %v5397 = vand.u32 %v5396, 4294901760
        %5398 = vmatpush2.msra.mxu0 %v5397
        %5399 = vmatprep.subr.mxu0 0.0
        %v5400 = vand.u32 %v496, 4294901760
        %v5401 = vsub.f32 %v496, %v5400
        %v5402 = vand.u32 %v5401, 4294901760
        %v5403 = vsub.f32 %v5401, %v5402
        %v5404 = vand.u32 %v5403, 4294901760
        %5405 = vmatpush2.msra.mxu0 %v5404
        %5406 = vmatprep.subr.mxu0 0.0
        %v5407 = vand.u32 %v495, 4294901760
        %v5408 = vsub.f32 %v495, %v5407
        %v5409 = vand.u32 %v5408, 4294901760
        %v5410 = vsub.f32 %v5408, %v5409
        %v5411 = vand.u32 %v5410, 4294901760
        %5412 = vmatpush2.msra.mxu0 %v5411
        %5413 = vmatprep.subr.mxu0 0.0
        %v5414 = vand.u32 %v494, 4294901760
        %v5415 = vsub.f32 %v494, %v5414
        %v5416 = vand.u32 %v5415, 4294901760
        %v5417 = vsub.f32 %v5415, %v5416
        %v5418 = vand.u32 %v5417, 4294901760
        %5419 = vmatpush2.msra.mxu0 %v5418
        %5420 = vmatprep.subr.mxu0 0.0
        %v5421 = vand.u32 %v493, 4294901760
        %v5422 = vsub.f32 %v493, %v5421
        %v5423 = vand.u32 %v5422, 4294901760
        %v5424 = vsub.f32 %v5422, %v5423
        %v5425 = vand.u32 %v5424, 4294901760
        %5426 = vmatpush2.msra.mxu0 %v5425
        %5427 = vmatprep.subr.mxu0 0.0
        %v5428 = vand.u32 %v492, 4294901760
        %v5429 = vsub.f32 %v492, %v5428
        %v5430 = vand.u32 %v5429, 4294901760
        %v5431 = vsub.f32 %v5429, %v5430
        %v5432 = vand.u32 %v5431, 4294901760
        %5433 = vmatpush2.msra.mxu0 %v5432
        %5434 = vmatprep.subr.mxu0 0.0
        %v5435 = vand.u32 %v491, 4294901760
        %v5436 = vsub.f32 %v491, %v5435
        %v5437 = vand.u32 %v5436, 4294901760
        %v5438 = vsub.f32 %v5436, %v5437
        %v5439 = vand.u32 %v5438, 4294901760
        %5440 = vmatpush2.msra.mxu0 %v5439
        %5441 = vmatprep.subr.mxu0 0.0
        %v5442 = vand.u32 %v490, 4294901760
        %v5443 = vsub.f32 %v490, %v5442
        %v5444 = vand.u32 %v5443, 4294901760
        %v5445 = vsub.f32 %v5443, %v5444
        %v5446 = vand.u32 %v5445, 4294901760
        %5447 = vmatpush2.msra.mxu0 %v5446
        %v5448 = vand.u32 %v289, 4294901760
        %5449 = vmatprep.mubr.f32.mxu0 %v5448
        %v5450 = vand.u32 %v288, 4294901760
        %5451 = vmatmul.mubr.f32.gmra.mxu0 %v5450
        %v5452 = vpop.f32.mrf.mxu0
        %v5453 = vadd.f32 %v5056, %v5452
        %v5454 = vpop.f32.mrf.mxu0
        %v5455 = vand.u32 %v297, 4294901760
        %5456 = vmatprep.mubr.f32.mxu0 %v5455
        %v5457 = vand.u32 %v296, 4294901760
        %5458 = vmatmul.mubr.f32.gmra.mxu0 %v5457
        %v5459 = vpop.f32.mrf.mxu0
        %v5460 = vadd.f32 %v5071, %v5459
        %v5461 = vpop.f32.mrf.mxu0
        %v5462 = vand.u32 %v305, 4294901760
        %5463 = vmatprep.mubr.f32.mxu0 %v5462
        %v5464 = vand.u32 %v304, 4294901760
        %5465 = vmatmul.mubr.f32.gmra.mxu0 %v5464
        %v5466 = vpop.f32.mrf.mxu0
        %v5467 = vadd.f32 %v5086, %v5466
        %v5468 = vpop.f32.mrf.mxu0
        %v5469 = vand.u32 %v313, 4294901760
        %5470 = vmatprep.mubr.f32.mxu0 %v5469
        %v5471 = vand.u32 %v312, 4294901760
        %5472 = vmatmul.mubr.f32.gmra.mxu0 %v5471
        %v5473 = vpop.f32.mrf.mxu0
        %v5474 = vadd.f32 %v5101, %v5473
        %v5475 = vpop.f32.mrf.mxu0
        %v5476 = vand.u32 %v321, 4294901760
        %5477 = vmatprep.mubr.f32.mxu0 %v5476
        %v5478 = vand.u32 %v320, 4294901760
        %5479 = vmatmul.mubr.f32.gmra.mxu0 %v5478
        %v5480 = vpop.f32.mrf.mxu0
        %v5481 = vadd.f32 %v5116, %v5480
        %v5482 = vpop.f32.mrf.mxu0
        %v5483 = vand.u32 %v329, 4294901760
        %5484 = vmatprep.mubr.f32.mxu0 %v5483
        %v5485 = vand.u32 %v328, 4294901760
        %5486 = vmatmul.mubr.f32.gmra.mxu0 %v5485
        %v5487 = vpop.f32.mrf.mxu0
        %v5488 = vadd.f32 %v5131, %v5487
        %v5489 = vpop.f32.mrf.mxu0
        %v5490 = vand.u32 %v337, 4294901760
        %5491 = vmatprep.mubr.f32.mxu0 %v5490
        %v5492 = vand.u32 %v336, 4294901760
        %5493 = vmatmul.mubr.f32.gmra.mxu0 %v5492
        %v5494 = vpop.f32.mrf.mxu0
        %v5495 = vadd.f32 %v5146, %v5494
        %v5496 = vpop.f32.mrf.mxu0
        %v5497 = vand.u32 %v345, 4294901760
        %5498 = vmatprep.mubr.f32.mxu0 %v5497
        %v5499 = vand.u32 %v344, 4294901760
        %5500 = vmatmul.mubr.f32.gmra.mxu0 %v5499
        %v5501 = vpop.f32.mrf.mxu0
        %v5502 = vadd.f32 %v5161, %v5501
        %v5503 = vpop.f32.mrf.mxu0
        %v5504 = vand.u32 %v353, 4294901760
        %5505 = vmatprep.mubr.f32.mxu0 %v5504
        %v5506 = vand.u32 %v352, 4294901760
        %5507 = vmatmul.mubr.f32.gmra.mxu0 %v5506
        %v5508 = vpop.f32.mrf.mxu0
        %v5509 = vadd.f32 %v5176, %v5508
        %v5510 = vpop.f32.mrf.mxu0
        %v5511 = vand.u32 %v361, 4294901760
        %5512 = vmatprep.mubr.f32.mxu0 %v5511
        %v5513 = vand.u32 %v360, 4294901760
        %5514 = vmatmul.mubr.f32.gmra.mxu0 %v5513
        %v5515 = vpop.f32.mrf.mxu0
        %v5516 = vadd.f32 %v5191, %v5515
        %v5517 = vpop.f32.mrf.mxu0
        %v5518 = vand.u32 %v369, 4294901760
        %5519 = vmatprep.mubr.f32.mxu0 %v5518
        %v5520 = vand.u32 %v368, 4294901760
        %5521 = vmatmul.mubr.f32.gmra.mxu0 %v5520
        %v5522 = vpop.f32.mrf.mxu0
        %v5523 = vadd.f32 %v5206, %v5522
        %v5524 = vpop.f32.mrf.mxu0
        %v5525 = vand.u32 %v377, 4294901760
        %5526 = vmatprep.mubr.f32.mxu0 %v5525
        %v5527 = vand.u32 %v376, 4294901760
        %5528 = vmatmul.mubr.f32.gmra.mxu0 %v5527
        %v5529 = vpop.f32.mrf.mxu0
        %v5530 = vadd.f32 %v5221, %v5529
        %v5531 = vpop.f32.mrf.mxu0
        %5532 = vdwg.mxu0
        %5533 = vmatprep.subr.mxu0 0.0
        %v5534 = vand.u32 %v489, 4294901760
        %v5535 = vsub.f32 %v489, %v5534
        %5536 = vmatpush1.msra.mxu0 %v5535
        %5537 = vmatprep.subr.mxu0 0.0
        %v5538 = vand.u32 %v488, 4294901760
        %v5539 = vsub.f32 %v488, %v5538
        %5540 = vmatpush1.msra.mxu0 %v5539
        %5541 = vmatprep.subr.mxu0 0.0
        %v5542 = vand.u32 %v487, 4294901760
        %v5543 = vsub.f32 %v487, %v5542
        %5544 = vmatpush1.msra.mxu0 %v5543
        %5545 = vmatprep.subr.mxu0 0.0
        %v5546 = vand.u32 %v486, 4294901760
        %v5547 = vsub.f32 %v486, %v5546
        %5548 = vmatpush1.msra.mxu0 %v5547
        %5549 = vmatprep.subr.mxu0 0.0
        %v5550 = vand.u32 %v485, 4294901760
        %v5551 = vsub.f32 %v485, %v5550
        %5552 = vmatpush1.msra.mxu0 %v5551
        %5553 = vmatprep.subr.mxu0 0.0
        %v5554 = vand.u32 %v484, 4294901760
        %v5555 = vsub.f32 %v484, %v5554
        %5556 = vmatpush1.msra.mxu0 %v5555
        %5557 = vmatprep.subr.mxu0 0.0
        %v5558 = vand.u32 %v483, 4294901760
        %v5559 = vsub.f32 %v483, %v5558
        %5560 = vmatpush1.msra.mxu0 %v5559
        %5561 = vmatprep.subr.mxu0 0.0
        %v5562 = vand.u32 %v482, 4294901760
        %v5563 = vsub.f32 %v482, %v5562
        %5564 = vmatpush1.msra.mxu0 %v5563
        %5565 = vmatprep.subr.mxu0 0.0
        %v5566 = vand.u32 %v481, 4294901760
        %v5567 = vsub.f32 %v481, %v5566
        %5568 = vmatpush1.msra.mxu0 %v5567
        %5569 = vmatprep.subr.mxu0 0.0
        %v5570 = vand.u32 %v480, 4294901760
        %v5571 = vsub.f32 %v480, %v5570
        %5572 = vmatpush1.msra.mxu0 %v5571
        %5573 = vmatprep.subr.mxu0 0.0
        %v5574 = vand.u32 %v479, 4294901760
        %v5575 = vsub.f32 %v479, %v5574
        %5576 = vmatpush1.msra.mxu0 %v5575
        %5577 = vmatprep.subr.mxu0 0.0
        %v5578 = vand.u32 %v478, 4294901760
        %v5579 = vsub.f32 %v478, %v5578
        %5580 = vmatpush1.msra.mxu0 %v5579
        %5581 = vmatprep.subr.mxu0 0.0
        %v5582 = vand.u32 %v477, 4294901760
        %v5583 = vsub.f32 %v477, %v5582
        %5584 = vmatpush1.msra.mxu0 %v5583
        %5585 = vmatprep.subr.mxu0 0.0
        %v5586 = vand.u32 %v476, 4294901760
        %v5587 = vsub.f32 %v476, %v5586
        %5588 = vmatpush1.msra.mxu0 %v5587
        %5589 = vmatprep.subr.mxu0 0.0
        %v5590 = vand.u32 %v475, 4294901760
        %v5591 = vsub.f32 %v475, %v5590
        %5592 = vmatpush1.msra.mxu0 %v5591
        %5593 = vmatprep.subr.mxu0 0.0
        %v5594 = vand.u32 %v474, 4294901760
        %v5595 = vsub.f32 %v474, %v5594
        %5596 = vmatpush1.msra.mxu0 %v5595
        %5597 = vmatprep.subr.mxu0 0.0
        %v5598 = vand.u32 %v505, 4294901760
        %v5599 = vsub.f32 %v505, %v5598
        %5600 = vmatpush2.msra.mxu0 %v5599
        %5601 = vmatprep.subr.mxu0 0.0
        %v5602 = vand.u32 %v504, 4294901760
        %v5603 = vsub.f32 %v504, %v5602
        %5604 = vmatpush2.msra.mxu0 %v5603
        %5605 = vmatprep.subr.mxu0 0.0
        %v5606 = vand.u32 %v503, 4294901760
        %v5607 = vsub.f32 %v503, %v5606
        %5608 = vmatpush2.msra.mxu0 %v5607
        %5609 = vmatprep.subr.mxu0 0.0
        %v5610 = vand.u32 %v502, 4294901760
        %v5611 = vsub.f32 %v502, %v5610
        %5612 = vmatpush2.msra.mxu0 %v5611
        %5613 = vmatprep.subr.mxu0 0.0
        %v5614 = vand.u32 %v501, 4294901760
        %v5615 = vsub.f32 %v501, %v5614
        %5616 = vmatpush2.msra.mxu0 %v5615
        %5617 = vmatprep.subr.mxu0 0.0
        %v5618 = vand.u32 %v500, 4294901760
        %v5619 = vsub.f32 %v500, %v5618
        %5620 = vmatpush2.msra.mxu0 %v5619
        %5621 = vmatprep.subr.mxu0 0.0
        %v5622 = vand.u32 %v499, 4294901760
        %v5623 = vsub.f32 %v499, %v5622
        %5624 = vmatpush2.msra.mxu0 %v5623
        %5625 = vmatprep.subr.mxu0 0.0
        %v5626 = vand.u32 %v498, 4294901760
        %v5627 = vsub.f32 %v498, %v5626
        %5628 = vmatpush2.msra.mxu0 %v5627
        %5629 = vmatprep.subr.mxu0 0.0
        %v5630 = vand.u32 %v497, 4294901760
        %v5631 = vsub.f32 %v497, %v5630
        %5632 = vmatpush2.msra.mxu0 %v5631
        %5633 = vmatprep.subr.mxu0 0.0
        %v5634 = vand.u32 %v496, 4294901760
        %v5635 = vsub.f32 %v496, %v5634
        %5636 = vmatpush2.msra.mxu0 %v5635
        %5637 = vmatprep.subr.mxu0 0.0
        %v5638 = vand.u32 %v495, 4294901760
        %v5639 = vsub.f32 %v495, %v5638
        %5640 = vmatpush2.msra.mxu0 %v5639
        %5641 = vmatprep.subr.mxu0 0.0
        %v5642 = vand.u32 %v494, 4294901760
        %v5643 = vsub.f32 %v494, %v5642
        %5644 = vmatpush2.msra.mxu0 %v5643
        %5645 = vmatprep.subr.mxu0 0.0
        %v5646 = vand.u32 %v493, 4294901760
        %v5647 = vsub.f32 %v493, %v5646
        %5648 = vmatpush2.msra.mxu0 %v5647
        %5649 = vmatprep.subr.mxu0 0.0
        %v5650 = vand.u32 %v492, 4294901760
        %v5651 = vsub.f32 %v492, %v5650
        %5652 = vmatpush2.msra.mxu0 %v5651
        %5653 = vmatprep.subr.mxu0 0.0
        %v5654 = vand.u32 %v491, 4294901760
        %v5655 = vsub.f32 %v491, %v5654
        %5656 = vmatpush2.msra.mxu0 %v5655
        %5657 = vmatprep.subr.mxu0 0.0
        %v5658 = vand.u32 %v490, 4294901760
        %v5659 = vsub.f32 %v490, %v5658
        %5660 = vmatpush2.msra.mxu0 %v5659
        %v5661 = vand.u32 %v289, 4294901760
        %v5662 = vsub.f32 %v289, %v5661
        %5663 = vmatprep.mubr.f32.mxu0 %v5662
        %v5664 = vand.u32 %v288, 4294901760
        %v5665 = vsub.f32 %v288, %v5664
        %5666 = vmatmul.mubr.f32.gmra.mxu0 %v5665
        %v5667 = vpop.f32.mrf.mxu0
        %v5668 = vadd.f32 %v5453, %v5667
        %v5669 = vpop.f32.mrf.mxu0
        %v5670 = vand.u32 %v297, 4294901760
        %v5671 = vsub.f32 %v297, %v5670
        %5672 = vmatprep.mubr.f32.mxu0 %v5671
        %v5673 = vand.u32 %v296, 4294901760
        %v5674 = vsub.f32 %v296, %v5673
        %5675 = vmatmul.mubr.f32.gmra.mxu0 %v5674
        %v5676 = vpop.f32.mrf.mxu0
        %v5677 = vadd.f32 %v5460, %v5676
        %v5678 = vpop.f32.mrf.mxu0
        %v5679 = vand.u32 %v305, 4294901760
        %v5680 = vsub.f32 %v305, %v5679
        %5681 = vmatprep.mubr.f32.mxu0 %v5680
        %v5682 = vand.u32 %v304, 4294901760
        %v5683 = vsub.f32 %v304, %v5682
        %5684 = vmatmul.mubr.f32.gmra.mxu0 %v5683
        %v5685 = vpop.f32.mrf.mxu0
        %v5686 = vadd.f32 %v5467, %v5685
        %v5687 = vpop.f32.mrf.mxu0
        %v5688 = vand.u32 %v313, 4294901760
        %v5689 = vsub.f32 %v313, %v5688
        %5690 = vmatprep.mubr.f32.mxu0 %v5689
        %v5691 = vand.u32 %v312, 4294901760
        %v5692 = vsub.f32 %v312, %v5691
        %5693 = vmatmul.mubr.f32.gmra.mxu0 %v5692
        %v5694 = vpop.f32.mrf.mxu0
        %v5695 = vadd.f32 %v5474, %v5694
        %v5696 = vpop.f32.mrf.mxu0
        %v5697 = vand.u32 %v321, 4294901760
        %v5698 = vsub.f32 %v321, %v5697
        %5699 = vmatprep.mubr.f32.mxu0 %v5698
        %v5700 = vand.u32 %v320, 4294901760
        %v5701 = vsub.f32 %v320, %v5700
        %5702 = vmatmul.mubr.f32.gmra.mxu0 %v5701
        %v5703 = vpop.f32.mrf.mxu0
        %v5704 = vadd.f32 %v5481, %v5703
        %v5705 = vpop.f32.mrf.mxu0
        %v5706 = vand.u32 %v329, 4294901760
        %v5707 = vsub.f32 %v329, %v5706
        %5708 = vmatprep.mubr.f32.mxu0 %v5707
        %v5709 = vand.u32 %v328, 4294901760
        %v5710 = vsub.f32 %v328, %v5709
        %5711 = vmatmul.mubr.f32.gmra.mxu0 %v5710
        %v5712 = vpop.f32.mrf.mxu0
        %v5713 = vadd.f32 %v5488, %v5712
        %v5714 = vpop.f32.mrf.mxu0
        %v5715 = vand.u32 %v337, 4294901760
        %v5716 = vsub.f32 %v337, %v5715
        %5717 = vmatprep.mubr.f32.mxu0 %v5716
        %v5718 = vand.u32 %v336, 4294901760
        %v5719 = vsub.f32 %v336, %v5718
        %5720 = vmatmul.mubr.f32.gmra.mxu0 %v5719
        %v5721 = vpop.f32.mrf.mxu0
        %v5722 = vadd.f32 %v5495, %v5721
        %v5723 = vpop.f32.mrf.mxu0
        %v5724 = vand.u32 %v345, 4294901760
        %v5725 = vsub.f32 %v345, %v5724
        %5726 = vmatprep.mubr.f32.mxu0 %v5725
        %v5727 = vand.u32 %v344, 4294901760
        %v5728 = vsub.f32 %v344, %v5727
        %5729 = vmatmul.mubr.f32.gmra.mxu0 %v5728
        %v5730 = vpop.f32.mrf.mxu0
        %v5731 = vadd.f32 %v5502, %v5730
        %v5732 = vpop.f32.mrf.mxu0
        %v5733 = vand.u32 %v353, 4294901760
        %v5734 = vsub.f32 %v353, %v5733
        %5735 = vmatprep.mubr.f32.mxu0 %v5734
        %v5736 = vand.u32 %v352, 4294901760
        %v5737 = vsub.f32 %v352, %v5736
        %5738 = vmatmul.mubr.f32.gmra.mxu0 %v5737
        %v5739 = vpop.f32.mrf.mxu0
        %v5740 = vadd.f32 %v5509, %v5739
        %v5741 = vpop.f32.mrf.mxu0
        %v5742 = vand.u32 %v361, 4294901760
        %v5743 = vsub.f32 %v361, %v5742
        %5744 = vmatprep.mubr.f32.mxu0 %v5743
        %v5745 = vand.u32 %v360, 4294901760
        %v5746 = vsub.f32 %v360, %v5745
        %5747 = vmatmul.mubr.f32.gmra.mxu0 %v5746
        %v5748 = vpop.f32.mrf.mxu0
        %v5749 = vadd.f32 %v5516, %v5748
        %v5750 = vpop.f32.mrf.mxu0
        %v5751 = vand.u32 %v369, 4294901760
        %v5752 = vsub.f32 %v369, %v5751
        %5753 = vmatprep.mubr.f32.mxu0 %v5752
        %v5754 = vand.u32 %v368, 4294901760
        %v5755 = vsub.f32 %v368, %v5754
        %5756 = vmatmul.mubr.f32.gmra.mxu0 %v5755
        %v5757 = vpop.f32.mrf.mxu0
        %v5758 = vadd.f32 %v5523, %v5757
        %v5759 = vpop.f32.mrf.mxu0
        %v5760 = vand.u32 %v377, 4294901760
        %v5761 = vsub.f32 %v377, %v5760
        %5762 = vmatprep.mubr.f32.mxu0 %v5761
        %v5763 = vand.u32 %v376, 4294901760
        %v5764 = vsub.f32 %v376, %v5763
        %5765 = vmatmul.mubr.f32.gmra.mxu0 %v5764
        %v5766 = vpop.f32.mrf.mxu0
        %v5767 = vadd.f32 %v5530, %v5766
        %v5768 = vpop.f32.mrf.mxu0
        %5769 = vdwg.mxu0
        %5770 = vmatprep.subr.mxu0 0.0
        %v5771 = vand.u32 %v489, 4294901760
        %5772 = vmatpush1.msra.mxu0 %v5771
        %5773 = vmatprep.subr.mxu0 0.0
        %v5774 = vand.u32 %v488, 4294901760
        %5775 = vmatpush1.msra.mxu0 %v5774
        %5776 = vmatprep.subr.mxu0 0.0
        %v5777 = vand.u32 %v487, 4294901760
        %5778 = vmatpush1.msra.mxu0 %v5777
        %5779 = vmatprep.subr.mxu0 0.0
        %v5780 = vand.u32 %v486, 4294901760
        %5781 = vmatpush1.msra.mxu0 %v5780
        %5782 = vmatprep.subr.mxu0 0.0
        %v5783 = vand.u32 %v485, 4294901760
        %5784 = vmatpush1.msra.mxu0 %v5783
        %5785 = vmatprep.subr.mxu0 0.0
        %v5786 = vand.u32 %v484, 4294901760
        %5787 = vmatpush1.msra.mxu0 %v5786
        %5788 = vmatprep.subr.mxu0 0.0
        %v5789 = vand.u32 %v483, 4294901760
        %5790 = vmatpush1.msra.mxu0 %v5789
        %5791 = vmatprep.subr.mxu0 0.0
        %v5792 = vand.u32 %v482, 4294901760
        %5793 = vmatpush1.msra.mxu0 %v5792
        %5794 = vmatprep.subr.mxu0 0.0
        %v5795 = vand.u32 %v481, 4294901760
        %5796 = vmatpush1.msra.mxu0 %v5795
        %5797 = vmatprep.subr.mxu0 0.0
        %v5798 = vand.u32 %v480, 4294901760
        %5799 = vmatpush1.msra.mxu0 %v5798
        %5800 = vmatprep.subr.mxu0 0.0
        %v5801 = vand.u32 %v479, 4294901760
        %5802 = vmatpush1.msra.mxu0 %v5801
        %5803 = vmatprep.subr.mxu0 0.0
        %v5804 = vand.u32 %v478, 4294901760
        %5805 = vmatpush1.msra.mxu0 %v5804
        %5806 = vmatprep.subr.mxu0 0.0
        %v5807 = vand.u32 %v477, 4294901760
        %5808 = vmatpush1.msra.mxu0 %v5807
        %5809 = vmatprep.subr.mxu0 0.0
        %v5810 = vand.u32 %v476, 4294901760
        %5811 = vmatpush1.msra.mxu0 %v5810
        %5812 = vmatprep.subr.mxu0 0.0
        %v5813 = vand.u32 %v475, 4294901760
        %5814 = vmatpush1.msra.mxu0 %v5813
        %5815 = vmatprep.subr.mxu0 0.0
        %v5816 = vand.u32 %v474, 4294901760
        %5817 = vmatpush1.msra.mxu0 %v5816
        %5818 = vmatprep.subr.mxu0 0.0
        %v5819 = vand.u32 %v505, 4294901760
        %5820 = vmatpush2.msra.mxu0 %v5819
        %5821 = vmatprep.subr.mxu0 0.0
        %v5822 = vand.u32 %v504, 4294901760
        %5823 = vmatpush2.msra.mxu0 %v5822
        %5824 = vmatprep.subr.mxu0 0.0
        %v5825 = vand.u32 %v503, 4294901760
        %5826 = vmatpush2.msra.mxu0 %v5825
        %5827 = vmatprep.subr.mxu0 0.0
        %v5828 = vand.u32 %v502, 4294901760
        %5829 = vmatpush2.msra.mxu0 %v5828
        %5830 = vmatprep.subr.mxu0 0.0
        %v5831 = vand.u32 %v501, 4294901760
        %5832 = vmatpush2.msra.mxu0 %v5831
        %5833 = vmatprep.subr.mxu0 0.0
        %v5834 = vand.u32 %v500, 4294901760
        %5835 = vmatpush2.msra.mxu0 %v5834
        %5836 = vmatprep.subr.mxu0 0.0
        %v5837 = vand.u32 %v499, 4294901760
        %5838 = vmatpush2.msra.mxu0 %v5837
        %5839 = vmatprep.subr.mxu0 0.0
        %v5840 = vand.u32 %v498, 4294901760
        %5841 = vmatpush2.msra.mxu0 %v5840
        %5842 = vmatprep.subr.mxu0 0.0
        %v5843 = vand.u32 %v497, 4294901760
        %5844 = vmatpush2.msra.mxu0 %v5843
        %5845 = vmatprep.subr.mxu0 0.0
        %v5846 = vand.u32 %v496, 4294901760
        %5847 = vmatpush2.msra.mxu0 %v5846
        %5848 = vmatprep.subr.mxu0 0.0
        %v5849 = vand.u32 %v495, 4294901760
        %5850 = vmatpush2.msra.mxu0 %v5849
        %5851 = vmatprep.subr.mxu0 0.0
        %v5852 = vand.u32 %v494, 4294901760
        %5853 = vmatpush2.msra.mxu0 %v5852
        %5854 = vmatprep.subr.mxu0 0.0
        %v5855 = vand.u32 %v493, 4294901760
        %5856 = vmatpush2.msra.mxu0 %v5855
        %5857 = vmatprep.subr.mxu0 0.0
        %v5858 = vand.u32 %v492, 4294901760
        %5859 = vmatpush2.msra.mxu0 %v5858
        %5860 = vmatprep.subr.mxu0 0.0
        %v5861 = vand.u32 %v491, 4294901760
        %5862 = vmatpush2.msra.mxu0 %v5861
        %5863 = vmatprep.subr.mxu0 0.0
        %v5864 = vand.u32 %v490, 4294901760
        %5865 = vmatpush2.msra.mxu0 %v5864
        %v5866 = vand.u32 %v289, 4294901760
        %v5867 = vsub.f32 %v289, %v5866
        %v5868 = vand.u32 %v5867, 4294901760
        %5869 = vmatprep.mubr.f32.mxu0 %v5868
        %v5870 = vand.u32 %v288, 4294901760
        %v5871 = vsub.f32 %v288, %v5870
        %v5872 = vand.u32 %v5871, 4294901760
        %5873 = vmatmul.mubr.f32.gmra.mxu0 %v5872
        %v5874 = vpop.f32.mrf.mxu0
        %v5875 = vadd.f32 %v5668, %v5874
        %v5876 = vpop.f32.mrf.mxu0
        %v5877 = vand.u32 %v297, 4294901760
        %v5878 = vsub.f32 %v297, %v5877
        %v5879 = vand.u32 %v5878, 4294901760
        %5880 = vmatprep.mubr.f32.mxu0 %v5879
        %v5881 = vand.u32 %v296, 4294901760
        %v5882 = vsub.f32 %v296, %v5881
        %v5883 = vand.u32 %v5882, 4294901760
        %5884 = vmatmul.mubr.f32.gmra.mxu0 %v5883
        %v5885 = vpop.f32.mrf.mxu0
        %v5886 = vadd.f32 %v5677, %v5885
        %v5887 = vpop.f32.mrf.mxu0
        %v5888 = vand.u32 %v305, 4294901760
        %v5889 = vsub.f32 %v305, %v5888
        %v5890 = vand.u32 %v5889, 4294901760
        %5891 = vmatprep.mubr.f32.mxu0 %v5890
        %v5892 = vand.u32 %v304, 4294901760
        %v5893 = vsub.f32 %v304, %v5892
        %v5894 = vand.u32 %v5893, 4294901760
        %5895 = vmatmul.mubr.f32.gmra.mxu0 %v5894
        %v5896 = vpop.f32.mrf.mxu0
        %v5897 = vadd.f32 %v5686, %v5896
        %v5898 = vpop.f32.mrf.mxu0
        %v5899 = vand.u32 %v313, 4294901760
        %v5900 = vsub.f32 %v313, %v5899
        %v5901 = vand.u32 %v5900, 4294901760
        %5902 = vmatprep.mubr.f32.mxu0 %v5901
        %v5903 = vand.u32 %v312, 4294901760
        %v5904 = vsub.f32 %v312, %v5903
        %v5905 = vand.u32 %v5904, 4294901760
        %5906 = vmatmul.mubr.f32.gmra.mxu0 %v5905
        %v5907 = vpop.f32.mrf.mxu0
        %v5908 = vadd.f32 %v5695, %v5907
        %v5909 = vpop.f32.mrf.mxu0
        %v5910 = vand.u32 %v321, 4294901760
        %v5911 = vsub.f32 %v321, %v5910
        %v5912 = vand.u32 %v5911, 4294901760
        %5913 = vmatprep.mubr.f32.mxu0 %v5912
        %v5914 = vand.u32 %v320, 4294901760
        %v5915 = vsub.f32 %v320, %v5914
        %v5916 = vand.u32 %v5915, 4294901760
        %5917 = vmatmul.mubr.f32.gmra.mxu0 %v5916
        %v5918 = vpop.f32.mrf.mxu0
        %v5919 = vadd.f32 %v5704, %v5918
        %v5920 = vpop.f32.mrf.mxu0
        %v5921 = vand.u32 %v329, 4294901760
        %v5922 = vsub.f32 %v329, %v5921
        %v5923 = vand.u32 %v5922, 4294901760
        %5924 = vmatprep.mubr.f32.mxu0 %v5923
        %v5925 = vand.u32 %v328, 4294901760
        %v5926 = vsub.f32 %v328, %v5925
        %v5927 = vand.u32 %v5926, 4294901760
        %5928 = vmatmul.mubr.f32.gmra.mxu0 %v5927
        %v5929 = vpop.f32.mrf.mxu0
        %v5930 = vadd.f32 %v5713, %v5929
        %v5931 = vpop.f32.mrf.mxu0
        %v5932 = vand.u32 %v337, 4294901760
        %v5933 = vsub.f32 %v337, %v5932
        %v5934 = vand.u32 %v5933, 4294901760
        %5935 = vmatprep.mubr.f32.mxu0 %v5934
        %v5936 = vand.u32 %v336, 4294901760
        %v5937 = vsub.f32 %v336, %v5936
        %v5938 = vand.u32 %v5937, 4294901760
        %5939 = vmatmul.mubr.f32.gmra.mxu0 %v5938
        %v5940 = vpop.f32.mrf.mxu0
        %v5941 = vadd.f32 %v5722, %v5940
        %v5942 = vpop.f32.mrf.mxu0
        %v5943 = vand.u32 %v345, 4294901760
        %v5944 = vsub.f32 %v345, %v5943
        %v5945 = vand.u32 %v5944, 4294901760
        %5946 = vmatprep.mubr.f32.mxu0 %v5945
        %v5947 = vand.u32 %v344, 4294901760
        %v5948 = vsub.f32 %v344, %v5947
        %v5949 = vand.u32 %v5948, 4294901760
        %5950 = vmatmul.mubr.f32.gmra.mxu0 %v5949
        %v5951 = vpop.f32.mrf.mxu0
        %v5952 = vadd.f32 %v5731, %v5951
        %v5953 = vpop.f32.mrf.mxu0
        %v5954 = vand.u32 %v353, 4294901760
        %v5955 = vsub.f32 %v353, %v5954
        %v5956 = vand.u32 %v5955, 4294901760
        %5957 = vmatprep.mubr.f32.mxu0 %v5956
        %v5958 = vand.u32 %v352, 4294901760
        %v5959 = vsub.f32 %v352, %v5958
        %v5960 = vand.u32 %v5959, 4294901760
        %5961 = vmatmul.mubr.f32.gmra.mxu0 %v5960
        %v5962 = vpop.f32.mrf.mxu0
        %v5963 = vadd.f32 %v5740, %v5962
        %v5964 = vpop.f32.mrf.mxu0
        %v5965 = vand.u32 %v361, 4294901760
        %v5966 = vsub.f32 %v361, %v5965
        %v5967 = vand.u32 %v5966, 4294901760
        %5968 = vmatprep.mubr.f32.mxu0 %v5967
        %v5969 = vand.u32 %v360, 4294901760
        %v5970 = vsub.f32 %v360, %v5969
        %v5971 = vand.u32 %v5970, 4294901760
        %5972 = vmatmul.mubr.f32.gmra.mxu0 %v5971
        %v5973 = vpop.f32.mrf.mxu0
        %v5974 = vadd.f32 %v5749, %v5973
        %v5975 = vpop.f32.mrf.mxu0
        %v5976 = vand.u32 %v369, 4294901760
        %v5977 = vsub.f32 %v369, %v5976
        %v5978 = vand.u32 %v5977, 4294901760
        %5979 = vmatprep.mubr.f32.mxu0 %v5978
        %v5980 = vand.u32 %v368, 4294901760
        %v5981 = vsub.f32 %v368, %v5980
        %v5982 = vand.u32 %v5981, 4294901760
        %5983 = vmatmul.mubr.f32.gmra.mxu0 %v5982
        %v5984 = vpop.f32.mrf.mxu0
        %v5985 = vadd.f32 %v5758, %v5984
        %v5986 = vpop.f32.mrf.mxu0
        %v5987 = vand.u32 %v377, 4294901760
        %v5988 = vsub.f32 %v377, %v5987
        %v5989 = vand.u32 %v5988, 4294901760
        %5990 = vmatprep.mubr.f32.mxu0 %v5989
        %v5991 = vand.u32 %v376, 4294901760
        %v5992 = vsub.f32 %v376, %v5991
        %v5993 = vand.u32 %v5992, 4294901760
        %5994 = vmatmul.mubr.f32.gmra.mxu0 %v5993
        %v5995 = vpop.f32.mrf.mxu0
        %v5996 = vadd.f32 %v5767, %v5995
        %v5997 = vpop.f32.mrf.mxu0
        %5998 = vdwg.mxu0
        %5999 = vmatprep.subr.mxu0 0.0
        %v6000 = vand.u32 %v489, 4294901760
        %v6001 = vsub.f32 %v489, %v6000
        %v6002 = vand.u32 %v6001, 4294901760
        %6003 = vmatpush1.msra.mxu0 %v6002
        %6004 = vmatprep.subr.mxu0 0.0
        %v6005 = vand.u32 %v488, 4294901760
        %v6006 = vsub.f32 %v488, %v6005
        %v6007 = vand.u32 %v6006, 4294901760
        %6008 = vmatpush1.msra.mxu0 %v6007
        %6009 = vmatprep.subr.mxu0 0.0
        %v6010 = vand.u32 %v487, 4294901760
        %v6011 = vsub.f32 %v487, %v6010
        %v6012 = vand.u32 %v6011, 4294901760
        %6013 = vmatpush1.msra.mxu0 %v6012
        %6014 = vmatprep.subr.mxu0 0.0
        %v6015 = vand.u32 %v486, 4294901760
        %v6016 = vsub.f32 %v486, %v6015
        %v6017 = vand.u32 %v6016, 4294901760
        %6018 = vmatpush1.msra.mxu0 %v6017
        %6019 = vmatprep.subr.mxu0 0.0
        %v6020 = vand.u32 %v485, 4294901760
        %v6021 = vsub.f32 %v485, %v6020
        %v6022 = vand.u32 %v6021, 4294901760
        %6023 = vmatpush1.msra.mxu0 %v6022
        %6024 = vmatprep.subr.mxu0 0.0
        %v6025 = vand.u32 %v484, 4294901760
        %v6026 = vsub.f32 %v484, %v6025
        %v6027 = vand.u32 %v6026, 4294901760
        %6028 = vmatpush1.msra.mxu0 %v6027
        %6029 = vmatprep.subr.mxu0 0.0
        %v6030 = vand.u32 %v483, 4294901760
        %v6031 = vsub.f32 %v483, %v6030
        %v6032 = vand.u32 %v6031, 4294901760
        %6033 = vmatpush1.msra.mxu0 %v6032
        %6034 = vmatprep.subr.mxu0 0.0
        %v6035 = vand.u32 %v482, 4294901760
        %v6036 = vsub.f32 %v482, %v6035
        %v6037 = vand.u32 %v6036, 4294901760
        %6038 = vmatpush1.msra.mxu0 %v6037
        %6039 = vmatprep.subr.mxu0 0.0
        %v6040 = vand.u32 %v481, 4294901760
        %v6041 = vsub.f32 %v481, %v6040
        %v6042 = vand.u32 %v6041, 4294901760
        %6043 = vmatpush1.msra.mxu0 %v6042
        %6044 = vmatprep.subr.mxu0 0.0
        %v6045 = vand.u32 %v480, 4294901760
        %v6046 = vsub.f32 %v480, %v6045
        %v6047 = vand.u32 %v6046, 4294901760
        %6048 = vmatpush1.msra.mxu0 %v6047
        %6049 = vmatprep.subr.mxu0 0.0
        %v6050 = vand.u32 %v479, 4294901760
        %v6051 = vsub.f32 %v479, %v6050
        %v6052 = vand.u32 %v6051, 4294901760
        %6053 = vmatpush1.msra.mxu0 %v6052
        %6054 = vmatprep.subr.mxu0 0.0
        %v6055 = vand.u32 %v478, 4294901760
        %v6056 = vsub.f32 %v478, %v6055
        %v6057 = vand.u32 %v6056, 4294901760
        %6058 = vmatpush1.msra.mxu0 %v6057
        %6059 = vmatprep.subr.mxu0 0.0
        %v6060 = vand.u32 %v477, 4294901760
        %v6061 = vsub.f32 %v477, %v6060
        %v6062 = vand.u32 %v6061, 4294901760
        %6063 = vmatpush1.msra.mxu0 %v6062
        %6064 = vmatprep.subr.mxu0 0.0
        %v6065 = vand.u32 %v476, 4294901760
        %v6066 = vsub.f32 %v476, %v6065
        %v6067 = vand.u32 %v6066, 4294901760
        %6068 = vmatpush1.msra.mxu0 %v6067
        %6069 = vmatprep.subr.mxu0 0.0
        %v6070 = vand.u32 %v475, 4294901760
        %v6071 = vsub.f32 %v475, %v6070
        %v6072 = vand.u32 %v6071, 4294901760
        %6073 = vmatpush1.msra.mxu0 %v6072
        %6074 = vmatprep.subr.mxu0 0.0
        %v6075 = vand.u32 %v474, 4294901760
        %v6076 = vsub.f32 %v474, %v6075
        %v6077 = vand.u32 %v6076, 4294901760
        %6078 = vmatpush1.msra.mxu0 %v6077
        %6079 = vmatprep.subr.mxu0 0.0
        %v6080 = vand.u32 %v505, 4294901760
        %v6081 = vsub.f32 %v505, %v6080
        %v6082 = vand.u32 %v6081, 4294901760
        %6083 = vmatpush2.msra.mxu0 %v6082
        %6084 = vmatprep.subr.mxu0 0.0
        %v6085 = vand.u32 %v504, 4294901760
        %v6086 = vsub.f32 %v504, %v6085
        %v6087 = vand.u32 %v6086, 4294901760
        %6088 = vmatpush2.msra.mxu0 %v6087
        %6089 = vmatprep.subr.mxu0 0.0
        %v6090 = vand.u32 %v503, 4294901760
        %v6091 = vsub.f32 %v503, %v6090
        %v6092 = vand.u32 %v6091, 4294901760
        %6093 = vmatpush2.msra.mxu0 %v6092
        %6094 = vmatprep.subr.mxu0 0.0
        %v6095 = vand.u32 %v502, 4294901760
        %v6096 = vsub.f32 %v502, %v6095
        %v6097 = vand.u32 %v6096, 4294901760
        %6098 = vmatpush2.msra.mxu0 %v6097
        %6099 = vmatprep.subr.mxu0 0.0
        %v6100 = vand.u32 %v501, 4294901760
        %v6101 = vsub.f32 %v501, %v6100
        %v6102 = vand.u32 %v6101, 4294901760
        %6103 = vmatpush2.msra.mxu0 %v6102
        %6104 = vmatprep.subr.mxu0 0.0
        %v6105 = vand.u32 %v500, 4294901760
        %v6106 = vsub.f32 %v500, %v6105
        %v6107 = vand.u32 %v6106, 4294901760
        %6108 = vmatpush2.msra.mxu0 %v6107
        %6109 = vmatprep.subr.mxu0 0.0
        %v6110 = vand.u32 %v499, 4294901760
        %v6111 = vsub.f32 %v499, %v6110
        %v6112 = vand.u32 %v6111, 4294901760
        %6113 = vmatpush2.msra.mxu0 %v6112
        %6114 = vmatprep.subr.mxu0 0.0
        %v6115 = vand.u32 %v498, 4294901760
        %v6116 = vsub.f32 %v498, %v6115
        %v6117 = vand.u32 %v6116, 4294901760
        %6118 = vmatpush2.msra.mxu0 %v6117
        %6119 = vmatprep.subr.mxu0 0.0
        %v6120 = vand.u32 %v497, 4294901760
        %v6121 = vsub.f32 %v497, %v6120
        %v6122 = vand.u32 %v6121, 4294901760
        %6123 = vmatpush2.msra.mxu0 %v6122
        %6124 = vmatprep.subr.mxu0 0.0
        %v6125 = vand.u32 %v496, 4294901760
        %v6126 = vsub.f32 %v496, %v6125
        %v6127 = vand.u32 %v6126, 4294901760
        %6128 = vmatpush2.msra.mxu0 %v6127
        %6129 = vmatprep.subr.mxu0 0.0
        %v6130 = vand.u32 %v495, 4294901760
        %v6131 = vsub.f32 %v495, %v6130
        %v6132 = vand.u32 %v6131, 4294901760
        %6133 = vmatpush2.msra.mxu0 %v6132
        %6134 = vmatprep.subr.mxu0 0.0
        %v6135 = vand.u32 %v494, 4294901760
        %v6136 = vsub.f32 %v494, %v6135
        %v6137 = vand.u32 %v6136, 4294901760
        %6138 = vmatpush2.msra.mxu0 %v6137
        %6139 = vmatprep.subr.mxu0 0.0
        %v6140 = vand.u32 %v493, 4294901760
        %v6141 = vsub.f32 %v493, %v6140
        %v6142 = vand.u32 %v6141, 4294901760
        %6143 = vmatpush2.msra.mxu0 %v6142
        %6144 = vmatprep.subr.mxu0 0.0
        %v6145 = vand.u32 %v492, 4294901760
        %v6146 = vsub.f32 %v492, %v6145
        %v6147 = vand.u32 %v6146, 4294901760
        %6148 = vmatpush2.msra.mxu0 %v6147
        %6149 = vmatprep.subr.mxu0 0.0
        %v6150 = vand.u32 %v491, 4294901760
        %v6151 = vsub.f32 %v491, %v6150
        %v6152 = vand.u32 %v6151, 4294901760
        %6153 = vmatpush2.msra.mxu0 %v6152
        %6154 = vmatprep.subr.mxu0 0.0
        %v6155 = vand.u32 %v490, 4294901760
        %v6156 = vsub.f32 %v490, %v6155
        %v6157 = vand.u32 %v6156, 4294901760
        %6158 = vmatpush2.msra.mxu0 %v6157
        %v6159 = vand.u32 %v289, 4294901760
        %6160 = vmatprep.mubr.f32.mxu0 %v6159
        %v6161 = vand.u32 %v288, 4294901760
        %6162 = vmatmul.mubr.f32.gmra.mxu0 %v6161
        %v6163 = vpop.f32.mrf.mxu0
        %v6164 = vadd.f32 %v5875, %v6163
        %v6165 = vpop.f32.mrf.mxu0
        %v6166 = vand.u32 %v297, 4294901760
        %6167 = vmatprep.mubr.f32.mxu0 %v6166
        %v6168 = vand.u32 %v296, 4294901760
        %6169 = vmatmul.mubr.f32.gmra.mxu0 %v6168
        %v6170 = vpop.f32.mrf.mxu0
        %v6171 = vadd.f32 %v5886, %v6170
        %v6172 = vpop.f32.mrf.mxu0
        %v6173 = vand.u32 %v305, 4294901760
        %6174 = vmatprep.mubr.f32.mxu0 %v6173
        %v6175 = vand.u32 %v304, 4294901760
        %6176 = vmatmul.mubr.f32.gmra.mxu0 %v6175
        %v6177 = vpop.f32.mrf.mxu0
        %v6178 = vadd.f32 %v5897, %v6177
        %v6179 = vpop.f32.mrf.mxu0
        %v6180 = vand.u32 %v313, 4294901760
        %6181 = vmatprep.mubr.f32.mxu0 %v6180
        %v6182 = vand.u32 %v312, 4294901760
        %6183 = vmatmul.mubr.f32.gmra.mxu0 %v6182
        %v6184 = vpop.f32.mrf.mxu0
        %v6185 = vadd.f32 %v5908, %v6184
        %v6186 = vpop.f32.mrf.mxu0
        %v6187 = vand.u32 %v321, 4294901760
        %6188 = vmatprep.mubr.f32.mxu0 %v6187
        %v6189 = vand.u32 %v320, 4294901760
        %6190 = vmatmul.mubr.f32.gmra.mxu0 %v6189
        %v6191 = vpop.f32.mrf.mxu0
        %v6192 = vadd.f32 %v5919, %v6191
        %v6193 = vpop.f32.mrf.mxu0
        %v6194 = vand.u32 %v329, 4294901760
        %6195 = vmatprep.mubr.f32.mxu0 %v6194
        %v6196 = vand.u32 %v328, 4294901760
        %6197 = vmatmul.mubr.f32.gmra.mxu0 %v6196
        %v6198 = vpop.f32.mrf.mxu0
        %v6199 = vadd.f32 %v5930, %v6198
        %v6200 = vpop.f32.mrf.mxu0
        %v6201 = vand.u32 %v337, 4294901760
        %6202 = vmatprep.mubr.f32.mxu0 %v6201
        %v6203 = vand.u32 %v336, 4294901760
        %6204 = vmatmul.mubr.f32.gmra.mxu0 %v6203
        %v6205 = vpop.f32.mrf.mxu0
        %v6206 = vadd.f32 %v5941, %v6205
        %v6207 = vpop.f32.mrf.mxu0
        %v6208 = vand.u32 %v345, 4294901760
        %6209 = vmatprep.mubr.f32.mxu0 %v6208
        %v6210 = vand.u32 %v344, 4294901760
        %6211 = vmatmul.mubr.f32.gmra.mxu0 %v6210
        %v6212 = vpop.f32.mrf.mxu0
        %v6213 = vadd.f32 %v5952, %v6212
        %v6214 = vpop.f32.mrf.mxu0
        %v6215 = vand.u32 %v353, 4294901760
        %6216 = vmatprep.mubr.f32.mxu0 %v6215
        %v6217 = vand.u32 %v352, 4294901760
        %6218 = vmatmul.mubr.f32.gmra.mxu0 %v6217
        %v6219 = vpop.f32.mrf.mxu0
        %v6220 = vadd.f32 %v5963, %v6219
        %v6221 = vpop.f32.mrf.mxu0
        %v6222 = vand.u32 %v361, 4294901760
        %6223 = vmatprep.mubr.f32.mxu0 %v6222
        %v6224 = vand.u32 %v360, 4294901760
        %6225 = vmatmul.mubr.f32.gmra.mxu0 %v6224
        %v6226 = vpop.f32.mrf.mxu0
        %v6227 = vadd.f32 %v5974, %v6226
        %v6228 = vpop.f32.mrf.mxu0
        %v6229 = vand.u32 %v369, 4294901760
        %6230 = vmatprep.mubr.f32.mxu0 %v6229
        %v6231 = vand.u32 %v368, 4294901760
        %6232 = vmatmul.mubr.f32.gmra.mxu0 %v6231
        %v6233 = vpop.f32.mrf.mxu0
        %v6234 = vadd.f32 %v5985, %v6233
        %v6235 = vpop.f32.mrf.mxu0
        %v6236 = vand.u32 %v377, 4294901760
        %6237 = vmatprep.mubr.f32.mxu0 %v6236
        %v6238 = vand.u32 %v376, 4294901760
        %6239 = vmatmul.mubr.f32.gmra.mxu0 %v6238
        %v6240 = vpop.f32.mrf.mxu0
        %v6241 = vadd.f32 %v5996, %v6240
        %v6242 = vpop.f32.mrf.mxu0
        %6243 = vdwg.mxu0
        %6244 = vmatprep.subr.mxu0 0.0
        %v6245 = vand.u32 %v489, 4294901760
        %6246 = vmatpush1.msra.mxu0 %v6245
        %6247 = vmatprep.subr.mxu0 0.0
        %v6248 = vand.u32 %v488, 4294901760
        %6249 = vmatpush1.msra.mxu0 %v6248
        %6250 = vmatprep.subr.mxu0 0.0
        %v6251 = vand.u32 %v487, 4294901760
        %6252 = vmatpush1.msra.mxu0 %v6251
        %6253 = vmatprep.subr.mxu0 0.0
        %v6254 = vand.u32 %v486, 4294901760
        %6255 = vmatpush1.msra.mxu0 %v6254
        %6256 = vmatprep.subr.mxu0 0.0
        %v6257 = vand.u32 %v485, 4294901760
        %6258 = vmatpush1.msra.mxu0 %v6257
        %6259 = vmatprep.subr.mxu0 0.0
        %v6260 = vand.u32 %v484, 4294901760
        %6261 = vmatpush1.msra.mxu0 %v6260
        %6262 = vmatprep.subr.mxu0 0.0
        %v6263 = vand.u32 %v483, 4294901760
        %6264 = vmatpush1.msra.mxu0 %v6263
        %6265 = vmatprep.subr.mxu0 0.0
        %v6266 = vand.u32 %v482, 4294901760
        %6267 = vmatpush1.msra.mxu0 %v6266
        %6268 = vmatprep.subr.mxu0 0.0
        %v6269 = vand.u32 %v481, 4294901760
        %6270 = vmatpush1.msra.mxu0 %v6269
        %6271 = vmatprep.subr.mxu0 0.0
        %v6272 = vand.u32 %v480, 4294901760
        %6273 = vmatpush1.msra.mxu0 %v6272
        %6274 = vmatprep.subr.mxu0 0.0
        %v6275 = vand.u32 %v479, 4294901760
        %6276 = vmatpush1.msra.mxu0 %v6275
        %6277 = vmatprep.subr.mxu0 0.0
        %v6278 = vand.u32 %v478, 4294901760
        %6279 = vmatpush1.msra.mxu0 %v6278
        %6280 = vmatprep.subr.mxu0 0.0
        %v6281 = vand.u32 %v477, 4294901760
        %6282 = vmatpush1.msra.mxu0 %v6281
        %6283 = vmatprep.subr.mxu0 0.0
        %v6284 = vand.u32 %v476, 4294901760
        %6285 = vmatpush1.msra.mxu0 %v6284
        %6286 = vmatprep.subr.mxu0 0.0
        %v6287 = vand.u32 %v475, 4294901760
        %6288 = vmatpush1.msra.mxu0 %v6287
        %6289 = vmatprep.subr.mxu0 0.0
        %v6290 = vand.u32 %v474, 4294901760
        %6291 = vmatpush1.msra.mxu0 %v6290
        %6292 = vmatprep.subr.mxu0 0.0
        %v6293 = vand.u32 %v505, 4294901760
        %6294 = vmatpush2.msra.mxu0 %v6293
        %6295 = vmatprep.subr.mxu0 0.0
        %v6296 = vand.u32 %v504, 4294901760
        %6297 = vmatpush2.msra.mxu0 %v6296
        %6298 = vmatprep.subr.mxu0 0.0
        %v6299 = vand.u32 %v503, 4294901760
        %6300 = vmatpush2.msra.mxu0 %v6299
        %6301 = vmatprep.subr.mxu0 0.0
        %v6302 = vand.u32 %v502, 4294901760
        %6303 = vmatpush2.msra.mxu0 %v6302
        %6304 = vmatprep.subr.mxu0 0.0
        %v6305 = vand.u32 %v501, 4294901760
        %6306 = vmatpush2.msra.mxu0 %v6305
        %6307 = vmatprep.subr.mxu0 0.0
        %v6308 = vand.u32 %v500, 4294901760
        %6309 = vmatpush2.msra.mxu0 %v6308
        %6310 = vmatprep.subr.mxu0 0.0
        %v6311 = vand.u32 %v499, 4294901760
        %6312 = vmatpush2.msra.mxu0 %v6311
        %6313 = vmatprep.subr.mxu0 0.0
        %v6314 = vand.u32 %v498, 4294901760
        %6315 = vmatpush2.msra.mxu0 %v6314
        %6316 = vmatprep.subr.mxu0 0.0
        %v6317 = vand.u32 %v497, 4294901760
        %6318 = vmatpush2.msra.mxu0 %v6317
        %6319 = vmatprep.subr.mxu0 0.0
        %v6320 = vand.u32 %v496, 4294901760
        %6321 = vmatpush2.msra.mxu0 %v6320
        %6322 = vmatprep.subr.mxu0 0.0
        %v6323 = vand.u32 %v495, 4294901760
        %6324 = vmatpush2.msra.mxu0 %v6323
        %6325 = vmatprep.subr.mxu0 0.0
        %v6326 = vand.u32 %v494, 4294901760
        %6327 = vmatpush2.msra.mxu0 %v6326
        %6328 = vmatprep.subr.mxu0 0.0
        %v6329 = vand.u32 %v493, 4294901760
        %6330 = vmatpush2.msra.mxu0 %v6329
        %6331 = vmatprep.subr.mxu0 0.0
        %v6332 = vand.u32 %v492, 4294901760
        %6333 = vmatpush2.msra.mxu0 %v6332
        %6334 = vmatprep.subr.mxu0 0.0
        %v6335 = vand.u32 %v491, 4294901760
        %6336 = vmatpush2.msra.mxu0 %v6335
        %6337 = vmatprep.subr.mxu0 0.0
        %v6338 = vand.u32 %v490, 4294901760
        %6339 = vmatpush2.msra.mxu0 %v6338
        %v6340 = vand.u32 %v289, 4294901760
        %6341 = vmatprep.mubr.f32.mxu0 %v6340
        %v6342 = vand.u32 %v288, 4294901760
        %6343 = vmatmul.mubr.f32.gmra.mxu0 %v6342
        %v6344 = vpop.f32.mrf.mxu0
        %v6345 = vadd.f32 %v6164, %v6344
        %v6346 = vpop.f32.mrf.mxu0
        %v6347 = vand.u32 %v297, 4294901760
        %6348 = vmatprep.mubr.f32.mxu0 %v6347
        %v6349 = vand.u32 %v296, 4294901760
        %6350 = vmatmul.mubr.f32.gmra.mxu0 %v6349
        %v6351 = vpop.f32.mrf.mxu0
        %v6352 = vadd.f32 %v6171, %v6351
        %v6353 = vpop.f32.mrf.mxu0
        %v6354 = vand.u32 %v305, 4294901760
        %6355 = vmatprep.mubr.f32.mxu0 %v6354
        %v6356 = vand.u32 %v304, 4294901760
        %6357 = vmatmul.mubr.f32.gmra.mxu0 %v6356
        %v6358 = vpop.f32.mrf.mxu0
        %v6359 = vadd.f32 %v6178, %v6358
        %v6360 = vpop.f32.mrf.mxu0
        %v6361 = vand.u32 %v313, 4294901760
        %6362 = vmatprep.mubr.f32.mxu0 %v6361
        %v6363 = vand.u32 %v312, 4294901760
        %6364 = vmatmul.mubr.f32.gmra.mxu0 %v6363
        %v6365 = vpop.f32.mrf.mxu0
        %v6366 = vadd.f32 %v6185, %v6365
        %v6367 = vpop.f32.mrf.mxu0
        %v6368 = vand.u32 %v321, 4294901760
        %6369 = vmatprep.mubr.f32.mxu0 %v6368
        %v6370 = vand.u32 %v320, 4294901760
        %6371 = vmatmul.mubr.f32.gmra.mxu0 %v6370
        %v6372 = vpop.f32.mrf.mxu0
        %v6373 = vadd.f32 %v6192, %v6372
        %v6374 = vpop.f32.mrf.mxu0
        %v6375 = vand.u32 %v329, 4294901760
        %6376 = vmatprep.mubr.f32.mxu0 %v6375
        %v6377 = vand.u32 %v328, 4294901760
        %6378 = vmatmul.mubr.f32.gmra.mxu0 %v6377
        %v6379 = vpop.f32.mrf.mxu0
        %v6380 = vadd.f32 %v6199, %v6379
        %v6381 = vpop.f32.mrf.mxu0
        %v6382 = vand.u32 %v337, 4294901760
        %6383 = vmatprep.mubr.f32.mxu0 %v6382
        %v6384 = vand.u32 %v336, 4294901760
        %6385 = vmatmul.mubr.f32.gmra.mxu0 %v6384
        %v6386 = vpop.f32.mrf.mxu0
        %v6387 = vadd.f32 %v6206, %v6386
        %v6388 = vpop.f32.mrf.mxu0
        %v6389 = vand.u32 %v345, 4294901760
        %6390 = vmatprep.mubr.f32.mxu0 %v6389
        %v6391 = vand.u32 %v344, 4294901760
        %6392 = vmatmul.mubr.f32.gmra.mxu0 %v6391
        %v6393 = vpop.f32.mrf.mxu0
        %v6394 = vadd.f32 %v6213, %v6393
        %v6395 = vpop.f32.mrf.mxu0
        %v6396 = vand.u32 %v353, 4294901760
        %6397 = vmatprep.mubr.f32.mxu0 %v6396
        %v6398 = vand.u32 %v352, 4294901760
        %6399 = vmatmul.mubr.f32.gmra.mxu0 %v6398
        %v6400 = vpop.f32.mrf.mxu0
        %v6401 = vadd.f32 %v6220, %v6400
        %v6402 = vpop.f32.mrf.mxu0
        %v6403 = vand.u32 %v361, 4294901760
        %6404 = vmatprep.mubr.f32.mxu0 %v6403
        %v6405 = vand.u32 %v360, 4294901760
        %6406 = vmatmul.mubr.f32.gmra.mxu0 %v6405
        %v6407 = vpop.f32.mrf.mxu0
        %v6408 = vadd.f32 %v6227, %v6407
        %v6409 = vpop.f32.mrf.mxu0
        %v6410 = vand.u32 %v369, 4294901760
        %6411 = vmatprep.mubr.f32.mxu0 %v6410
        %v6412 = vand.u32 %v368, 4294901760
        %6413 = vmatmul.mubr.f32.gmra.mxu0 %v6412
        %v6414 = vpop.f32.mrf.mxu0
        %v6415 = vadd.f32 %v6234, %v6414
        %v6416 = vpop.f32.mrf.mxu0
        %v6417 = vand.u32 %v377, 4294901760
        %6418 = vmatprep.mubr.f32.mxu0 %v6417
        %v6419 = vand.u32 %v376, 4294901760
        %6420 = vmatmul.mubr.f32.gmra.mxu0 %v6419
        %v6421 = vpop.f32.mrf.mxu0
        %v6422 = vadd.f32 %v6241, %v6421
        %v6423 = vpop.f32.mrf.mxu0
        %6424 = vdwg.mxu0
        %6425 = vst [vmem:[%s278] sm:$0xff] %v6345
        %6426 = vst [vmem:[%s278 + $0x8] sm:$0xff] %v6352
        %6427 = vst [vmem:[%s278 + $0x10] sm:$0xff] %v6359
        %6428 = vst [vmem:[%s278 + $0x18] sm:$0xff] %v6366
        %6429 = vst [vmem:[%s278 + $0x20] sm:$0xff] %v6373
        %6430 = vst [vmem:[%s278 + $0x28] sm:$0xff] %v6380
        %6431 = vst [vmem:[%s278 + $0x30] sm:$0xff] %v6387
        %6432 = vst [vmem:[%s278 + $0x38] sm:$0xff] %v6394
        %6433 = vst [vmem:[%s278 + $0x40] sm:$0xff] %v6401
        %6434 = vst [vmem:[%s278 + $0x48] sm:$0xff] %v6408
        %6435 = vst [vmem:[%s278 + $0x50] sm:$0xff] %v6415
        %6436 = vst [vmem:[%s278 + $0x58] sm:$0xff] %v6422
        %s6437 = sand.u32 %s125, 1
        %s6438 = scalar_lea.sflag [#allocation4], %s6437
        %s6439 = sand.u32 %s125, 1
        %s6440 = smul.addr %s6439, 96
        %s6441 = scalar_lea.vmem [#allocation8], %s6440
        // Predicated region
        $region45: #{tpu_custom_call.1} parent=31 // pred_check
          %p6442 = pneg %p135
        $region46: #{tpu_custom_call.1} parent=31 // pred_check_branch
          %6444 = sbr.rel (%p6442) target = $region48
        $region47: #{tpu_custom_call.1} parent=31 // pred_region
          %s6445 = smul.u32 12, %s28
          %s6447 = ssub.s32 1536, 1536
          %6448 = vsyncadd %s6438, %s6447
          %s6449 = smul.addr %s6445, 3
          %s6450 = sadd.s32 %s27, %s6449
          %s6451 = smul.addr %s6450, 128
          %s6452 = scalar_lea.hbm %s3, %s6451
          %s6453 = sshll.u32 %s6441, 4
          %s6454 = int_to_ptr.vmem [resolvable:$true] %s6453
          %6459 = dma.vmem_to_hbm [thread:$0]  %s6454, 1536, %s6452, %s6438, 128, 384, 8
        $region48: #{tpu_custom_call.1} parent=31 // pred_fallthru
          _
      $region32: #{tpu_custom_call.1} parent=5 // pred_fallthru
        _
      %p6460 = scmp.le.s32.totalorder 2, %s18
      // Predicated region
      $region49: #{tpu_custom_call.1} parent=5 // pred_check
        %p6461 = pneg %p6460
      $region50: #{tpu_custom_call.1} parent=5 // pred_check_branch
        %6463 = sbr.rel (%p6461) target = $region52
      $region51: #{tpu_custom_call.1} parent=5 // pred_region
        %s6464 = ssub.s32 %s18, 2
        // Predicated region
        $region53: #{tpu_custom_call.1} parent=51 // pred_check
          %p6465 = pneg %p141
        $region54: #{tpu_custom_call.1} parent=51 // pred_check_branch
          %6467 = sbr.rel (%p6465) target = $region56
        $region55: #{tpu_custom_call.1} parent=51 // pred_region
          %s6468 = sand.u32 %s126, 1
          %s6469 = scalar_lea.sflag [#allocation4], %s6468
          %s6470 = sand.u32 %s126, 1
          %s6471 = smul.addr %s6470, 96
          %s6472 = scalar_lea.vmem [#allocation8], %s6471
          %6473 = dma.done %s6469, 1536
        $region56: #{tpu_custom_call.1} parent=51 // pred_fallthru
          _
      $region52: #{tpu_custom_call.1} parent=5 // pred_fallthru
        _
    $region6: #{tpu_custom_call.1} parent=1 // loop_footer
      %s22 = sadd.s32 1, %s18
    $region7: #{tpu_custom_call.1} parent=1 // loop_footer_branch
      %17 = sbr.rel target = $region3
    $region8: #{tpu_custom_call.1} parent=1 // loop_exit
      _
    %6474 = vsyncpa [#allocation3], 1
    %s6475 = scalar_lea.sflag [#allocation3], 1
    %6476 = vsyncpa %s6475, 1
    %6477 = vsyncpa [#allocation6], 1
    %s6478 = scalar_lea.sflag [#allocation6], 1
    %6479 = vsyncpa %s6478, 1
    %6480 = vsyncpa [#allocation4], 1
    %s6481 = scalar_lea.sflag [#allocation4], 1
    %6482 = vsyncpa %s6481, 1

</llo_original>
